<compile_context>
chip_gen: v5e
topology: v5e:2x2
jax: 0.10.0
libtpu: 0.0.40
codegen_flags: <defaults>
</compile_context>

<pallas_src>
import jax
import jax.numpy as jnp
from jax.experimental import pallas as pl
from jax.experimental.pallas import tpu as pltpu

NUM_FEATURES = 1024   # densenet121.classifier.in_features
HIDDEN1 = 1024
HIDDEN2 = 512
NUM_CLASSES = 14
OUT_PAD = 128         # lane-dense padded output width (multiple of 128)
ROW_ALIGN = 16        # bf16 sublane packing: 16 rows per vreg


def _round_up(x, m):
    return (x + m - 1) // m * m


def chest_xray_head_kernel(x_ref, w1_ref, b1_ref, w2_ref, b2_ref,
                           w3_ref, b3_ref, out_ref):
    # x_ref: (TB, 1024) bf16 pooled features; w*: bf16; b*: f32; out: bf16.
    x = x_ref[...]

    # Linear(1024,1024) -> ReLU  (Dropout(0.6) == identity in eval mode)
    h1 = jnp.dot(x, w1_ref[...], preferred_element_type=jnp.float32) + b1_ref[...]
    h1 = jnp.maximum(h1, 0.0).astype(jnp.bfloat16)

    # Linear(1024,512) -> ReLU   (Dropout(0.5) == identity in eval mode)
    h2 = jnp.dot(h1, w2_ref[...], preferred_element_type=jnp.float32) + b2_ref[...]
    h2 = jnp.maximum(h2, 0.0).astype(jnp.bfloat16)

    # Linear(512,14) (padded to 128 lanes) -> Sigmoid
    logits = jnp.dot(h2, w3_ref[...], preferred_element_type=jnp.float32) + b3_ref[...]
    out_ref[...] = jax.nn.sigmoid(logits).astype(out_ref.dtype)


def chest_xray_model(feature_map_nchw, params, *, block_b=None):
    """feature_map_nchw: (B, 1024, H, W) — output of densenet121.features (NCHW).
    params: kernel-format params from prepare_params()."""
    B, C, H, W = feature_map_nchw.shape
    assert C == NUM_FEATURES

    # DenseNet forward tail: ReLU + adaptive_avg_pool2d((1,1)) + flatten.
    # Done in one fused XLA pass directly on NCHW (no materialized transpose);
    # pooled features are cast to bf16 so the per-step DMA is halved and no
    # in-kernel cast is needed (matches the reference numerics).
    feats = jnp.mean(jnp.maximum(feature_map_nchw, 0.0), axis=(2, 3))
    feats = feats.astype(jnp.bfloat16)                                 # (B, C)

    w1, b1, w2, b2, w3p, b3p = params

    if block_b is None:
        block_b = 512 if B >= 2048 else 256   # 256 matches the v6e/v7x MXU tile

    # Batch tiling: weights/biases use a constant block index (VMEM-resident
    # across all steps); x/out stream over the batch. Ensure >=2 grid steps
    # when B > 8 so dimension_semantics=("parallel",) actually shards the grid
    # across v7x's two TensorCores.
    tb = _round_up(max(B, 1), ROW_ALIGN)
    if B > 8:
        tb = min(tb, _round_up(-(-B // 2), ROW_ALIGN))
    tb = min(tb, block_b)
    b_pad = _round_up(B, tb)
    if b_pad != B:
        feats = jnp.pad(feats, ((0, b_pad - B), (0, 0)))
    grid = (b_pad // tb,)

    const = lambda i: (0, 0)
    out = pl.pallas_call(
        chest_xray_head_kernel,
        out_shape=jax.ShapeDtypeStruct((b_pad, OUT_PAD), jnp.bfloat16),
        grid=grid,
        in_specs=[
            pl.BlockSpec((tb, NUM_FEATURES), lambda i: (i, 0)),   # pooled feats (bf16)
            pl.BlockSpec((NUM_FEATURES, HIDDEN1), const),         # w1 (bf16)
            pl.BlockSpec((1, HIDDEN1), const),                    # b1 (f32)
            pl.BlockSpec((HIDDEN1, HIDDEN2), const),               # w2 (bf16)
            pl.BlockSpec((1, HIDDEN2), const),                    # b2 (f32)
            pl.BlockSpec((HIDDEN2, OUT_PAD), const),               # w3 padded (bf16)
            pl.BlockSpec((1, OUT_PAD), const),                    # b3 padded (f32)
        ],
        out_specs=pl.BlockSpec((tb, OUT_PAD), lambda i: (i, 0)),
        compiler_params=pltpu.CompilerParams(
            dimension_semantics=("parallel",),       # megacore sharding on v7x
            vmem_limit_bytes=32 * 1024 * 1024,       # explicit (v5e default 16 MiB)
        ),
    )(feats, w1, b1, w2, b2, w3p, b3p)

    # Padded lanes (14:128) hold sigmoid(0)=0.5 and padded batch rows hold
    # sigmoid(bias) — the slice below is mandatory.
    return out[:B, :NUM_CLASSES].astype(jnp.float32)


def init_params(key):
    """Full-precision (f32) parameters, JAX (in, out) layout."""
    k1, k2, k3, k4, k5, k6 = jax.random.split(key, 6)
    w1 = 0.02 * jax.random.normal(k1, (NUM_FEATURES, HIDDEN1), jnp.float32)
    b1 = 0.01 * jax.random.normal(k2, (1, HIDDEN1), jnp.float32)
    w2 = 0.02 * jax.random.normal(k3, (HIDDEN1, HIDDEN2), jnp.float32)
    b2 = 0.01 * jax.random.normal(k4, (1, HIDDEN2), jnp.float32)
    w3 = 0.02 * jax.random.normal(k5, (HIDDEN2, NUM_CLASSES), jnp.float32)
    b3 = 0.01 * jax.random.normal(k6, (1, NUM_CLASSES), jnp.float32)
    return (w1, b1, w2, b2, w3, b3)


def prepare_params(params_f32):
    """Kernel format: bf16 weights, f32 biases, last projection padded to 128."""
    w1, b1, w2, b2, w3, b3 = params_f32
    w3p = jnp.zeros((HIDDEN2, OUT_PAD), jnp.float32).at[:, :NUM_CLASSES].set(w3)
    b3p = jnp.zeros((1, OUT_PAD), jnp.float32).at[:, :NUM_CLASSES].set(b3)
    return (w1.astype(jnp.bfloat16), b1,
            w2.astype(jnp.bfloat16), b2,
            w3p.astype(jnp.bfloat16), b3p)


def reference(feature_map_nchw, params_f32):
    """Pure-JAX reference with matching bf16-weight / f32-accumulate numerics
    and the same bf16 rounding of the final probabilities."""
    w1, b1, w2, b2, w3, b3 = params_f32
    feats = jnp.mean(jnp.maximum(feature_map_nchw, 0.0), axis=(2, 3))   # (B, C)

    def mm(a, w):
        return jnp.dot(a.astype(jnp.bfloat16), w.astype(jnp.bfloat16),
                       preferred_element_type=jnp.float32)

    h1 = jnp.maximum(mm(feats, w1) + b1, 0.0)
    h2 = jnp.maximum(mm(h1, w2) + b2, 0.0)
    probs = jax.nn.sigmoid(mm(h2, w3) + b3)
    return probs.astype(jnp.bfloat16).astype(jnp.float32)


if __name__ == "__main__":
    key = jax.random.PRNGKey(0)
    k_x, k_p = jax.random.split(key)

    # Small spatial extent (H=W=4) for the 1024-channel trunk feature map.
    B, H, W = 2, 4, 4
    x = jax.random.normal(k_x, (B, NUM_FEATURES, H, W), jnp.float32)

    params_f32 = init_params(k_p)
    params = prepare_params(params_f32)

    out = jax.block_until_ready(chest_xray_model(x, params))
    ref = jax.block_until_ready(reference(x, params_f32))

    assert out.shape == (B, NUM_CLASSES)
    # Tolerance covers one bf16 ulp (~4e-3 near 1.0) from the bf16 output
    # rounding plus MXU-vs-XLA accumulation-order differences.
    assert jnp.allclose(out, ref, atol=5e-3, rtol=5e-3), "mismatch vs JAX reference"

    print("KERNEL_OK")
</pallas_src>

<mosaic_0001>
module attributes {stable_mosaic.version = 11 : i64} {
  func.func @chest_xray_head_kernel(%arg0: i32, %arg1: memref<16x1024xbf16, #tpu.memory_space<vmem>>, %arg2: memref<1024x1024xbf16, #tpu.memory_space<vmem>>, %arg3: memref<1x1024xf32, #tpu.memory_space<vmem>>, %arg4: memref<1024x512xbf16, #tpu.memory_space<vmem>>, %arg5: memref<1x512xf32, #tpu.memory_space<vmem>>, %arg6: memref<512x128xbf16, #tpu.memory_space<vmem>>, %arg7: memref<1x128xf32, #tpu.memory_space<vmem>>, %arg8: memref<16x128xbf16, #tpu.memory_space<vmem>>) attributes {dimension_semantics = [#tpu.dimension_semantics<parallel>], iteration_bounds = array<i64: 1>, scalar_prefetch = 0 : i64, scratch_operands = 0 : i64, tpu.core_type = #tpu.core_type<tc>, window_params = [{transform_indices = @transform_0, window_bounds = array<i64: 16, 1024>}, {pipeline_mode = #tpu.pipeline_mode<synchronous>, transform_indices = @transform_1, window_bounds = array<i64: 1024, 1024>}, {pipeline_mode = #tpu.pipeline_mode<synchronous>, transform_indices = @transform_2, window_bounds = array<i64: 1, 1024>}, {pipeline_mode = #tpu.pipeline_mode<synchronous>, transform_indices = @transform_3, window_bounds = array<i64: 1024, 512>}, {pipeline_mode = #tpu.pipeline_mode<synchronous>, transform_indices = @transform_4, window_bounds = array<i64: 1, 512>}, {pipeline_mode = #tpu.pipeline_mode<synchronous>, transform_indices = @transform_5, window_bounds = array<i64: 512, 128>}, {pipeline_mode = #tpu.pipeline_mode<synchronous>, transform_indices = @transform_6, window_bounds = array<i64: 1, 128>}, {transform_indices = @transform_7, window_bounds = array<i64: 16, 128>}]} {
    %c0 = arith.constant 0 : index
    %c0_0 = arith.constant 0 : index
    %0 = vector.load %arg1[%c0, %c0_0] : memref<16x1024xbf16, #tpu.memory_space<vmem>>, vector<16x1024xbf16>
    %c0_1 = arith.constant 0 : index
    %c0_2 = arith.constant 0 : index
    %1 = vector.load %arg2[%c0_1, %c0_2] : memref<1024x1024xbf16, #tpu.memory_space<vmem>>, vector<1024x1024xbf16>
    %cst = arith.constant dense<0.000000e+00> : vector<16x1024xf32>
    %2 = tpu.matmul %0, %1, %cst {dimension_numbers = #tpu.dot_dimension_numbers<[1], [0], [0], [1], [0, 0, 1, 1], [], []>} : vector<16x1024xbf16>, vector<1024x1024xbf16>, vector<16x1024xf32> -> vector<16x1024xf32>
    %c0_3 = arith.constant 0 : index
    %c0_4 = arith.constant 0 : index
    %3 = vector.load %arg3[%c0_3, %c0_4] : memref<1x1024xf32, #tpu.memory_space<vmem>>, vector<1x1024xf32>
    %4 = vector.broadcast %3 : vector<1x1024xf32> to vector<16x1024xf32>
    %5 = arith.addf %2, %4 : vector<16x1024xf32>
    %cst_5 = arith.constant 0.000000e+00 : f32
    %6 = vector.broadcast %cst_5 : f32 to vector<16x1024xf32>
    %7 = arith.maximumf %5, %6 : vector<16x1024xf32>
    %8 = arith.truncf %7 : vector<16x1024xf32> to vector<16x1024xbf16>
    %c0_6 = arith.constant 0 : index
    %c0_7 = arith.constant 0 : index
    %9 = vector.load %arg4[%c0_6, %c0_7] : memref<1024x512xbf16, #tpu.memory_space<vmem>>, vector<1024x512xbf16>
    %cst_8 = arith.constant dense<0.000000e+00> : vector<16x512xf32>
    %10 = tpu.matmul %8, %9, %cst_8 {dimension_numbers = #tpu.dot_dimension_numbers<[1], [0], [0], [1], [0, 0, 1, 1], [], []>} : vector<16x1024xbf16>, vector<1024x512xbf16>, vector<16x512xf32> -> vector<16x512xf32>
    %c0_9 = arith.constant 0 : index
    %c0_10 = arith.constant 0 : index
    %11 = vector.load %arg5[%c0_9, %c0_10] : memref<1x512xf32, #tpu.memory_space<vmem>>, vector<1x512xf32>
    %12 = vector.broadcast %11 : vector<1x512xf32> to vector<16x512xf32>
    %13 = arith.addf %10, %12 : vector<16x512xf32>
    %cst_11 = arith.constant 0.000000e+00 : f32
    %14 = vector.broadcast %cst_11 : f32 to vector<16x512xf32>
    %15 = arith.maximumf %13, %14 : vector<16x512xf32>
    %16 = arith.truncf %15 : vector<16x512xf32> to vector<16x512xbf16>
    %c0_12 = arith.constant 0 : index
    %c0_13 = arith.constant 0 : index
    %17 = vector.load %arg6[%c0_12, %c0_13] : memref<512x128xbf16, #tpu.memory_space<vmem>>, vector<512x128xbf16>
    %cst_14 = arith.constant dense<0.000000e+00> : vector<16x128xf32>
    %18 = tpu.matmul %16, %17, %cst_14 {dimension_numbers = #tpu.dot_dimension_numbers<[1], [0], [0], [1], [0, 0, 1, 1], [], []>} : vector<16x512xbf16>, vector<512x128xbf16>, vector<16x128xf32> -> vector<16x128xf32>
    %c0_15 = arith.constant 0 : index
    %c0_16 = arith.constant 0 : index
    %19 = vector.load %arg7[%c0_15, %c0_16] : memref<1x128xf32, #tpu.memory_space<vmem>>, vector<1x128xf32>
    %20 = vector.broadcast %19 : vector<1x128xf32> to vector<16x128xf32>
    %21 = arith.addf %18, %20 : vector<16x128xf32>
    %22 = arith.negf %21 : vector<16x128xf32>
    %23 = math.exp %22 : vector<16x128xf32>
    %cst_17 = arith.constant 1.000000e+00 : f32
    %24 = vector.broadcast %cst_17 : f32 to vector<16x128xf32>
    %25 = arith.addf %24, %23 : vector<16x128xf32>
    %26 = arith.divf %24, %25 : vector<16x128xf32>
    %27 = arith.truncf %26 : vector<16x128xf32> to vector<16x128xbf16>
    %c0_18 = arith.constant 0 : index
    %c0_19 = arith.constant 0 : index
    %28 = vector.load %arg8[%c0_18, %c0_19] : memref<16x128xbf16, #tpu.memory_space<vmem>>, vector<16x128xbf16>
    tpu.vector_store %arg8[%c0_18, %c0_19], %27 {strides = array<i32>} : memref<16x128xbf16, #tpu.memory_space<vmem>>, vector<16x128xbf16>,
    return
  }
  func.func @transform_0(%arg0: i32) -> (i32, i32) {
    %c0_i32 = arith.constant 0 : i32
    %c0_i32_0 = arith.constant 0 : i32
    return %arg0, %c0_i32 : i32, i32
  }
  func.func @transform_1(%arg0: i32) -> (i32, i32) {
    %c0_i32 = arith.constant 0 : i32
    %c0_i32_0 = arith.constant 0 : i32
    %c0_i32_1 = arith.constant 0 : i32
    return %c0_i32, %c0_i32_0 : i32, i32
  }
  func.func @transform_2(%arg0: i32) -> (i32, i32) {
    %c0_i32 = arith.constant 0 : i32
    %c0_i32_0 = arith.constant 0 : i32
    %c0_i32_1 = arith.constant 0 : i32
    return %c0_i32, %c0_i32_0 : i32, i32
  }
  func.func @transform_3(%arg0: i32) -> (i32, i32) {
    %c0_i32 = arith.constant 0 : i32
    %c0_i32_0 = arith.constant 0 : i32
    %c0_i32_1 = arith.constant 0 : i32
    return %c0_i32, %c0_i32_0 : i32, i32
  }
  func.func @transform_4(%arg0: i32) -> (i32, i32) {
    %c0_i32 = arith.constant 0 : i32
    %c0_i32_0 = arith.constant 0 : i32
    %c0_i32_1 = arith.constant 0 : i32
    return %c0_i32, %c0_i32_0 : i32, i32
  }
  func.func @transform_5(%arg0: i32) -> (i32, i32) {
    %c0_i32 = arith.constant 0 : i32
    %c0_i32_0 = arith.constant 0 : i32
    %c0_i32_1 = arith.constant 0 : i32
    return %c0_i32, %c0_i32_0 : i32, i32
  }
  func.func @transform_6(%arg0: i32) -> (i32, i32) {
    %c0_i32 = arith.constant 0 : i32
    %c0_i32_0 = arith.constant 0 : i32
    %c0_i32_1 = arith.constant 0 : i32
    return %c0_i32, %c0_i32_0 : i32, i32
  }
  func.func @transform_7(%arg0: i32) -> (i32, i32) {
    %c0_i32 = arith.constant 0 : i32
    %c0_i32_0 = arith.constant 0 : i32
    return %arg0, %c0_i32 : i32, i32
  }
}

</mosaic_0001>

<llo_original>
// kernel: tpu_custom_call.1
$region0: #{tpu_custom_call.1}
  #allocation0 [shape = 'u32[]', space=smem, size = 0x4, offset = 0x4, fixed_abs, tag = 'smem constant byte address 0x4 - core index']
  #allocation1 [shape = 'u32[72,128]{1,0:T(1,128)}', space=vmem, size = 0x9000, scoped, tag = 'internal scratch']
  %s0 = inlined_call_operand.hbm [shape: bf16[16,1024], index: 0, kind: input, shape index: {}]
  %s1 = inlined_call_operand.hbm [shape: bf16[1024,1024], index: 1, kind: input, shape index: {}]
  %s2 = inlined_call_operand.hbm [shape: f32[1,1024], index: 2, kind: input, shape index: {}]
  %s3 = inlined_call_operand.hbm [shape: bf16[1024,512], index: 3, kind: input, shape index: {}]
  %s4 = inlined_call_operand.hbm [shape: f32[1,512], index: 4, kind: input, shape index: {}]
  %s5 = inlined_call_operand.hbm [shape: bf16[512,128], index: 5, kind: input, shape index: {}]
  %s6 = inlined_call_operand.hbm [shape: f32[1,128], index: 6, kind: input, shape index: {}]
  %s7 = inlined_call_operand.hbm [shape: bf16[16,128], index: 7, kind: output, shape index: {}]
  %s8 = sld [smem:[#allocation0]]
  $region66: #{tpu_custom_call.1} parent=0
    _
  %s10 = ssub.s32 1, %s8
  %s11 = scalar_select 0, %s10, %s8
  $region1: #{tpu_custom_call.1} parent=0
    #allocation2 [shape = 'u8[32768]{0}', space=vmem, size = 0x8000, scoped, tag = 'input window, operand 0, single buffered']
    #allocation3 [shape = 's32[1]{0}', space=sflag, size = 0x4, scoped, tag = 'scoped memory for tpu_custom_call.1']
    #allocation4 [shape = 's32[1]{0}', space=sflag, size = 0x4, scoped, tag = 'scoped memory for tpu_custom_call.1']
    #allocation5 [shape = 'u8[2097152]{0}', space=vmem, size = 0x200000, scoped, tag = 'input window, operand 1, single buffered']
    #allocation6 [shape = 's32[1]{0}', space=sflag, size = 0x4, scoped, tag = 'scoped memory for tpu_custom_call.1']
    #allocation7 [shape = 'u8[4096]{0}', space=vmem, size = 0x1000, scoped, tag = 'input window, operand 2, single buffered']
    #allocation8 [shape = 'u8[1048576]{0}', space=vmem, size = 0x100000, scoped, tag = 'input window, operand 3, single buffered']
    #allocation9 [shape = 's32[1]{0}', space=sflag, size = 0x4, scoped, tag = 'scoped memory for tpu_custom_call.1']
    #allocation10 [shape = 'u8[2048]{0}', space=vmem, size = 0x800, scoped, tag = 'input window, operand 4, single buffered']
    #allocation11 [shape = 'u8[131072]{0}', space=vmem, size = 0x20000, scoped, tag = 'input window, operand 5, single buffered']
    #allocation12 [shape = 's32[1]{0}', space=sflag, size = 0x4, scoped, tag = 'scoped memory for tpu_custom_call.1']
    #allocation13 [shape = 'u8[512]{0}', space=vmem, size = 0x400, scoped, tag = 'input window, operand 6, single buffered']
    #allocation14 [shape = 'u8[4096]{0}', space=vmem, size = 0x1000, scoped, tag = 'output window, operand 0, single buffered']
    %12 = vsyncpa [#allocation3], 0
    %13 = vsyncpa [#allocation6], 0
    %14 = vsyncpa [#allocation9], 0
    %15 = vsyncpa [#allocation12], 0
    %16 = vsyncpa [#allocation4], 0
    // Predicated region
    $region2: #{tpu_custom_call.1} parent=1 // pred_check
      _
    $region3: #{tpu_custom_call.1} parent=1 // pred_check_branch
      %18 = sbr.rel (0) target = $region5
    $region4: #{tpu_custom_call.1} parent=1 // pred_region
      %20 = vsyncadd [#allocation3], 0
      %s21 = sshll.u32 %s0, 4
      %s22 = int_to_ptr.hbm [resolvable:$true] %s21
      %s23 = sshll.u32 [#allocation2], 4
      %s24 = int_to_ptr.vmem [resolvable:$true] %s23
      %29 = dma.hbm_to_vmem [thread:$0]  %s22, 1024, %s24, [#allocation3], 512, 512, 32
    $region5: #{tpu_custom_call.1} parent=1 // pred_fallthru
      _
    // Predicated region
    $region6: #{tpu_custom_call.1} parent=1 // pred_check
      _
    $region7: #{tpu_custom_call.1} parent=1 // pred_check_branch
      %31 = sbr.rel (0) target = $region9
    $region8: #{tpu_custom_call.1} parent=1 // pred_region
      %33 = vsyncadd [#allocation6], 0
      %s34 = sshll.u32 %s1, 4
      %s35 = int_to_ptr.hbm [resolvable:$true] %s34
      %s36 = sshll.u32 [#allocation5], 4
      %s37 = int_to_ptr.vmem [resolvable:$true] %s36
      %42 = dma.hbm_to_vmem [thread:$0]  %s35, 65536, %s37, [#allocation6], 512, 512, 32
    $region9: #{tpu_custom_call.1} parent=1 // pred_fallthru
      _
    // Predicated region
    $region10: #{tpu_custom_call.1} parent=1 // pred_check
      _
    $region11: #{tpu_custom_call.1} parent=1 // pred_check_branch
      %44 = sbr.rel (0) target = $region13
    $region12: #{tpu_custom_call.1} parent=1 // pred_region
      %46 = vsyncadd [#allocation6], 0
      %s48 = sshll.u32 %s2, 4
      %s49 = int_to_ptr.hbm [resolvable:$true] %s48
      %s50 = sshll.u32 [#allocation7], 4
      %s51 = int_to_ptr.vmem [resolvable:$true] %s50
      %53 = dma.hbm_to_vmem [thread:$0]  %s49, 128, %s51, [#allocation6]
    $region13: #{tpu_custom_call.1} parent=1 // pred_fallthru
      _
    // Predicated region
    $region14: #{tpu_custom_call.1} parent=1 // pred_check
      _
    $region15: #{tpu_custom_call.1} parent=1 // pred_check_branch
      %55 = sbr.rel (0) target = $region17
    $region16: #{tpu_custom_call.1} parent=1 // pred_region
      %57 = vsyncadd [#allocation9], 0
      %s58 = sshll.u32 %s3, 4
      %s59 = int_to_ptr.hbm [resolvable:$true] %s58
      %s60 = sshll.u32 [#allocation8], 4
      %s61 = int_to_ptr.vmem [resolvable:$true] %s60
      %66 = dma.hbm_to_vmem [thread:$0]  %s59, 32768, %s61, [#allocation9], 256, 256, 16
    $region17: #{tpu_custom_call.1} parent=1 // pred_fallthru
      _
    // Predicated region
    $region18: #{tpu_custom_call.1} parent=1 // pred_check
      _
    $region19: #{tpu_custom_call.1} parent=1 // pred_check_branch
      %68 = sbr.rel (0) target = $region21
    $region20: #{tpu_custom_call.1} parent=1 // pred_region
      %70 = vsyncadd [#allocation9], 0
      %s72 = sshll.u32 %s4, 4
      %s73 = int_to_ptr.hbm [resolvable:$true] %s72
      %s74 = sshll.u32 [#allocation10], 4
      %s75 = int_to_ptr.vmem [resolvable:$true] %s74
      %77 = dma.hbm_to_vmem [thread:$0]  %s73, 64, %s75, [#allocation9]
    $region21: #{tpu_custom_call.1} parent=1 // pred_fallthru
      _
    // Predicated region
    $region22: #{tpu_custom_call.1} parent=1 // pred_check
      _
    $region23: #{tpu_custom_call.1} parent=1 // pred_check_branch
      %79 = sbr.rel (0) target = $region25
    $region24: #{tpu_custom_call.1} parent=1 // pred_region
      %81 = vsyncadd [#allocation12], 0
      %s82 = sshll.u32 %s5, 4
      %s83 = int_to_ptr.hbm [resolvable:$true] %s82
      %s84 = sshll.u32 [#allocation11], 4
      %s85 = int_to_ptr.vmem [resolvable:$true] %s84
      %90 = dma.hbm_to_vmem [thread:$0]  %s83, 4096, %s85, [#allocation12], 64, 64, 4
    $region25: #{tpu_custom_call.1} parent=1 // pred_fallthru
      _
    // Predicated region
    $region26: #{tpu_custom_call.1} parent=1 // pred_check
      _
    $region27: #{tpu_custom_call.1} parent=1 // pred_check_branch
      %92 = sbr.rel (0) target = $region29
    $region28: #{tpu_custom_call.1} parent=1 // pred_region
      %94 = vsyncadd [#allocation12], 0
      %s96 = sshll.u32 %s6, 4
      %s97 = int_to_ptr.hbm [resolvable:$true] %s96
      %s98 = sshll.u32 [#allocation13], 4
      %s99 = int_to_ptr.vmem [resolvable:$true] %s98
      %101 = dma.hbm_to_vmem [thread:$0]  %s97, 16, %s99, [#allocation12]
    $region29: #{tpu_custom_call.1} parent=1 // pred_fallthru
      _
    // Predicated region
    $region30: #{tpu_custom_call.1} parent=1 // pred_check
      _
    $region31: #{tpu_custom_call.1} parent=1 // pred_check_branch
      %103 = sbr.rel (0) target = $region33
    $region32: #{tpu_custom_call.1} parent=1 // pred_region
      %105 = dma.done [#allocation3], 1024
    $region33: #{tpu_custom_call.1} parent=1 // pred_fallthru
      _
    // Predicated region
    $region34: #{tpu_custom_call.1} parent=1 // pred_check
      _
    $region35: #{tpu_custom_call.1} parent=1 // pred_check_branch
      %107 = sbr.rel (0) target = $region37
    $region36: #{tpu_custom_call.1} parent=1 // pred_region
      %109 = dma.done [#allocation6], 65536
    $region37: #{tpu_custom_call.1} parent=1 // pred_fallthru
      _
    // Predicated region
    $region38: #{tpu_custom_call.1} parent=1 // pred_check
      _
    $region39: #{tpu_custom_call.1} parent=1 // pred_check_branch
      %111 = sbr.rel (0) target = $region41
    $region40: #{tpu_custom_call.1} parent=1 // pred_region
      %113 = dma.done [#allocation6], 128
    $region41: #{tpu_custom_call.1} parent=1 // pred_fallthru
      _
    // Predicated region
    $region42: #{tpu_custom_call.1} parent=1 // pred_check
      _
    $region43: #{tpu_custom_call.1} parent=1 // pred_check_branch
      %115 = sbr.rel (0) target = $region45
    $region44: #{tpu_custom_call.1} parent=1 // pred_region
      %117 = dma.done [#allocation9], 32768
    $region45: #{tpu_custom_call.1} parent=1 // pred_fallthru
      _
    // Predicated region
    $region46: #{tpu_custom_call.1} parent=1 // pred_check
      _
    $region47: #{tpu_custom_call.1} parent=1 // pred_check_branch
      %119 = sbr.rel (0) target = $region49
    $region48: #{tpu_custom_call.1} parent=1 // pred_region
      %121 = dma.done [#allocation9], 64
    $region49: #{tpu_custom_call.1} parent=1 // pred_fallthru
      _
    // Predicated region
    $region50: #{tpu_custom_call.1} parent=1 // pred_check
      _
    $region51: #{tpu_custom_call.1} parent=1 // pred_check_branch
      %123 = sbr.rel (0) target = $region53
    $region52: #{tpu_custom_call.1} parent=1 // pred_region
      %125 = dma.done [#allocation12], 4096
    $region53: #{tpu_custom_call.1} parent=1 // pred_fallthru
      _
    // Predicated region
    $region54: #{tpu_custom_call.1} parent=1 // pred_check
      _
    $region55: #{tpu_custom_call.1} parent=1 // pred_check_branch
      %127 = sbr.rel (0) target = $region57
    $region56: #{tpu_custom_call.1} parent=1 // pred_region
      %129 = dma.done [#allocation12], 16
    $region57: #{tpu_custom_call.1} parent=1 // pred_fallthru
      _
    %v130 = vld [vmem:[#allocation2] sm:$0xff]
    %v131 = vld [vmem:[#allocation2 + $0x8] sm:$0xff]
    %v132 = vld [vmem:[#allocation2 + $0x10] sm:$0xff]
    %v133 = vld [vmem:[#allocation2 + $0x18] sm:$0xff]
    %v134 = vld [vmem:[#allocation2 + $0x20] sm:$0xff]
    %v135 = vld [vmem:[#allocation2 + $0x28] sm:$0xff]
    %v136 = vld [vmem:[#allocation2 + $0x30] sm:$0xff]
    %v137 = vld [vmem:[#allocation2 + $0x38] sm:$0xff]
    %v138 = vld [vmem:[#allocation5] sm:$0xff]
    %v139 = vld [vmem:[#allocation5 + $0x8] sm:$0xff]
    %v140 = vld [vmem:[#allocation5 + $0x10] sm:$0xff]
    %v141 = vld [vmem:[#allocation5 + $0x18] sm:$0xff]
    %v142 = vld [vmem:[#allocation5 + $0x20] sm:$0xff]
    %v143 = vld [vmem:[#allocation5 + $0x28] sm:$0xff]
    %v144 = vld [vmem:[#allocation5 + $0x30] sm:$0xff]
    %v145 = vld [vmem:[#allocation5 + $0x38] sm:$0xff]
    %v146 = vld [vmem:[#allocation5 + $0x40] sm:$0xff]
    %v147 = vld [vmem:[#allocation5 + $0x48] sm:$0xff]
    %v148 = vld [vmem:[#allocation5 + $0x50] sm:$0xff]
    %v149 = vld [vmem:[#allocation5 + $0x58] sm:$0xff]
    %v150 = vld [vmem:[#allocation5 + $0x60] sm:$0xff]
    %v151 = vld [vmem:[#allocation5 + $0x68] sm:$0xff]
    %v152 = vld [vmem:[#allocation5 + $0x70] sm:$0xff]
    %v153 = vld [vmem:[#allocation5 + $0x78] sm:$0xff]
    %v154 = vld [vmem:[#allocation5 + $0x80] sm:$0xff]
    %v155 = vld [vmem:[#allocation5 + $0x88] sm:$0xff]
    %v156 = vld [vmem:[#allocation5 + $0x90] sm:$0xff]
    %v157 = vld [vmem:[#allocation5 + $0x98] sm:$0xff]
    %v158 = vld [vmem:[#allocation5 + $0xa0] sm:$0xff]
    %v159 = vld [vmem:[#allocation5 + $0xa8] sm:$0xff]
    %v160 = vld [vmem:[#allocation5 + $0xb0] sm:$0xff]
    %v161 = vld [vmem:[#allocation5 + $0xb8] sm:$0xff]
    %v162 = vld [vmem:[#allocation5 + $0xc0] sm:$0xff]
    %v163 = vld [vmem:[#allocation5 + $0xc8] sm:$0xff]
    %v164 = vld [vmem:[#allocation5 + $0xd0] sm:$0xff]
    %v165 = vld [vmem:[#allocation5 + $0xd8] sm:$0xff]
    %v166 = vld [vmem:[#allocation5 + $0xe0] sm:$0xff]
    %v167 = vld [vmem:[#allocation5 + $0xe8] sm:$0xff]
    %v168 = vld [vmem:[#allocation5 + $0xf0] sm:$0xff]
    %v169 = vld [vmem:[#allocation5 + $0xf8] sm:$0xff]
    %v170 = vld [vmem:[#allocation5 + $0x100] sm:$0xff]
    %v171 = vld [vmem:[#allocation5 + $0x108] sm:$0xff]
    %v172 = vld [vmem:[#allocation5 + $0x110] sm:$0xff]
    %v173 = vld [vmem:[#allocation5 + $0x118] sm:$0xff]
    %v174 = vld [vmem:[#allocation5 + $0x120] sm:$0xff]
    %v175 = vld [vmem:[#allocation5 + $0x128] sm:$0xff]
    %v176 = vld [vmem:[#allocation5 + $0x130] sm:$0xff]
    %v177 = vld [vmem:[#allocation5 + $0x138] sm:$0xff]
    %v178 = vld [vmem:[#allocation5 + $0x140] sm:$0xff]
    %v179 = vld [vmem:[#allocation5 + $0x148] sm:$0xff]
    %v180 = vld [vmem:[#allocation5 + $0x150] sm:$0xff]
    %v181 = vld [vmem:[#allocation5 + $0x158] sm:$0xff]
    %v182 = vld [vmem:[#allocation5 + $0x160] sm:$0xff]
    %v183 = vld [vmem:[#allocation5 + $0x168] sm:$0xff]
    %v184 = vld [vmem:[#allocation5 + $0x170] sm:$0xff]
    %v185 = vld [vmem:[#allocation5 + $0x178] sm:$0xff]
    %v186 = vld [vmem:[#allocation5 + $0x180] sm:$0xff]
    %v187 = vld [vmem:[#allocation5 + $0x188] sm:$0xff]
    %v188 = vld [vmem:[#allocation5 + $0x190] sm:$0xff]
    %v189 = vld [vmem:[#allocation5 + $0x198] sm:$0xff]
    %v190 = vld [vmem:[#allocation5 + $0x1a0] sm:$0xff]
    %v191 = vld [vmem:[#allocation5 + $0x1a8] sm:$0xff]
    %v192 = vld [vmem:[#allocation5 + $0x1b0] sm:$0xff]
    %v193 = vld [vmem:[#allocation5 + $0x1b8] sm:$0xff]
    %v194 = vld [vmem:[#allocation5 + $0x1c0] sm:$0xff]
    %v195 = vld [vmem:[#allocation5 + $0x1c8] sm:$0xff]
    %v196 = vld [vmem:[#allocation5 + $0x1d0] sm:$0xff]
    %v197 = vld [vmem:[#allocation5 + $0x1d8] sm:$0xff]
    %v198 = vld [vmem:[#allocation5 + $0x1e0] sm:$0xff]
    %v199 = vld [vmem:[#allocation5 + $0x1e8] sm:$0xff]
    %v200 = vld [vmem:[#allocation5 + $0x1f0] sm:$0xff]
    %v201 = vld [vmem:[#allocation5 + $0x1f8] sm:$0xff]
    %v202 = vld [vmem:[#allocation5 + $0x200] sm:$0xff]
    %v203 = vld [vmem:[#allocation5 + $0x208] sm:$0xff]
    %v204 = vld [vmem:[#allocation5 + $0x210] sm:$0xff]
    %v205 = vld [vmem:[#allocation5 + $0x218] sm:$0xff]
    %v206 = vld [vmem:[#allocation5 + $0x220] sm:$0xff]
    %v207 = vld [vmem:[#allocation5 + $0x228] sm:$0xff]
    %v208 = vld [vmem:[#allocation5 + $0x230] sm:$0xff]
    %v209 = vld [vmem:[#allocation5 + $0x238] sm:$0xff]
    %v210 = vld [vmem:[#allocation5 + $0x240] sm:$0xff]
    %v211 = vld [vmem:[#allocation5 + $0x248] sm:$0xff]
    %v212 = vld [vmem:[#allocation5 + $0x250] sm:$0xff]
    %v213 = vld [vmem:[#allocation5 + $0x258] sm:$0xff]
    %v214 = vld [vmem:[#allocation5 + $0x260] sm:$0xff]
    %v215 = vld [vmem:[#allocation5 + $0x268] sm:$0xff]
    %v216 = vld [vmem:[#allocation5 + $0x270] sm:$0xff]
    %v217 = vld [vmem:[#allocation5 + $0x278] sm:$0xff]
    %v218 = vld [vmem:[#allocation5 + $0x280] sm:$0xff]
    %v219 = vld [vmem:[#allocation5 + $0x288] sm:$0xff]
    %v220 = vld [vmem:[#allocation5 + $0x290] sm:$0xff]
    %v221 = vld [vmem:[#allocation5 + $0x298] sm:$0xff]
    %v222 = vld [vmem:[#allocation5 + $0x2a0] sm:$0xff]
    %v223 = vld [vmem:[#allocation5 + $0x2a8] sm:$0xff]
    %v224 = vld [vmem:[#allocation5 + $0x2b0] sm:$0xff]
    %v225 = vld [vmem:[#allocation5 + $0x2b8] sm:$0xff]
    %v226 = vld [vmem:[#allocation5 + $0x2c0] sm:$0xff]
    %v227 = vld [vmem:[#allocation5 + $0x2c8] sm:$0xff]
    %v228 = vld [vmem:[#allocation5 + $0x2d0] sm:$0xff]
    %v229 = vld [vmem:[#allocation5 + $0x2d8] sm:$0xff]
    %v230 = vld [vmem:[#allocation5 + $0x2e0] sm:$0xff]
    %v231 = vld [vmem:[#allocation5 + $0x2e8] sm:$0xff]
    %v232 = vld [vmem:[#allocation5 + $0x2f0] sm:$0xff]
    %v233 = vld [vmem:[#allocation5 + $0x2f8] sm:$0xff]
    %v234 = vld [vmem:[#allocation5 + $0x300] sm:$0xff]
    %v235 = vld [vmem:[#allocation5 + $0x308] sm:$0xff]
    %v236 = vld [vmem:[#allocation5 + $0x310] sm:$0xff]
    %v237 = vld [vmem:[#allocation5 + $0x318] sm:$0xff]
    %v238 = vld [vmem:[#allocation5 + $0x320] sm:$0xff]
    %v239 = vld [vmem:[#allocation5 + $0x328] sm:$0xff]
    %v240 = vld [vmem:[#allocation5 + $0x330] sm:$0xff]
    %v241 = vld [vmem:[#allocation5 + $0x338] sm:$0xff]
    %v242 = vld [vmem:[#allocation5 + $0x340] sm:$0xff]
    %v243 = vld [vmem:[#allocation5 + $0x348] sm:$0xff]
    %v244 = vld [vmem:[#allocation5 + $0x350] sm:$0xff]
    %v245 = vld [vmem:[#allocation5 + $0x358] sm:$0xff]
    %v246 = vld [vmem:[#allocation5 + $0x360] sm:$0xff]
    %v247 = vld [vmem:[#allocation5 + $0x368] sm:$0xff]
    %v248 = vld [vmem:[#allocation5 + $0x370] sm:$0xff]
    %v249 = vld [vmem:[#allocation5 + $0x378] sm:$0xff]
    %v250 = vld [vmem:[#allocation5 + $0x380] sm:$0xff]
    %v251 = vld [vmem:[#allocation5 + $0x388] sm:$0xff]
    %v252 = vld [vmem:[#allocation5 + $0x390] sm:$0xff]
    %v253 = vld [vmem:[#allocation5 + $0x398] sm:$0xff]
    %v254 = vld [vmem:[#allocation5 + $0x3a0] sm:$0xff]
    %v255 = vld [vmem:[#allocation5 + $0x3a8] sm:$0xff]
    %v256 = vld [vmem:[#allocation5 + $0x3b0] sm:$0xff]
    %v257 = vld [vmem:[#allocation5 + $0x3b8] sm:$0xff]
    %v258 = vld [vmem:[#allocation5 + $0x3c0] sm:$0xff]
    %v259 = vld [vmem:[#allocation5 + $0x3c8] sm:$0xff]
    %v260 = vld [vmem:[#allocation5 + $0x3d0] sm:$0xff]
    %v261 = vld [vmem:[#allocation5 + $0x3d8] sm:$0xff]
    %v262 = vld [vmem:[#allocation5 + $0x3e0] sm:$0xff]
    %v263 = vld [vmem:[#allocation5 + $0x3e8] sm:$0xff]
    %v264 = vld [vmem:[#allocation5 + $0x3f0] sm:$0xff]
    %v265 = vld [vmem:[#allocation5 + $0x3f8] sm:$0xff]
    %v266 = vld [vmem:[#allocation5 + $0x400] sm:$0xff]
    %v267 = vld [vmem:[#allocation5 + $0x408] sm:$0xff]
    %v268 = vld [vmem:[#allocation5 + $0x410] sm:$0xff]
    %v269 = vld [vmem:[#allocation5 + $0x418] sm:$0xff]
    %v270 = vld [vmem:[#allocation5 + $0x420] sm:$0xff]
    %v271 = vld [vmem:[#allocation5 + $0x428] sm:$0xff]
    %v272 = vld [vmem:[#allocation5 + $0x430] sm:$0xff]
    %v273 = vld [vmem:[#allocation5 + $0x438] sm:$0xff]
    %v274 = vld [vmem:[#allocation5 + $0x440] sm:$0xff]
    %v275 = vld [vmem:[#allocation5 + $0x448] sm:$0xff]
    %v276 = vld [vmem:[#allocation5 + $0x450] sm:$0xff]
    %v277 = vld [vmem:[#allocation5 + $0x458] sm:$0xff]
    %v278 = vld [vmem:[#allocation5 + $0x460] sm:$0xff]
    %v279 = vld [vmem:[#allocation5 + $0x468] sm:$0xff]
    %v280 = vld [vmem:[#allocation5 + $0x470] sm:$0xff]
    %v281 = vld [vmem:[#allocation5 + $0x478] sm:$0xff]
    %v282 = vld [vmem:[#allocation5 + $0x480] sm:$0xff]
    %v283 = vld [vmem:[#allocation5 + $0x488] sm:$0xff]
    %v284 = vld [vmem:[#allocation5 + $0x490] sm:$0xff]
    %v285 = vld [vmem:[#allocation5 + $0x498] sm:$0xff]
    %v286 = vld [vmem:[#allocation5 + $0x4a0] sm:$0xff]
    %v287 = vld [vmem:[#allocation5 + $0x4a8] sm:$0xff]
    %v288 = vld [vmem:[#allocation5 + $0x4b0] sm:$0xff]
    %v289 = vld [vmem:[#allocation5 + $0x4b8] sm:$0xff]
    %v290 = vld [vmem:[#allocation5 + $0x4c0] sm:$0xff]
    %v291 = vld [vmem:[#allocation5 + $0x4c8] sm:$0xff]
    %v292 = vld [vmem:[#allocation5 + $0x4d0] sm:$0xff]
    %v293 = vld [vmem:[#allocation5 + $0x4d8] sm:$0xff]
    %v294 = vld [vmem:[#allocation5 + $0x4e0] sm:$0xff]
    %v295 = vld [vmem:[#allocation5 + $0x4e8] sm:$0xff]
    %v296 = vld [vmem:[#allocation5 + $0x4f0] sm:$0xff]
    %v297 = vld [vmem:[#allocation5 + $0x4f8] sm:$0xff]
    %v298 = vld [vmem:[#allocation5 + $0x500] sm:$0xff]
    %v299 = vld [vmem:[#allocation5 + $0x508] sm:$0xff]
    %v300 = vld [vmem:[#allocation5 + $0x510] sm:$0xff]
    %v301 = vld [vmem:[#allocation5 + $0x518] sm:$0xff]
    %v302 = vld [vmem:[#allocation5 + $0x520] sm:$0xff]
    %v303 = vld [vmem:[#allocation5 + $0x528] sm:$0xff]
    %v304 = vld [vmem:[#allocation5 + $0x530] sm:$0xff]
    %v305 = vld [vmem:[#allocation5 + $0x538] sm:$0xff]
    %v306 = vld [vmem:[#allocation5 + $0x540] sm:$0xff]
    %v307 = vld [vmem:[#allocation5 + $0x548] sm:$0xff]
    %v308 = vld [vmem:[#allocation5 + $0x550] sm:$0xff]
    %v309 = vld [vmem:[#allocation5 + $0x558] sm:$0xff]
    %v310 = vld [vmem:[#allocation5 + $0x560] sm:$0xff]
    %v311 = vld [vmem:[#allocation5 + $0x568] sm:$0xff]
    %v312 = vld [vmem:[#allocation5 + $0x570] sm:$0xff]
    %v313 = vld [vmem:[#allocation5 + $0x578] sm:$0xff]
    %v314 = vld [vmem:[#allocation5 + $0x580] sm:$0xff]
    %v315 = vld [vmem:[#allocation5 + $0x588] sm:$0xff]
    %v316 = vld [vmem:[#allocation5 + $0x590] sm:$0xff]
    %v317 = vld [vmem:[#allocation5 + $0x598] sm:$0xff]
    %v318 = vld [vmem:[#allocation5 + $0x5a0] sm:$0xff]
    %v319 = vld [vmem:[#allocation5 + $0x5a8] sm:$0xff]
    %v320 = vld [vmem:[#allocation5 + $0x5b0] sm:$0xff]
    %v321 = vld [vmem:[#allocation5 + $0x5b8] sm:$0xff]
    %v322 = vld [vmem:[#allocation5 + $0x5c0] sm:$0xff]
    %v323 = vld [vmem:[#allocation5 + $0x5c8] sm:$0xff]
    %v324 = vld [vmem:[#allocation5 + $0x5d0] sm:$0xff]
    %v325 = vld [vmem:[#allocation5 + $0x5d8] sm:$0xff]
    %v326 = vld [vmem:[#allocation5 + $0x5e0] sm:$0xff]
    %v327 = vld [vmem:[#allocation5 + $0x5e8] sm:$0xff]
    %v328 = vld [vmem:[#allocation5 + $0x5f0] sm:$0xff]
    %v329 = vld [vmem:[#allocation5 + $0x5f8] sm:$0xff]
    %v330 = vld [vmem:[#allocation5 + $0x600] sm:$0xff]
    %v331 = vld [vmem:[#allocation5 + $0x608] sm:$0xff]
    %v332 = vld [vmem:[#allocation5 + $0x610] sm:$0xff]
    %v333 = vld [vmem:[#allocation5 + $0x618] sm:$0xff]
    %v334 = vld [vmem:[#allocation5 + $0x620] sm:$0xff]
    %v335 = vld [vmem:[#allocation5 + $0x628] sm:$0xff]
    %v336 = vld [vmem:[#allocation5 + $0x630] sm:$0xff]
    %v337 = vld [vmem:[#allocation5 + $0x638] sm:$0xff]
    %v338 = vld [vmem:[#allocation5 + $0x640] sm:$0xff]
    %v339 = vld [vmem:[#allocation5 + $0x648] sm:$0xff]
    %v340 = vld [vmem:[#allocation5 + $0x650] sm:$0xff]
    %v341 = vld [vmem:[#allocation5 + $0x658] sm:$0xff]
    %v342 = vld [vmem:[#allocation5 + $0x660] sm:$0xff]
    %v343 = vld [vmem:[#allocation5 + $0x668] sm:$0xff]
    %v344 = vld [vmem:[#allocation5 + $0x670] sm:$0xff]
    %v345 = vld [vmem:[#allocation5 + $0x678] sm:$0xff]
    %v346 = vld [vmem:[#allocation5 + $0x680] sm:$0xff]
    %v347 = vld [vmem:[#allocation5 + $0x688] sm:$0xff]
    %v348 = vld [vmem:[#allocation5 + $0x690] sm:$0xff]
    %v349 = vld [vmem:[#allocation5 + $0x698] sm:$0xff]
    %v350 = vld [vmem:[#allocation5 + $0x6a0] sm:$0xff]
    %v351 = vld [vmem:[#allocation5 + $0x6a8] sm:$0xff]
    %v352 = vld [vmem:[#allocation5 + $0x6b0] sm:$0xff]
    %v353 = vld [vmem:[#allocation5 + $0x6b8] sm:$0xff]
    %v354 = vld [vmem:[#allocation5 + $0x6c0] sm:$0xff]
    %v355 = vld [vmem:[#allocation5 + $0x6c8] sm:$0xff]
    %v356 = vld [vmem:[#allocation5 + $0x6d0] sm:$0xff]
    %v357 = vld [vmem:[#allocation5 + $0x6d8] sm:$0xff]
    %v358 = vld [vmem:[#allocation5 + $0x6e0] sm:$0xff]
    %v359 = vld [vmem:[#allocation5 + $0x6e8] sm:$0xff]
    %v360 = vld [vmem:[#allocation5 + $0x6f0] sm:$0xff]
    %v361 = vld [vmem:[#allocation5 + $0x6f8] sm:$0xff]
    %v362 = vld [vmem:[#allocation5 + $0x700] sm:$0xff]
    %v363 = vld [vmem:[#allocation5 + $0x708] sm:$0xff]
    %v364 = vld [vmem:[#allocation5 + $0x710] sm:$0xff]
    %v365 = vld [vmem:[#allocation5 + $0x718] sm:$0xff]
    %v366 = vld [vmem:[#allocation5 + $0x720] sm:$0xff]
    %v367 = vld [vmem:[#allocation5 + $0x728] sm:$0xff]
    %v368 = vld [vmem:[#allocation5 + $0x730] sm:$0xff]
    %v369 = vld [vmem:[#allocation5 + $0x738] sm:$0xff]
    %v370 = vld [vmem:[#allocation5 + $0x740] sm:$0xff]
    %v371 = vld [vmem:[#allocation5 + $0x748] sm:$0xff]
    %v372 = vld [vmem:[#allocation5 + $0x750] sm:$0xff]
    %v373 = vld [vmem:[#allocation5 + $0x758] sm:$0xff]
    %v374 = vld [vmem:[#allocation5 + $0x760] sm:$0xff]
    %v375 = vld [vmem:[#allocation5 + $0x768] sm:$0xff]
    %v376 = vld [vmem:[#allocation5 + $0x770] sm:$0xff]
    %v377 = vld [vmem:[#allocation5 + $0x778] sm:$0xff]
    %v378 = vld [vmem:[#allocation5 + $0x780] sm:$0xff]
    %v379 = vld [vmem:[#allocation5 + $0x788] sm:$0xff]
    %v380 = vld [vmem:[#allocation5 + $0x790] sm:$0xff]
    %v381 = vld [vmem:[#allocation5 + $0x798] sm:$0xff]
    %v382 = vld [vmem:[#allocation5 + $0x7a0] sm:$0xff]
    %v383 = vld [vmem:[#allocation5 + $0x7a8] sm:$0xff]
    %v384 = vld [vmem:[#allocation5 + $0x7b0] sm:$0xff]
    %v385 = vld [vmem:[#allocation5 + $0x7b8] sm:$0xff]
    %v386 = vld [vmem:[#allocation5 + $0x7c0] sm:$0xff]
    %v387 = vld [vmem:[#allocation5 + $0x7c8] sm:$0xff]
    %v388 = vld [vmem:[#allocation5 + $0x7d0] sm:$0xff]
    %v389 = vld [vmem:[#allocation5 + $0x7d8] sm:$0xff]
    %v390 = vld [vmem:[#allocation5 + $0x7e0] sm:$0xff]
    %v391 = vld [vmem:[#allocation5 + $0x7e8] sm:$0xff]
    %v392 = vld [vmem:[#allocation5 + $0x7f0] sm:$0xff]
    %v393 = vld [vmem:[#allocation5 + $0x7f8] sm:$0xff]
    %v394 = vld [vmem:[#allocation5 + $0x800] sm:$0xff]
    %v395 = vld [vmem:[#allocation5 + $0x808] sm:$0xff]
    %v396 = vld [vmem:[#allocation5 + $0x810] sm:$0xff]
    %v397 = vld [vmem:[#allocation5 + $0x818] sm:$0xff]
    %v398 = vld [vmem:[#allocation5 + $0x820] sm:$0xff]
    %v399 = vld [vmem:[#allocation5 + $0x828] sm:$0xff]
    %v400 = vld [vmem:[#allocation5 + $0x830] sm:$0xff]
    %v401 = vld [vmem:[#allocation5 + $0x838] sm:$0xff]
    %v402 = vld [vmem:[#allocation5 + $0x840] sm:$0xff]
    %v403 = vld [vmem:[#allocation5 + $0x848] sm:$0xff]
    %v404 = vld [vmem:[#allocation5 + $0x850] sm:$0xff]
    %v405 = vld [vmem:[#allocation5 + $0x858] sm:$0xff]
    %v406 = vld [vmem:[#allocation5 + $0x860] sm:$0xff]
    %v407 = vld [vmem:[#allocation5 + $0x868] sm:$0xff]
    %v408 = vld [vmem:[#allocation5 + $0x870] sm:$0xff]
    %v409 = vld [vmem:[#allocation5 + $0x878] sm:$0xff]
    %v410 = vld [vmem:[#allocation5 + $0x880] sm:$0xff]
    %v411 = vld [vmem:[#allocation5 + $0x888] sm:$0xff]
    %v412 = vld [vmem:[#allocation5 + $0x890] sm:$0xff]
    %v413 = vld [vmem:[#allocation5 + $0x898] sm:$0xff]
    %v414 = vld [vmem:[#allocation5 + $0x8a0] sm:$0xff]
    %v415 = vld [vmem:[#allocation5 + $0x8a8] sm:$0xff]
    %v416 = vld [vmem:[#allocation5 + $0x8b0] sm:$0xff]
    %v417 = vld [vmem:[#allocation5 + $0x8b8] sm:$0xff]
    %v418 = vld [vmem:[#allocation5 + $0x8c0] sm:$0xff]
    %v419 = vld [vmem:[#allocation5 + $0x8c8] sm:$0xff]
    %v420 = vld [vmem:[#allocation5 + $0x8d0] sm:$0xff]
    %v421 = vld [vmem:[#allocation5 + $0x8d8] sm:$0xff]
    %v422 = vld [vmem:[#allocation5 + $0x8e0] sm:$0xff]
    %v423 = vld [vmem:[#allocation5 + $0x8e8] sm:$0xff]
    %v424 = vld [vmem:[#allocation5 + $0x8f0] sm:$0xff]
    %v425 = vld [vmem:[#allocation5 + $0x8f8] sm:$0xff]
    %v426 = vld [vmem:[#allocation5 + $0x900] sm:$0xff]
    %v427 = vld [vmem:[#allocation5 + $0x908] sm:$0xff]
    %v428 = vld [vmem:[#allocation5 + $0x910] sm:$0xff]
    %v429 = vld [vmem:[#allocation5 + $0x918] sm:$0xff]
    %v430 = vld [vmem:[#allocation5 + $0x920] sm:$0xff]
    %v431 = vld [vmem:[#allocation5 + $0x928] sm:$0xff]
    %v432 = vld [vmem:[#allocation5 + $0x930] sm:$0xff]
    %v433 = vld [vmem:[#allocation5 + $0x938] sm:$0xff]
    %v434 = vld [vmem:[#allocation5 + $0x940] sm:$0xff]
    %v435 = vld [vmem:[#allocation5 + $0x948] sm:$0xff]
    %v436 = vld [vmem:[#allocation5 + $0x950] sm:$0xff]
    %v437 = vld [vmem:[#allocation5 + $0x958] sm:$0xff]
    %v438 = vld [vmem:[#allocation5 + $0x960] sm:$0xff]
    %v439 = vld [vmem:[#allocation5 + $0x968] sm:$0xff]
    %v440 = vld [vmem:[#allocation5 + $0x970] sm:$0xff]
    %v441 = vld [vmem:[#allocation5 + $0x978] sm:$0xff]
    %v442 = vld [vmem:[#allocation5 + $0x980] sm:$0xff]
    %v443 = vld [vmem:[#allocation5 + $0x988] sm:$0xff]
    %v444 = vld [vmem:[#allocation5 + $0x990] sm:$0xff]
    %v445 = vld [vmem:[#allocation5 + $0x998] sm:$0xff]
    %v446 = vld [vmem:[#allocation5 + $0x9a0] sm:$0xff]
    %v447 = vld [vmem:[#allocation5 + $0x9a8] sm:$0xff]
    %v448 = vld [vmem:[#allocation5 + $0x9b0] sm:$0xff]
    %v449 = vld [vmem:[#allocation5 + $0x9b8] sm:$0xff]
    %v450 = vld [vmem:[#allocation5 + $0x9c0] sm:$0xff]
    %v451 = vld [vmem:[#allocation5 + $0x9c8] sm:$0xff]
    %v452 = vld [vmem:[#allocation5 + $0x9d0] sm:$0xff]
    %v453 = vld [vmem:[#allocation5 + $0x9d8] sm:$0xff]
    %v454 = vld [vmem:[#allocation5 + $0x9e0] sm:$0xff]
    %v455 = vld [vmem:[#allocation5 + $0x9e8] sm:$0xff]
    %v456 = vld [vmem:[#allocation5 + $0x9f0] sm:$0xff]
    %v457 = vld [vmem:[#allocation5 + $0x9f8] sm:$0xff]
    %v458 = vld [vmem:[#allocation5 + $0xa00] sm:$0xff]
    %v459 = vld [vmem:[#allocation5 + $0xa08] sm:$0xff]
    %v460 = vld [vmem:[#allocation5 + $0xa10] sm:$0xff]
    %v461 = vld [vmem:[#allocation5 + $0xa18] sm:$0xff]
    %v462 = vld [vmem:[#allocation5 + $0xa20] sm:$0xff]
    %v463 = vld [vmem:[#allocation5 + $0xa28] sm:$0xff]
    %v464 = vld [vmem:[#allocation5 + $0xa30] sm:$0xff]
    %v465 = vld [vmem:[#allocation5 + $0xa38] sm:$0xff]
    %v466 = vld [vmem:[#allocation5 + $0xa40] sm:$0xff]
    %v467 = vld [vmem:[#allocation5 + $0xa48] sm:$0xff]
    %v468 = vld [vmem:[#allocation5 + $0xa50] sm:$0xff]
    %v469 = vld [vmem:[#allocation5 + $0xa58] sm:$0xff]
    %v470 = vld [vmem:[#allocation5 + $0xa60] sm:$0xff]
    %v471 = vld [vmem:[#allocation5 + $0xa68] sm:$0xff]
    %v472 = vld [vmem:[#allocation5 + $0xa70] sm:$0xff]
    %v473 = vld [vmem:[#allocation5 + $0xa78] sm:$0xff]
    %v474 = vld [vmem:[#allocation5 + $0xa80] sm:$0xff]
    %v475 = vld [vmem:[#allocation5 + $0xa88] sm:$0xff]
    %v476 = vld [vmem:[#allocation5 + $0xa90] sm:$0xff]
    %v477 = vld [vmem:[#allocation5 + $0xa98] sm:$0xff]
    %v478 = vld [vmem:[#allocation5 + $0xaa0] sm:$0xff]
    %v479 = vld [vmem:[#allocation5 + $0xaa8] sm:$0xff]
    %v480 = vld [vmem:[#allocation5 + $0xab0] sm:$0xff]
    %v481 = vld [vmem:[#allocation5 + $0xab8] sm:$0xff]
    %v482 = vld [vmem:[#allocation5 + $0xac0] sm:$0xff]
    %v483 = vld [vmem:[#allocation5 + $0xac8] sm:$0xff]
    %v484 = vld [vmem:[#allocation5 + $0xad0] sm:$0xff]
    %v485 = vld [vmem:[#allocation5 + $0xad8] sm:$0xff]
    %v486 = vld [vmem:[#allocation5 + $0xae0] sm:$0xff]
    %v487 = vld [vmem:[#allocation5 + $0xae8] sm:$0xff]
    %v488 = vld [vmem:[#allocation5 + $0xaf0] sm:$0xff]
    %v489 = vld [vmem:[#allocation5 + $0xaf8] sm:$0xff]
    %v490 = vld [vmem:[#allocation5 + $0xb00] sm:$0xff]
    %v491 = vld [vmem:[#allocation5 + $0xb08] sm:$0xff]
    %v492 = vld [vmem:[#allocation5 + $0xb10] sm:$0xff]
    %v493 = vld [vmem:[#allocation5 + $0xb18] sm:$0xff]
    %v494 = vld [vmem:[#allocation5 + $0xb20] sm:$0xff]
    %v495 = vld [vmem:[#allocation5 + $0xb28] sm:$0xff]
    %v496 = vld [vmem:[#allocation5 + $0xb30] sm:$0xff]
    %v497 = vld [vmem:[#allocation5 + $0xb38] sm:$0xff]
    %v498 = vld [vmem:[#allocation5 + $0xb40] sm:$0xff]
    %v499 = vld [vmem:[#allocation5 + $0xb48] sm:$0xff]
    %v500 = vld [vmem:[#allocation5 + $0xb50] sm:$0xff]
    %v501 = vld [vmem:[#allocation5 + $0xb58] sm:$0xff]
    %v502 = vld [vmem:[#allocation5 + $0xb60] sm:$0xff]
    %v503 = vld [vmem:[#allocation5 + $0xb68] sm:$0xff]
    %v504 = vld [vmem:[#allocation5 + $0xb70] sm:$0xff]
    %v505 = vld [vmem:[#allocation5 + $0xb78] sm:$0xff]
    %v506 = vld [vmem:[#allocation5 + $0xb80] sm:$0xff]
    %v507 = vld [vmem:[#allocation5 + $0xb88] sm:$0xff]
    %v508 = vld [vmem:[#allocation5 + $0xb90] sm:$0xff]
    %v509 = vld [vmem:[#allocation5 + $0xb98] sm:$0xff]
    %v510 = vld [vmem:[#allocation5 + $0xba0] sm:$0xff]
    %v511 = vld [vmem:[#allocation5 + $0xba8] sm:$0xff]
    %v512 = vld [vmem:[#allocation5 + $0xbb0] sm:$0xff]
    %v513 = vld [vmem:[#allocation5 + $0xbb8] sm:$0xff]
    %v514 = vld [vmem:[#allocation5 + $0xbc0] sm:$0xff]
    %v515 = vld [vmem:[#allocation5 + $0xbc8] sm:$0xff]
    %v516 = vld [vmem:[#allocation5 + $0xbd0] sm:$0xff]
    %v517 = vld [vmem:[#allocation5 + $0xbd8] sm:$0xff]
    %v518 = vld [vmem:[#allocation5 + $0xbe0] sm:$0xff]
    %v519 = vld [vmem:[#allocation5 + $0xbe8] sm:$0xff]
    %v520 = vld [vmem:[#allocation5 + $0xbf0] sm:$0xff]
    %v521 = vld [vmem:[#allocation5 + $0xbf8] sm:$0xff]
    %v522 = vld [vmem:[#allocation5 + $0xc00] sm:$0xff]
    %v523 = vld [vmem:[#allocation5 + $0xc08] sm:$0xff]
    %v524 = vld [vmem:[#allocation5 + $0xc10] sm:$0xff]
    %v525 = vld [vmem:[#allocation5 + $0xc18] sm:$0xff]
    %v526 = vld [vmem:[#allocation5 + $0xc20] sm:$0xff]
    %v527 = vld [vmem:[#allocation5 + $0xc28] sm:$0xff]
    %v528 = vld [vmem:[#allocation5 + $0xc30] sm:$0xff]
    %v529 = vld [vmem:[#allocation5 + $0xc38] sm:$0xff]
    %v530 = vld [vmem:[#allocation5 + $0xc40] sm:$0xff]
    %v531 = vld [vmem:[#allocation5 + $0xc48] sm:$0xff]
    %v532 = vld [vmem:[#allocation5 + $0xc50] sm:$0xff]
    %v533 = vld [vmem:[#allocation5 + $0xc58] sm:$0xff]
    %v534 = vld [vmem:[#allocation5 + $0xc60] sm:$0xff]
    %v535 = vld [vmem:[#allocation5 + $0xc68] sm:$0xff]
    %v536 = vld [vmem:[#allocation5 + $0xc70] sm:$0xff]
    %v537 = vld [vmem:[#allocation5 + $0xc78] sm:$0xff]
    %v538 = vld [vmem:[#allocation5 + $0xc80] sm:$0xff]
    %v539 = vld [vmem:[#allocation5 + $0xc88] sm:$0xff]
    %v540 = vld [vmem:[#allocation5 + $0xc90] sm:$0xff]
    %v541 = vld [vmem:[#allocation5 + $0xc98] sm:$0xff]
    %v542 = vld [vmem:[#allocation5 + $0xca0] sm:$0xff]
    %v543 = vld [vmem:[#allocation5 + $0xca8] sm:$0xff]
    %v544 = vld [vmem:[#allocation5 + $0xcb0] sm:$0xff]
    %v545 = vld [vmem:[#allocation5 + $0xcb8] sm:$0xff]
    %v546 = vld [vmem:[#allocation5 + $0xcc0] sm:$0xff]
    %v547 = vld [vmem:[#allocation5 + $0xcc8] sm:$0xff]
    %v548 = vld [vmem:[#allocation5 + $0xcd0] sm:$0xff]
    %v549 = vld [vmem:[#allocation5 + $0xcd8] sm:$0xff]
    %v550 = vld [vmem:[#allocation5 + $0xce0] sm:$0xff]
    %v551 = vld [vmem:[#allocation5 + $0xce8] sm:$0xff]
    %v552 = vld [vmem:[#allocation5 + $0xcf0] sm:$0xff]
    %v553 = vld [vmem:[#allocation5 + $0xcf8] sm:$0xff]
    %v554 = vld [vmem:[#allocation5 + $0xd00] sm:$0xff]
    %v555 = vld [vmem:[#allocation5 + $0xd08] sm:$0xff]
    %v556 = vld [vmem:[#allocation5 + $0xd10] sm:$0xff]
    %v557 = vld [vmem:[#allocation5 + $0xd18] sm:$0xff]
    %v558 = vld [vmem:[#allocation5 + $0xd20] sm:$0xff]
    %v559 = vld [vmem:[#allocation5 + $0xd28] sm:$0xff]
    %v560 = vld [vmem:[#allocation5 + $0xd30] sm:$0xff]
    %v561 = vld [vmem:[#allocation5 + $0xd38] sm:$0xff]
    %v562 = vld [vmem:[#allocation5 + $0xd40] sm:$0xff]
    %v563 = vld [vmem:[#allocation5 + $0xd48] sm:$0xff]
    %v564 = vld [vmem:[#allocation5 + $0xd50] sm:$0xff]
    %v565 = vld [vmem:[#allocation5 + $0xd58] sm:$0xff]
    %v566 = vld [vmem:[#allocation5 + $0xd60] sm:$0xff]
    %v567 = vld [vmem:[#allocation5 + $0xd68] sm:$0xff]
    %v568 = vld [vmem:[#allocation5 + $0xd70] sm:$0xff]
    %v569 = vld [vmem:[#allocation5 + $0xd78] sm:$0xff]
    %v570 = vld [vmem:[#allocation5 + $0xd80] sm:$0xff]
    %v571 = vld [vmem:[#allocation5 + $0xd88] sm:$0xff]
    %v572 = vld [vmem:[#allocation5 + $0xd90] sm:$0xff]
    %v573 = vld [vmem:[#allocation5 + $0xd98] sm:$0xff]
    %v574 = vld [vmem:[#allocation5 + $0xda0] sm:$0xff]
    %v575 = vld [vmem:[#allocation5 + $0xda8] sm:$0xff]
    %v576 = vld [vmem:[#allocation5 + $0xdb0] sm:$0xff]
    %v577 = vld [vmem:[#allocation5 + $0xdb8] sm:$0xff]
    %v578 = vld [vmem:[#allocation5 + $0xdc0] sm:$0xff]
    %v579 = vld [vmem:[#allocation5 + $0xdc8] sm:$0xff]
    %v580 = vld [vmem:[#allocation5 + $0xdd0] sm:$0xff]
    %v581 = vld [vmem:[#allocation5 + $0xdd8] sm:$0xff]
    %v582 = vld [vmem:[#allocation5 + $0xde0] sm:$0xff]
    %v583 = vld [vmem:[#allocation5 + $0xde8] sm:$0xff]
    %v584 = vld [vmem:[#allocation5 + $0xdf0] sm:$0xff]
    %v585 = vld [vmem:[#allocation5 + $0xdf8] sm:$0xff]
    %v586 = vld [vmem:[#allocation5 + $0xe00] sm:$0xff]
    %v587 = vld [vmem:[#allocation5 + $0xe08] sm:$0xff]
    %v588 = vld [vmem:[#allocation5 + $0xe10] sm:$0xff]
    %v589 = vld [vmem:[#allocation5 + $0xe18] sm:$0xff]
    %v590 = vld [vmem:[#allocation5 + $0xe20] sm:$0xff]
    %v591 = vld [vmem:[#allocation5 + $0xe28] sm:$0xff]
    %v592 = vld [vmem:[#allocation5 + $0xe30] sm:$0xff]
    %v593 = vld [vmem:[#allocation5 + $0xe38] sm:$0xff]
    %v594 = vld [vmem:[#allocation5 + $0xe40] sm:$0xff]
    %v595 = vld [vmem:[#allocation5 + $0xe48] sm:$0xff]
    %v596 = vld [vmem:[#allocation5 + $0xe50] sm:$0xff]
    %v597 = vld [vmem:[#allocation5 + $0xe58] sm:$0xff]
    %v598 = vld [vmem:[#allocation5 + $0xe60] sm:$0xff]
    %v599 = vld [vmem:[#allocation5 + $0xe68] sm:$0xff]
    %v600 = vld [vmem:[#allocation5 + $0xe70] sm:$0xff]
    %v601 = vld [vmem:[#allocation5 + $0xe78] sm:$0xff]
    %v602 = vld [vmem:[#allocation5 + $0xe80] sm:$0xff]
    %v603 = vld [vmem:[#allocation5 + $0xe88] sm:$0xff]
    %v604 = vld [vmem:[#allocation5 + $0xe90] sm:$0xff]
    %v605 = vld [vmem:[#allocation5 + $0xe98] sm:$0xff]
    %v606 = vld [vmem:[#allocation5 + $0xea0] sm:$0xff]
    %v607 = vld [vmem:[#allocation5 + $0xea8] sm:$0xff]
    %v608 = vld [vmem:[#allocation5 + $0xeb0] sm:$0xff]
    %v609 = vld [vmem:[#allocation5 + $0xeb8] sm:$0xff]
    %v610 = vld [vmem:[#allocation5 + $0xec0] sm:$0xff]
    %v611 = vld [vmem:[#allocation5 + $0xec8] sm:$0xff]
    %v612 = vld [vmem:[#allocation5 + $0xed0] sm:$0xff]
    %v613 = vld [vmem:[#allocation5 + $0xed8] sm:$0xff]
    %v614 = vld [vmem:[#allocation5 + $0xee0] sm:$0xff]
    %v615 = vld [vmem:[#allocation5 + $0xee8] sm:$0xff]
    %v616 = vld [vmem:[#allocation5 + $0xef0] sm:$0xff]
    %v617 = vld [vmem:[#allocation5 + $0xef8] sm:$0xff]
    %v618 = vld [vmem:[#allocation5 + $0xf00] sm:$0xff]
    %v619 = vld [vmem:[#allocation5 + $0xf08] sm:$0xff]
    %v620 = vld [vmem:[#allocation5 + $0xf10] sm:$0xff]
    %v621 = vld [vmem:[#allocation5 + $0xf18] sm:$0xff]
    %v622 = vld [vmem:[#allocation5 + $0xf20] sm:$0xff]
    %v623 = vld [vmem:[#allocation5 + $0xf28] sm:$0xff]
    %v624 = vld [vmem:[#allocation5 + $0xf30] sm:$0xff]
    %v625 = vld [vmem:[#allocation5 + $0xf38] sm:$0xff]
    %v626 = vld [vmem:[#allocation5 + $0xf40] sm:$0xff]
    %v627 = vld [vmem:[#allocation5 + $0xf48] sm:$0xff]
    %v628 = vld [vmem:[#allocation5 + $0xf50] sm:$0xff]
    %v629 = vld [vmem:[#allocation5 + $0xf58] sm:$0xff]
    %v630 = vld [vmem:[#allocation5 + $0xf60] sm:$0xff]
    %v631 = vld [vmem:[#allocation5 + $0xf68] sm:$0xff]
    %v632 = vld [vmem:[#allocation5 + $0xf70] sm:$0xff]
    %v633 = vld [vmem:[#allocation5 + $0xf78] sm:$0xff]
    %v634 = vld [vmem:[#allocation5 + $0xf80] sm:$0xff]
    %v635 = vld [vmem:[#allocation5 + $0xf88] sm:$0xff]
    %v636 = vld [vmem:[#allocation5 + $0xf90] sm:$0xff]
    %v637 = vld [vmem:[#allocation5 + $0xf98] sm:$0xff]
    %v638 = vld [vmem:[#allocation5 + $0xfa0] sm:$0xff]
    %v639 = vld [vmem:[#allocation5 + $0xfa8] sm:$0xff]
    %v640 = vld [vmem:[#allocation5 + $0xfb0] sm:$0xff]
    %v641 = vld [vmem:[#allocation5 + $0xfb8] sm:$0xff]
    %v642 = vld [vmem:[#allocation5 + $0xfc0] sm:$0xff]
    %v643 = vld [vmem:[#allocation5 + $0xfc8] sm:$0xff]
    %v644 = vld [vmem:[#allocation5 + $0xfd0] sm:$0xff]
    %v645 = vld [vmem:[#allocation5 + $0xfd8] sm:$0xff]
    %v646 = vld [vmem:[#allocation5 + $0xfe0] sm:$0xff]
    %v647 = vld [vmem:[#allocation5 + $0xfe8] sm:$0xff]
    %v648 = vld [vmem:[#allocation5 + $0xff0] sm:$0xff]
    %v649 = vld [vmem:[#allocation5 + $0xff8] sm:$0xff]
    %v650 = vld [vmem:[#allocation7] sm:$0xff]
    %v652 = vperm.slane %v650, 0
    %v653 = vperm.slane %v650, 1
    %v654 = vperm.slane %v650, 2
    %v655 = vperm.slane %v650, 3
    %v656 = vperm.slane %v650, 4
    %v657 = vperm.slane %v650, 5
    %v658 = vperm.slane %v650, 6
    %v659 = vperm.slane %v650, 7
    %v676 = vunpack.c.l.b16 %v130
    %v677 = vunpack.c.h.b16 %v130
    %v678 = vunpack.c.l.b16 %v131
    %v679 = vunpack.c.h.b16 %v131
    %v680 = vunpack.c.l.b16 %v132
    %v681 = vunpack.c.h.b16 %v132
    %v682 = vunpack.c.l.b16 %v133
    %v683 = vunpack.c.h.b16 %v133
    %v684 = vunpack.c.l.b16 %v134
    %v685 = vunpack.c.h.b16 %v134
    %v686 = vunpack.c.l.b16 %v135
    %v687 = vunpack.c.h.b16 %v135
    %v688 = vunpack.c.l.b16 %v136
    %v689 = vunpack.c.h.b16 %v136
    %v690 = vunpack.c.l.b16 %v137
    %v691 = vunpack.c.h.b16 %v137
    %v692 = vpack.c.b16 %v684, %v676
    %v693 = vpack.c.b16 %v685, %v677
    %v694 = vpack.c.b16 %v686, %v678
    %v695 = vpack.c.b16 %v687, %v679
    %v696 = vpack.c.b16 %v688, %v680
    %v697 = vpack.c.b16 %v689, %v681
    %v698 = vpack.c.b16 %v690, %v682
    %v699 = vpack.c.b16 %v691, %v683
    %v1220 = vunpack.c.l.b16 %v138
    %v1221 = vunpack.c.h.b16 %v138
    %v1222 = vunpack.c.l.b16 %v139
    %v1223 = vunpack.c.h.b16 %v139
    %v1224 = vunpack.c.l.b16 %v140
    %v1225 = vunpack.c.h.b16 %v140
    %v1226 = vunpack.c.l.b16 %v141
    %v1227 = vunpack.c.h.b16 %v141
    %v1228 = vunpack.c.l.b16 %v142
    %v1229 = vunpack.c.h.b16 %v142
    %v1230 = vunpack.c.l.b16 %v143
    %v1231 = vunpack.c.h.b16 %v143
    %v1232 = vunpack.c.l.b16 %v144
    %v1233 = vunpack.c.h.b16 %v144
    %v1234 = vunpack.c.l.b16 %v145
    %v1235 = vunpack.c.h.b16 %v145
    %v1236 = vunpack.c.l.b16 %v146
    %v1237 = vunpack.c.h.b16 %v146
    %v1238 = vunpack.c.l.b16 %v147
    %v1239 = vunpack.c.h.b16 %v147
    %v1240 = vunpack.c.l.b16 %v148
    %v1241 = vunpack.c.h.b16 %v148
    %v1242 = vunpack.c.l.b16 %v149
    %v1243 = vunpack.c.h.b16 %v149
    %v1244 = vunpack.c.l.b16 %v150
    %v1245 = vunpack.c.h.b16 %v150
    %v1246 = vunpack.c.l.b16 %v151
    %v1247 = vunpack.c.h.b16 %v151
    %v1248 = vunpack.c.l.b16 %v152
    %v1249 = vunpack.c.h.b16 %v152
    %v1250 = vunpack.c.l.b16 %v153
    %v1251 = vunpack.c.h.b16 %v153
    %v1252 = vunpack.c.l.b16 %v154
    %v1253 = vunpack.c.h.b16 %v154
    %v1254 = vunpack.c.l.b16 %v155
    %v1255 = vunpack.c.h.b16 %v155
    %v1256 = vunpack.c.l.b16 %v156
    %v1257 = vunpack.c.h.b16 %v156
    %v1258 = vunpack.c.l.b16 %v157
    %v1259 = vunpack.c.h.b16 %v157
    %v1260 = vunpack.c.l.b16 %v158
    %v1261 = vunpack.c.h.b16 %v158
    %v1262 = vunpack.c.l.b16 %v159
    %v1263 = vunpack.c.h.b16 %v159
    %v1264 = vunpack.c.l.b16 %v160
    %v1265 = vunpack.c.h.b16 %v160
    %v1266 = vunpack.c.l.b16 %v161
    %v1267 = vunpack.c.h.b16 %v161
    %v1268 = vunpack.c.l.b16 %v162
    %v1269 = vunpack.c.h.b16 %v162
    %v1270 = vunpack.c.l.b16 %v163
    %v1271 = vunpack.c.h.b16 %v163
    %v1272 = vunpack.c.l.b16 %v164
    %v1273 = vunpack.c.h.b16 %v164
    %v1274 = vunpack.c.l.b16 %v165
    %v1275 = vunpack.c.h.b16 %v165
    %v1276 = vunpack.c.l.b16 %v166
    %v1277 = vunpack.c.h.b16 %v166
    %v1278 = vunpack.c.l.b16 %v167
    %v1279 = vunpack.c.h.b16 %v167
    %v1280 = vunpack.c.l.b16 %v168
    %v1281 = vunpack.c.h.b16 %v168
    %v1282 = vunpack.c.l.b16 %v169
    %v1283 = vunpack.c.h.b16 %v169
    %v1284 = vunpack.c.l.b16 %v170
    %v1285 = vunpack.c.h.b16 %v170
    %v1286 = vunpack.c.l.b16 %v171
    %v1287 = vunpack.c.h.b16 %v171
    %v1288 = vunpack.c.l.b16 %v172
    %v1289 = vunpack.c.h.b16 %v172
    %v1290 = vunpack.c.l.b16 %v173
    %v1291 = vunpack.c.h.b16 %v173
    %v1292 = vunpack.c.l.b16 %v174
    %v1293 = vunpack.c.h.b16 %v174
    %v1294 = vunpack.c.l.b16 %v175
    %v1295 = vunpack.c.h.b16 %v175
    %v1296 = vunpack.c.l.b16 %v176
    %v1297 = vunpack.c.h.b16 %v176
    %v1298 = vunpack.c.l.b16 %v177
    %v1299 = vunpack.c.h.b16 %v177
    %v1300 = vunpack.c.l.b16 %v178
    %v1301 = vunpack.c.h.b16 %v178
    %v1302 = vunpack.c.l.b16 %v179
    %v1303 = vunpack.c.h.b16 %v179
    %v1304 = vunpack.c.l.b16 %v180
    %v1305 = vunpack.c.h.b16 %v180
    %v1306 = vunpack.c.l.b16 %v181
    %v1307 = vunpack.c.h.b16 %v181
    %v1308 = vunpack.c.l.b16 %v182
    %v1309 = vunpack.c.h.b16 %v182
    %v1310 = vunpack.c.l.b16 %v183
    %v1311 = vunpack.c.h.b16 %v183
    %v1312 = vunpack.c.l.b16 %v184
    %v1313 = vunpack.c.h.b16 %v184
    %v1314 = vunpack.c.l.b16 %v185
    %v1315 = vunpack.c.h.b16 %v185
    %v1316 = vunpack.c.l.b16 %v186
    %v1317 = vunpack.c.h.b16 %v186
    %v1318 = vunpack.c.l.b16 %v187
    %v1319 = vunpack.c.h.b16 %v187
    %v1320 = vunpack.c.l.b16 %v188
    %v1321 = vunpack.c.h.b16 %v188
    %v1322 = vunpack.c.l.b16 %v189
    %v1323 = vunpack.c.h.b16 %v189
    %v1324 = vunpack.c.l.b16 %v190
    %v1325 = vunpack.c.h.b16 %v190
    %v1326 = vunpack.c.l.b16 %v191
    %v1327 = vunpack.c.h.b16 %v191
    %v1328 = vunpack.c.l.b16 %v192
    %v1329 = vunpack.c.h.b16 %v192
    %v1330 = vunpack.c.l.b16 %v193
    %v1331 = vunpack.c.h.b16 %v193
    %v1332 = vunpack.c.l.b16 %v194
    %v1333 = vunpack.c.h.b16 %v194
    %v1334 = vunpack.c.l.b16 %v195
    %v1335 = vunpack.c.h.b16 %v195
    %v1336 = vunpack.c.l.b16 %v196
    %v1337 = vunpack.c.h.b16 %v196
    %v1338 = vunpack.c.l.b16 %v197
    %v1339 = vunpack.c.h.b16 %v197
    %v1340 = vunpack.c.l.b16 %v198
    %v1341 = vunpack.c.h.b16 %v198
    %v1342 = vunpack.c.l.b16 %v199
    %v1343 = vunpack.c.h.b16 %v199
    %v1344 = vunpack.c.l.b16 %v200
    %v1345 = vunpack.c.h.b16 %v200
    %v1346 = vunpack.c.l.b16 %v201
    %v1347 = vunpack.c.h.b16 %v201
    %v1348 = vunpack.c.l.b16 %v202
    %v1349 = vunpack.c.h.b16 %v202
    %v1350 = vunpack.c.l.b16 %v203
    %v1351 = vunpack.c.h.b16 %v203
    %v1352 = vunpack.c.l.b16 %v204
    %v1353 = vunpack.c.h.b16 %v204
    %v1354 = vunpack.c.l.b16 %v205
    %v1355 = vunpack.c.h.b16 %v205
    %v1356 = vunpack.c.l.b16 %v206
    %v1357 = vunpack.c.h.b16 %v206
    %v1358 = vunpack.c.l.b16 %v207
    %v1359 = vunpack.c.h.b16 %v207
    %v1360 = vunpack.c.l.b16 %v208
    %v1361 = vunpack.c.h.b16 %v208
    %v1362 = vunpack.c.l.b16 %v209
    %v1363 = vunpack.c.h.b16 %v209
    %v1364 = vunpack.c.l.b16 %v210
    %v1365 = vunpack.c.h.b16 %v210
    %v1366 = vunpack.c.l.b16 %v211
    %v1367 = vunpack.c.h.b16 %v211
    %v1368 = vunpack.c.l.b16 %v212
    %v1369 = vunpack.c.h.b16 %v212
    %v1370 = vunpack.c.l.b16 %v213
    %v1371 = vunpack.c.h.b16 %v213
    %v1372 = vunpack.c.l.b16 %v214
    %v1373 = vunpack.c.h.b16 %v214
    %v1374 = vunpack.c.l.b16 %v215
    %v1375 = vunpack.c.h.b16 %v215
    %v1376 = vunpack.c.l.b16 %v216
    %v1377 = vunpack.c.h.b16 %v216
    %v1378 = vunpack.c.l.b16 %v217
    %v1379 = vunpack.c.h.b16 %v217
    %v1380 = vunpack.c.l.b16 %v218
    %v1381 = vunpack.c.h.b16 %v218
    %v1382 = vunpack.c.l.b16 %v219
    %v1383 = vunpack.c.h.b16 %v219
    %v1384 = vunpack.c.l.b16 %v220
    %v1385 = vunpack.c.h.b16 %v220
    %v1386 = vunpack.c.l.b16 %v221
    %v1387 = vunpack.c.h.b16 %v221
    %v1388 = vunpack.c.l.b16 %v222
    %v1389 = vunpack.c.h.b16 %v222
    %v1390 = vunpack.c.l.b16 %v223
    %v1391 = vunpack.c.h.b16 %v223
    %v1392 = vunpack.c.l.b16 %v224
    %v1393 = vunpack.c.h.b16 %v224
    %v1394 = vunpack.c.l.b16 %v225
    %v1395 = vunpack.c.h.b16 %v225
    %v1396 = vunpack.c.l.b16 %v226
    %v1397 = vunpack.c.h.b16 %v226
    %v1398 = vunpack.c.l.b16 %v227
    %v1399 = vunpack.c.h.b16 %v227
    %v1400 = vunpack.c.l.b16 %v228
    %v1401 = vunpack.c.h.b16 %v228
    %v1402 = vunpack.c.l.b16 %v229
    %v1403 = vunpack.c.h.b16 %v229
    %v1404 = vunpack.c.l.b16 %v230
    %v1405 = vunpack.c.h.b16 %v230
    %v1406 = vunpack.c.l.b16 %v231
    %v1407 = vunpack.c.h.b16 %v231
    %v1408 = vunpack.c.l.b16 %v232
    %v1409 = vunpack.c.h.b16 %v232
    %v1410 = vunpack.c.l.b16 %v233
    %v1411 = vunpack.c.h.b16 %v233
    %v1412 = vunpack.c.l.b16 %v234
    %v1413 = vunpack.c.h.b16 %v234
    %v1414 = vunpack.c.l.b16 %v235
    %v1415 = vunpack.c.h.b16 %v235
    %v1416 = vunpack.c.l.b16 %v236
    %v1417 = vunpack.c.h.b16 %v236
    %v1418 = vunpack.c.l.b16 %v237
    %v1419 = vunpack.c.h.b16 %v237
    %v1420 = vunpack.c.l.b16 %v238
    %v1421 = vunpack.c.h.b16 %v238
    %v1422 = vunpack.c.l.b16 %v239
    %v1423 = vunpack.c.h.b16 %v239
    %v1424 = vunpack.c.l.b16 %v240
    %v1425 = vunpack.c.h.b16 %v240
    %v1426 = vunpack.c.l.b16 %v241
    %v1427 = vunpack.c.h.b16 %v241
    %v1428 = vunpack.c.l.b16 %v242
    %v1429 = vunpack.c.h.b16 %v242
    %v1430 = vunpack.c.l.b16 %v243
    %v1431 = vunpack.c.h.b16 %v243
    %v1432 = vunpack.c.l.b16 %v244
    %v1433 = vunpack.c.h.b16 %v244
    %v1434 = vunpack.c.l.b16 %v245
    %v1435 = vunpack.c.h.b16 %v245
    %v1436 = vunpack.c.l.b16 %v246
    %v1437 = vunpack.c.h.b16 %v246
    %v1438 = vunpack.c.l.b16 %v247
    %v1439 = vunpack.c.h.b16 %v247
    %v1440 = vunpack.c.l.b16 %v248
    %v1441 = vunpack.c.h.b16 %v248
    %v1442 = vunpack.c.l.b16 %v249
    %v1443 = vunpack.c.h.b16 %v249
    %v1444 = vunpack.c.l.b16 %v250
    %v1445 = vunpack.c.h.b16 %v250
    %v1446 = vunpack.c.l.b16 %v251
    %v1447 = vunpack.c.h.b16 %v251
    %v1448 = vunpack.c.l.b16 %v252
    %v1449 = vunpack.c.h.b16 %v252
    %v1450 = vunpack.c.l.b16 %v253
    %v1451 = vunpack.c.h.b16 %v253
    %v1452 = vunpack.c.l.b16 %v254
    %v1453 = vunpack.c.h.b16 %v254
    %v1454 = vunpack.c.l.b16 %v255
    %v1455 = vunpack.c.h.b16 %v255
    %v1456 = vunpack.c.l.b16 %v256
    %v1457 = vunpack.c.h.b16 %v256
    %v1458 = vunpack.c.l.b16 %v257
    %v1459 = vunpack.c.h.b16 %v257
    %v1460 = vunpack.c.l.b16 %v258
    %v1461 = vunpack.c.h.b16 %v258
    %v1462 = vunpack.c.l.b16 %v259
    %v1463 = vunpack.c.h.b16 %v259
    %v1464 = vunpack.c.l.b16 %v260
    %v1465 = vunpack.c.h.b16 %v260
    %v1466 = vunpack.c.l.b16 %v261
    %v1467 = vunpack.c.h.b16 %v261
    %v1468 = vunpack.c.l.b16 %v262
    %v1469 = vunpack.c.h.b16 %v262
    %v1470 = vunpack.c.l.b16 %v263
    %v1471 = vunpack.c.h.b16 %v263
    %v1472 = vunpack.c.l.b16 %v264
    %v1473 = vunpack.c.h.b16 %v264
    %v1474 = vunpack.c.l.b16 %v265
    %v1475 = vunpack.c.h.b16 %v265
    %v1476 = vunpack.c.l.b16 %v266
    %v1477 = vunpack.c.h.b16 %v266
    %v1478 = vunpack.c.l.b16 %v267
    %v1479 = vunpack.c.h.b16 %v267
    %v1480 = vunpack.c.l.b16 %v268
    %v1481 = vunpack.c.h.b16 %v268
    %v1482 = vunpack.c.l.b16 %v269
    %v1483 = vunpack.c.h.b16 %v269
    %v1484 = vunpack.c.l.b16 %v270
    %v1485 = vunpack.c.h.b16 %v270
    %v1486 = vunpack.c.l.b16 %v271
    %v1487 = vunpack.c.h.b16 %v271
    %v1488 = vunpack.c.l.b16 %v272
    %v1489 = vunpack.c.h.b16 %v272
    %v1490 = vunpack.c.l.b16 %v273
    %v1491 = vunpack.c.h.b16 %v273
    %v1492 = vunpack.c.l.b16 %v274
    %v1493 = vunpack.c.h.b16 %v274
    %v1494 = vunpack.c.l.b16 %v275
    %v1495 = vunpack.c.h.b16 %v275
    %v1496 = vunpack.c.l.b16 %v276
    %v1497 = vunpack.c.h.b16 %v276
    %v1498 = vunpack.c.l.b16 %v277
    %v1499 = vunpack.c.h.b16 %v277
    %v1500 = vunpack.c.l.b16 %v278
    %v1501 = vunpack.c.h.b16 %v278
    %v1502 = vunpack.c.l.b16 %v279
    %v1503 = vunpack.c.h.b16 %v279
    %v1504 = vunpack.c.l.b16 %v280
    %v1505 = vunpack.c.h.b16 %v280
    %v1506 = vunpack.c.l.b16 %v281
    %v1507 = vunpack.c.h.b16 %v281
    %v1508 = vunpack.c.l.b16 %v282
    %v1509 = vunpack.c.h.b16 %v282
    %v1510 = vunpack.c.l.b16 %v283
    %v1511 = vunpack.c.h.b16 %v283
    %v1512 = vunpack.c.l.b16 %v284
    %v1513 = vunpack.c.h.b16 %v284
    %v1514 = vunpack.c.l.b16 %v285
    %v1515 = vunpack.c.h.b16 %v285
    %v1516 = vunpack.c.l.b16 %v286
    %v1517 = vunpack.c.h.b16 %v286
    %v1518 = vunpack.c.l.b16 %v287
    %v1519 = vunpack.c.h.b16 %v287
    %v1520 = vunpack.c.l.b16 %v288
    %v1521 = vunpack.c.h.b16 %v288
    %v1522 = vunpack.c.l.b16 %v289
    %v1523 = vunpack.c.h.b16 %v289
    %v1524 = vunpack.c.l.b16 %v290
    %v1525 = vunpack.c.h.b16 %v290
    %v1526 = vunpack.c.l.b16 %v291
    %v1527 = vunpack.c.h.b16 %v291
    %v1528 = vunpack.c.l.b16 %v292
    %v1529 = vunpack.c.h.b16 %v292
    %v1530 = vunpack.c.l.b16 %v293
    %v1531 = vunpack.c.h.b16 %v293
    %v1532 = vunpack.c.l.b16 %v294
    %v1533 = vunpack.c.h.b16 %v294
    %v1534 = vunpack.c.l.b16 %v295
    %v1535 = vunpack.c.h.b16 %v295
    %v1536 = vunpack.c.l.b16 %v296
    %v1537 = vunpack.c.h.b16 %v296
    %v1538 = vunpack.c.l.b16 %v297
    %v1539 = vunpack.c.h.b16 %v297
    %v1540 = vunpack.c.l.b16 %v298
    %v1541 = vunpack.c.h.b16 %v298
    %v1542 = vunpack.c.l.b16 %v299
    %v1543 = vunpack.c.h.b16 %v299
    %v1544 = vunpack.c.l.b16 %v300
    %v1545 = vunpack.c.h.b16 %v300
    %v1546 = vunpack.c.l.b16 %v301
    %v1547 = vunpack.c.h.b16 %v301
    %v1548 = vunpack.c.l.b16 %v302
    %v1549 = vunpack.c.h.b16 %v302
    %v1550 = vunpack.c.l.b16 %v303
    %v1551 = vunpack.c.h.b16 %v303
    %v1552 = vunpack.c.l.b16 %v304
    %v1553 = vunpack.c.h.b16 %v304
    %v1554 = vunpack.c.l.b16 %v305
    %v1555 = vunpack.c.h.b16 %v305
    %v1556 = vunpack.c.l.b16 %v306
    %v1557 = vunpack.c.h.b16 %v306
    %v1558 = vunpack.c.l.b16 %v307
    %v1559 = vunpack.c.h.b16 %v307
    %v1560 = vunpack.c.l.b16 %v308
    %v1561 = vunpack.c.h.b16 %v308
    %v1562 = vunpack.c.l.b16 %v309
    %v1563 = vunpack.c.h.b16 %v309
    %v1564 = vunpack.c.l.b16 %v310
    %v1565 = vunpack.c.h.b16 %v310
    %v1566 = vunpack.c.l.b16 %v311
    %v1567 = vunpack.c.h.b16 %v311
    %v1568 = vunpack.c.l.b16 %v312
    %v1569 = vunpack.c.h.b16 %v312
    %v1570 = vunpack.c.l.b16 %v313
    %v1571 = vunpack.c.h.b16 %v313
    %v1572 = vunpack.c.l.b16 %v314
    %v1573 = vunpack.c.h.b16 %v314
    %v1574 = vunpack.c.l.b16 %v315
    %v1575 = vunpack.c.h.b16 %v315
    %v1576 = vunpack.c.l.b16 %v316
    %v1577 = vunpack.c.h.b16 %v316
    %v1578 = vunpack.c.l.b16 %v317
    %v1579 = vunpack.c.h.b16 %v317
    %v1580 = vunpack.c.l.b16 %v318
    %v1581 = vunpack.c.h.b16 %v318
    %v1582 = vunpack.c.l.b16 %v319
    %v1583 = vunpack.c.h.b16 %v319
    %v1584 = vunpack.c.l.b16 %v320
    %v1585 = vunpack.c.h.b16 %v320
    %v1586 = vunpack.c.l.b16 %v321
    %v1587 = vunpack.c.h.b16 %v321
    %v1588 = vunpack.c.l.b16 %v322
    %v1589 = vunpack.c.h.b16 %v322
    %v1590 = vunpack.c.l.b16 %v323
    %v1591 = vunpack.c.h.b16 %v323
    %v1592 = vunpack.c.l.b16 %v324
    %v1593 = vunpack.c.h.b16 %v324
    %v1594 = vunpack.c.l.b16 %v325
    %v1595 = vunpack.c.h.b16 %v325
    %v1596 = vunpack.c.l.b16 %v326
    %v1597 = vunpack.c.h.b16 %v326
    %v1598 = vunpack.c.l.b16 %v327
    %v1599 = vunpack.c.h.b16 %v327
    %v1600 = vunpack.c.l.b16 %v328
    %v1601 = vunpack.c.h.b16 %v328
    %v1602 = vunpack.c.l.b16 %v329
    %v1603 = vunpack.c.h.b16 %v329
    %v1604 = vunpack.c.l.b16 %v330
    %v1605 = vunpack.c.h.b16 %v330
    %v1606 = vunpack.c.l.b16 %v331
    %v1607 = vunpack.c.h.b16 %v331
    %v1608 = vunpack.c.l.b16 %v332
    %v1609 = vunpack.c.h.b16 %v332
    %v1610 = vunpack.c.l.b16 %v333
    %v1611 = vunpack.c.h.b16 %v333
    %v1612 = vunpack.c.l.b16 %v334
    %v1613 = vunpack.c.h.b16 %v334
    %v1614 = vunpack.c.l.b16 %v335
    %v1615 = vunpack.c.h.b16 %v335
    %v1616 = vunpack.c.l.b16 %v336
    %v1617 = vunpack.c.h.b16 %v336
    %v1618 = vunpack.c.l.b16 %v337
    %v1619 = vunpack.c.h.b16 %v337
    %v1620 = vunpack.c.l.b16 %v338
    %v1621 = vunpack.c.h.b16 %v338
    %v1622 = vunpack.c.l.b16 %v339
    %v1623 = vunpack.c.h.b16 %v339
    %v1624 = vunpack.c.l.b16 %v340
    %v1625 = vunpack.c.h.b16 %v340
    %v1626 = vunpack.c.l.b16 %v341
    %v1627 = vunpack.c.h.b16 %v341
    %v1628 = vunpack.c.l.b16 %v342
    %v1629 = vunpack.c.h.b16 %v342
    %v1630 = vunpack.c.l.b16 %v343
    %v1631 = vunpack.c.h.b16 %v343
    %v1632 = vunpack.c.l.b16 %v344
    %v1633 = vunpack.c.h.b16 %v344
    %v1634 = vunpack.c.l.b16 %v345
    %v1635 = vunpack.c.h.b16 %v345
    %v1636 = vunpack.c.l.b16 %v346
    %v1637 = vunpack.c.h.b16 %v346
    %v1638 = vunpack.c.l.b16 %v347
    %v1639 = vunpack.c.h.b16 %v347
    %v1640 = vunpack.c.l.b16 %v348
    %v1641 = vunpack.c.h.b16 %v348
    %v1642 = vunpack.c.l.b16 %v349
    %v1643 = vunpack.c.h.b16 %v349
    %v1644 = vunpack.c.l.b16 %v350
    %v1645 = vunpack.c.h.b16 %v350
    %v1646 = vunpack.c.l.b16 %v351
    %v1647 = vunpack.c.h.b16 %v351
    %v1648 = vunpack.c.l.b16 %v352
    %v1649 = vunpack.c.h.b16 %v352
    %v1650 = vunpack.c.l.b16 %v353
    %v1651 = vunpack.c.h.b16 %v353
    %v1652 = vunpack.c.l.b16 %v354
    %v1653 = vunpack.c.h.b16 %v354
    %v1654 = vunpack.c.l.b16 %v355
    %v1655 = vunpack.c.h.b16 %v355
    %v1656 = vunpack.c.l.b16 %v356
    %v1657 = vunpack.c.h.b16 %v356
    %v1658 = vunpack.c.l.b16 %v357
    %v1659 = vunpack.c.h.b16 %v357
    %v1660 = vunpack.c.l.b16 %v358
    %v1661 = vunpack.c.h.b16 %v358
    %v1662 = vunpack.c.l.b16 %v359
    %v1663 = vunpack.c.h.b16 %v359
    %v1664 = vunpack.c.l.b16 %v360
    %v1665 = vunpack.c.h.b16 %v360
    %v1666 = vunpack.c.l.b16 %v361
    %v1667 = vunpack.c.h.b16 %v361
    %v1668 = vunpack.c.l.b16 %v362
    %v1669 = vunpack.c.h.b16 %v362
    %v1670 = vunpack.c.l.b16 %v363
    %v1671 = vunpack.c.h.b16 %v363
    %v1672 = vunpack.c.l.b16 %v364
    %v1673 = vunpack.c.h.b16 %v364
    %v1674 = vunpack.c.l.b16 %v365
    %v1675 = vunpack.c.h.b16 %v365
    %v1676 = vunpack.c.l.b16 %v366
    %v1677 = vunpack.c.h.b16 %v366
    %v1678 = vunpack.c.l.b16 %v367
    %v1679 = vunpack.c.h.b16 %v367
    %v1680 = vunpack.c.l.b16 %v368
    %v1681 = vunpack.c.h.b16 %v368
    %v1682 = vunpack.c.l.b16 %v369
    %v1683 = vunpack.c.h.b16 %v369
    %v1684 = vunpack.c.l.b16 %v370
    %v1685 = vunpack.c.h.b16 %v370
    %v1686 = vunpack.c.l.b16 %v371
    %v1687 = vunpack.c.h.b16 %v371
    %v1688 = vunpack.c.l.b16 %v372
    %v1689 = vunpack.c.h.b16 %v372
    %v1690 = vunpack.c.l.b16 %v373
    %v1691 = vunpack.c.h.b16 %v373
    %v1692 = vunpack.c.l.b16 %v374
    %v1693 = vunpack.c.h.b16 %v374
    %v1694 = vunpack.c.l.b16 %v375
    %v1695 = vunpack.c.h.b16 %v375
    %v1696 = vunpack.c.l.b16 %v376
    %v1697 = vunpack.c.h.b16 %v376
    %v1698 = vunpack.c.l.b16 %v377
    %v1699 = vunpack.c.h.b16 %v377
    %v1700 = vunpack.c.l.b16 %v378
    %v1701 = vunpack.c.h.b16 %v378
    %v1702 = vunpack.c.l.b16 %v379
    %v1703 = vunpack.c.h.b16 %v379
    %v1704 = vunpack.c.l.b16 %v380
    %v1705 = vunpack.c.h.b16 %v380
    %v1706 = vunpack.c.l.b16 %v381
    %v1707 = vunpack.c.h.b16 %v381
    %v1708 = vunpack.c.l.b16 %v382
    %v1709 = vunpack.c.h.b16 %v382
    %v1710 = vunpack.c.l.b16 %v383
    %v1711 = vunpack.c.h.b16 %v383
    %v1712 = vunpack.c.l.b16 %v384
    %v1713 = vunpack.c.h.b16 %v384
    %v1714 = vunpack.c.l.b16 %v385
    %v1715 = vunpack.c.h.b16 %v385
    %v1716 = vunpack.c.l.b16 %v386
    %v1717 = vunpack.c.h.b16 %v386
    %v1718 = vunpack.c.l.b16 %v387
    %v1719 = vunpack.c.h.b16 %v387
    %v1720 = vunpack.c.l.b16 %v388
    %v1721 = vunpack.c.h.b16 %v388
    %v1722 = vunpack.c.l.b16 %v389
    %v1723 = vunpack.c.h.b16 %v389
    %v1724 = vunpack.c.l.b16 %v390
    %v1725 = vunpack.c.h.b16 %v390
    %v1726 = vunpack.c.l.b16 %v391
    %v1727 = vunpack.c.h.b16 %v391
    %v1728 = vunpack.c.l.b16 %v392
    %v1729 = vunpack.c.h.b16 %v392
    %v1730 = vunpack.c.l.b16 %v393
    %v1731 = vunpack.c.h.b16 %v393
    %v1732 = vunpack.c.l.b16 %v394
    %v1733 = vunpack.c.h.b16 %v394
    %v1734 = vunpack.c.l.b16 %v395
    %v1735 = vunpack.c.h.b16 %v395
    %v1736 = vunpack.c.l.b16 %v396
    %v1737 = vunpack.c.h.b16 %v396
    %v1738 = vunpack.c.l.b16 %v397
    %v1739 = vunpack.c.h.b16 %v397
    %v1740 = vunpack.c.l.b16 %v398
    %v1741 = vunpack.c.h.b16 %v398
    %v1742 = vunpack.c.l.b16 %v399
    %v1743 = vunpack.c.h.b16 %v399
    %v1744 = vunpack.c.l.b16 %v400
    %v1745 = vunpack.c.h.b16 %v400
    %v1746 = vunpack.c.l.b16 %v401
    %v1747 = vunpack.c.h.b16 %v401
    %v1748 = vunpack.c.l.b16 %v402
    %v1749 = vunpack.c.h.b16 %v402
    %v1750 = vunpack.c.l.b16 %v403
    %v1751 = vunpack.c.h.b16 %v403
    %v1752 = vunpack.c.l.b16 %v404
    %v1753 = vunpack.c.h.b16 %v404
    %v1754 = vunpack.c.l.b16 %v405
    %v1755 = vunpack.c.h.b16 %v405
    %v1756 = vunpack.c.l.b16 %v406
    %v1757 = vunpack.c.h.b16 %v406
    %v1758 = vunpack.c.l.b16 %v407
    %v1759 = vunpack.c.h.b16 %v407
    %v1760 = vunpack.c.l.b16 %v408
    %v1761 = vunpack.c.h.b16 %v408
    %v1762 = vunpack.c.l.b16 %v409
    %v1763 = vunpack.c.h.b16 %v409
    %v1764 = vunpack.c.l.b16 %v410
    %v1765 = vunpack.c.h.b16 %v410
    %v1766 = vunpack.c.l.b16 %v411
    %v1767 = vunpack.c.h.b16 %v411
    %v1768 = vunpack.c.l.b16 %v412
    %v1769 = vunpack.c.h.b16 %v412
    %v1770 = vunpack.c.l.b16 %v413
    %v1771 = vunpack.c.h.b16 %v413
    %v1772 = vunpack.c.l.b16 %v414
    %v1773 = vunpack.c.h.b16 %v414
    %v1774 = vunpack.c.l.b16 %v415
    %v1775 = vunpack.c.h.b16 %v415
    %v1776 = vunpack.c.l.b16 %v416
    %v1777 = vunpack.c.h.b16 %v416
    %v1778 = vunpack.c.l.b16 %v417
    %v1779 = vunpack.c.h.b16 %v417
    %v1780 = vunpack.c.l.b16 %v418
    %v1781 = vunpack.c.h.b16 %v418
    %v1782 = vunpack.c.l.b16 %v419
    %v1783 = vunpack.c.h.b16 %v419
    %v1784 = vunpack.c.l.b16 %v420
    %v1785 = vunpack.c.h.b16 %v420
    %v1786 = vunpack.c.l.b16 %v421
    %v1787 = vunpack.c.h.b16 %v421
    %v1788 = vunpack.c.l.b16 %v422
    %v1789 = vunpack.c.h.b16 %v422
    %v1790 = vunpack.c.l.b16 %v423
    %v1791 = vunpack.c.h.b16 %v423
    %v1792 = vunpack.c.l.b16 %v424
    %v1793 = vunpack.c.h.b16 %v424
    %v1794 = vunpack.c.l.b16 %v425
    %v1795 = vunpack.c.h.b16 %v425
    %v1796 = vunpack.c.l.b16 %v426
    %v1797 = vunpack.c.h.b16 %v426
    %v1798 = vunpack.c.l.b16 %v427
    %v1799 = vunpack.c.h.b16 %v427
    %v1800 = vunpack.c.l.b16 %v428
    %v1801 = vunpack.c.h.b16 %v428
    %v1802 = vunpack.c.l.b16 %v429
    %v1803 = vunpack.c.h.b16 %v429
    %v1804 = vunpack.c.l.b16 %v430
    %v1805 = vunpack.c.h.b16 %v430
    %v1806 = vunpack.c.l.b16 %v431
    %v1807 = vunpack.c.h.b16 %v431
    %v1808 = vunpack.c.l.b16 %v432
    %v1809 = vunpack.c.h.b16 %v432
    %v1810 = vunpack.c.l.b16 %v433
    %v1811 = vunpack.c.h.b16 %v433
    %v1812 = vunpack.c.l.b16 %v434
    %v1813 = vunpack.c.h.b16 %v434
    %v1814 = vunpack.c.l.b16 %v435
    %v1815 = vunpack.c.h.b16 %v435
    %v1816 = vunpack.c.l.b16 %v436
    %v1817 = vunpack.c.h.b16 %v436
    %v1818 = vunpack.c.l.b16 %v437
    %v1819 = vunpack.c.h.b16 %v437
    %v1820 = vunpack.c.l.b16 %v438
    %v1821 = vunpack.c.h.b16 %v438
    %v1822 = vunpack.c.l.b16 %v439
    %v1823 = vunpack.c.h.b16 %v439
    %v1824 = vunpack.c.l.b16 %v440
    %v1825 = vunpack.c.h.b16 %v440
    %v1826 = vunpack.c.l.b16 %v441
    %v1827 = vunpack.c.h.b16 %v441
    %v1828 = vunpack.c.l.b16 %v442
    %v1829 = vunpack.c.h.b16 %v442
    %v1830 = vunpack.c.l.b16 %v443
    %v1831 = vunpack.c.h.b16 %v443
    %v1832 = vunpack.c.l.b16 %v444
    %v1833 = vunpack.c.h.b16 %v444
    %v1834 = vunpack.c.l.b16 %v445
    %v1835 = vunpack.c.h.b16 %v445
    %v1836 = vunpack.c.l.b16 %v446
    %v1837 = vunpack.c.h.b16 %v446
    %v1838 = vunpack.c.l.b16 %v447
    %v1839 = vunpack.c.h.b16 %v447
    %v1840 = vunpack.c.l.b16 %v448
    %v1841 = vunpack.c.h.b16 %v448
    %v1842 = vunpack.c.l.b16 %v449
    %v1843 = vunpack.c.h.b16 %v449
    %v1844 = vunpack.c.l.b16 %v450
    %v1845 = vunpack.c.h.b16 %v450
    %v1846 = vunpack.c.l.b16 %v451
    %v1847 = vunpack.c.h.b16 %v451
    %v1848 = vunpack.c.l.b16 %v452
    %v1849 = vunpack.c.h.b16 %v452
    %v1850 = vunpack.c.l.b16 %v453
    %v1851 = vunpack.c.h.b16 %v453
    %v1852 = vunpack.c.l.b16 %v454
    %v1853 = vunpack.c.h.b16 %v454
    %v1854 = vunpack.c.l.b16 %v455
    %v1855 = vunpack.c.h.b16 %v455
    %v1856 = vunpack.c.l.b16 %v456
    %v1857 = vunpack.c.h.b16 %v456
    %v1858 = vunpack.c.l.b16 %v457
    %v1859 = vunpack.c.h.b16 %v457
    %v1860 = vunpack.c.l.b16 %v458
    %v1861 = vunpack.c.h.b16 %v458
    %v1862 = vunpack.c.l.b16 %v459
    %v1863 = vunpack.c.h.b16 %v459
    %v1864 = vunpack.c.l.b16 %v460
    %v1865 = vunpack.c.h.b16 %v460
    %v1866 = vunpack.c.l.b16 %v461
    %v1867 = vunpack.c.h.b16 %v461
    %v1868 = vunpack.c.l.b16 %v462
    %v1869 = vunpack.c.h.b16 %v462
    %v1870 = vunpack.c.l.b16 %v463
    %v1871 = vunpack.c.h.b16 %v463
    %v1872 = vunpack.c.l.b16 %v464
    %v1873 = vunpack.c.h.b16 %v464
    %v1874 = vunpack.c.l.b16 %v465
    %v1875 = vunpack.c.h.b16 %v465
    %v1876 = vunpack.c.l.b16 %v466
    %v1877 = vunpack.c.h.b16 %v466
    %v1878 = vunpack.c.l.b16 %v467
    %v1879 = vunpack.c.h.b16 %v467
    %v1880 = vunpack.c.l.b16 %v468
    %v1881 = vunpack.c.h.b16 %v468
    %v1882 = vunpack.c.l.b16 %v469
    %v1883 = vunpack.c.h.b16 %v469
    %v1884 = vunpack.c.l.b16 %v470
    %v1885 = vunpack.c.h.b16 %v470
    %v1886 = vunpack.c.l.b16 %v471
    %v1887 = vunpack.c.h.b16 %v471
    %v1888 = vunpack.c.l.b16 %v472
    %v1889 = vunpack.c.h.b16 %v472
    %v1890 = vunpack.c.l.b16 %v473
    %v1891 = vunpack.c.h.b16 %v473
    %v1892 = vunpack.c.l.b16 %v474
    %v1893 = vunpack.c.h.b16 %v474
    %v1894 = vunpack.c.l.b16 %v475
    %v1895 = vunpack.c.h.b16 %v475
    %v1896 = vunpack.c.l.b16 %v476
    %v1897 = vunpack.c.h.b16 %v476
    %v1898 = vunpack.c.l.b16 %v477
    %v1899 = vunpack.c.h.b16 %v477
    %v1900 = vunpack.c.l.b16 %v478
    %v1901 = vunpack.c.h.b16 %v478
    %v1902 = vunpack.c.l.b16 %v479
    %v1903 = vunpack.c.h.b16 %v479
    %v1904 = vunpack.c.l.b16 %v480
    %v1905 = vunpack.c.h.b16 %v480
    %v1906 = vunpack.c.l.b16 %v481
    %v1907 = vunpack.c.h.b16 %v481
    %v1908 = vunpack.c.l.b16 %v482
    %v1909 = vunpack.c.h.b16 %v482
    %v1910 = vunpack.c.l.b16 %v483
    %v1911 = vunpack.c.h.b16 %v483
    %v1912 = vunpack.c.l.b16 %v484
    %v1913 = vunpack.c.h.b16 %v484
    %v1914 = vunpack.c.l.b16 %v485
    %v1915 = vunpack.c.h.b16 %v485
    %v1916 = vunpack.c.l.b16 %v486
    %v1917 = vunpack.c.h.b16 %v486
    %v1918 = vunpack.c.l.b16 %v487
    %v1919 = vunpack.c.h.b16 %v487
    %v1920 = vunpack.c.l.b16 %v488
    %v1921 = vunpack.c.h.b16 %v488
    %v1922 = vunpack.c.l.b16 %v489
    %v1923 = vunpack.c.h.b16 %v489
    %v1924 = vunpack.c.l.b16 %v490
    %v1925 = vunpack.c.h.b16 %v490
    %v1926 = vunpack.c.l.b16 %v491
    %v1927 = vunpack.c.h.b16 %v491
    %v1928 = vunpack.c.l.b16 %v492
    %v1929 = vunpack.c.h.b16 %v492
    %v1930 = vunpack.c.l.b16 %v493
    %v1931 = vunpack.c.h.b16 %v493
    %v1932 = vunpack.c.l.b16 %v494
    %v1933 = vunpack.c.h.b16 %v494
    %v1934 = vunpack.c.l.b16 %v495
    %v1935 = vunpack.c.h.b16 %v495
    %v1936 = vunpack.c.l.b16 %v496
    %v1937 = vunpack.c.h.b16 %v496
    %v1938 = vunpack.c.l.b16 %v497
    %v1939 = vunpack.c.h.b16 %v497
    %v1940 = vunpack.c.l.b16 %v498
    %v1941 = vunpack.c.h.b16 %v498
    %v1942 = vunpack.c.l.b16 %v499
    %v1943 = vunpack.c.h.b16 %v499
    %v1944 = vunpack.c.l.b16 %v500
    %v1945 = vunpack.c.h.b16 %v500
    %v1946 = vunpack.c.l.b16 %v501
    %v1947 = vunpack.c.h.b16 %v501
    %v1948 = vunpack.c.l.b16 %v502
    %v1949 = vunpack.c.h.b16 %v502
    %v1950 = vunpack.c.l.b16 %v503
    %v1951 = vunpack.c.h.b16 %v503
    %v1952 = vunpack.c.l.b16 %v504
    %v1953 = vunpack.c.h.b16 %v504
    %v1954 = vunpack.c.l.b16 %v505
    %v1955 = vunpack.c.h.b16 %v505
    %v1956 = vunpack.c.l.b16 %v506
    %v1957 = vunpack.c.h.b16 %v506
    %v1958 = vunpack.c.l.b16 %v507
    %v1959 = vunpack.c.h.b16 %v507
    %v1960 = vunpack.c.l.b16 %v508
    %v1961 = vunpack.c.h.b16 %v508
    %v1962 = vunpack.c.l.b16 %v509
    %v1963 = vunpack.c.h.b16 %v509
    %v1964 = vunpack.c.l.b16 %v510
    %v1965 = vunpack.c.h.b16 %v510
    %v1966 = vunpack.c.l.b16 %v511
    %v1967 = vunpack.c.h.b16 %v511
    %v1968 = vunpack.c.l.b16 %v512
    %v1969 = vunpack.c.h.b16 %v512
    %v1970 = vunpack.c.l.b16 %v513
    %v1971 = vunpack.c.h.b16 %v513
    %v1972 = vunpack.c.l.b16 %v514
    %v1973 = vunpack.c.h.b16 %v514
    %v1974 = vunpack.c.l.b16 %v515
    %v1975 = vunpack.c.h.b16 %v515
    %v1976 = vunpack.c.l.b16 %v516
    %v1977 = vunpack.c.h.b16 %v516
    %v1978 = vunpack.c.l.b16 %v517
    %v1979 = vunpack.c.h.b16 %v517
    %v1980 = vunpack.c.l.b16 %v518
    %v1981 = vunpack.c.h.b16 %v518
    %v1982 = vunpack.c.l.b16 %v519
    %v1983 = vunpack.c.h.b16 %v519
    %v1984 = vunpack.c.l.b16 %v520
    %v1985 = vunpack.c.h.b16 %v520
    %v1986 = vunpack.c.l.b16 %v521
    %v1987 = vunpack.c.h.b16 %v521
    %v1988 = vunpack.c.l.b16 %v522
    %v1989 = vunpack.c.h.b16 %v522
    %v1990 = vunpack.c.l.b16 %v523
    %v1991 = vunpack.c.h.b16 %v523
    %v1992 = vunpack.c.l.b16 %v524
    %v1993 = vunpack.c.h.b16 %v524
    %v1994 = vunpack.c.l.b16 %v525
    %v1995 = vunpack.c.h.b16 %v525
    %v1996 = vunpack.c.l.b16 %v526
    %v1997 = vunpack.c.h.b16 %v526
    %v1998 = vunpack.c.l.b16 %v527
    %v1999 = vunpack.c.h.b16 %v527
    %v2000 = vunpack.c.l.b16 %v528
    %v2001 = vunpack.c.h.b16 %v528
    %v2002 = vunpack.c.l.b16 %v529
    %v2003 = vunpack.c.h.b16 %v529
    %v2004 = vunpack.c.l.b16 %v530
    %v2005 = vunpack.c.h.b16 %v530
    %v2006 = vunpack.c.l.b16 %v531
    %v2007 = vunpack.c.h.b16 %v531
    %v2008 = vunpack.c.l.b16 %v532
    %v2009 = vunpack.c.h.b16 %v532
    %v2010 = vunpack.c.l.b16 %v533
    %v2011 = vunpack.c.h.b16 %v533
    %v2012 = vunpack.c.l.b16 %v534
    %v2013 = vunpack.c.h.b16 %v534
    %v2014 = vunpack.c.l.b16 %v535
    %v2015 = vunpack.c.h.b16 %v535
    %v2016 = vunpack.c.l.b16 %v536
    %v2017 = vunpack.c.h.b16 %v536
    %v2018 = vunpack.c.l.b16 %v537
    %v2019 = vunpack.c.h.b16 %v537
    %v2020 = vunpack.c.l.b16 %v538
    %v2021 = vunpack.c.h.b16 %v538
    %v2022 = vunpack.c.l.b16 %v539
    %v2023 = vunpack.c.h.b16 %v539
    %v2024 = vunpack.c.l.b16 %v540
    %v2025 = vunpack.c.h.b16 %v540
    %v2026 = vunpack.c.l.b16 %v541
    %v2027 = vunpack.c.h.b16 %v541
    %v2028 = vunpack.c.l.b16 %v542
    %v2029 = vunpack.c.h.b16 %v542
    %v2030 = vunpack.c.l.b16 %v543
    %v2031 = vunpack.c.h.b16 %v543
    %v2032 = vunpack.c.l.b16 %v544
    %v2033 = vunpack.c.h.b16 %v544
    %v2034 = vunpack.c.l.b16 %v545
    %v2035 = vunpack.c.h.b16 %v545
    %v2036 = vunpack.c.l.b16 %v546
    %v2037 = vunpack.c.h.b16 %v546
    %v2038 = vunpack.c.l.b16 %v547
    %v2039 = vunpack.c.h.b16 %v547
    %v2040 = vunpack.c.l.b16 %v548
    %v2041 = vunpack.c.h.b16 %v548
    %v2042 = vunpack.c.l.b16 %v549
    %v2043 = vunpack.c.h.b16 %v549
    %v2044 = vunpack.c.l.b16 %v550
    %v2045 = vunpack.c.h.b16 %v550
    %v2046 = vunpack.c.l.b16 %v551
    %v2047 = vunpack.c.h.b16 %v551
    %v2048 = vunpack.c.l.b16 %v552
    %v2049 = vunpack.c.h.b16 %v552
    %v2050 = vunpack.c.l.b16 %v553
    %v2051 = vunpack.c.h.b16 %v553
    %v2052 = vunpack.c.l.b16 %v554
    %v2053 = vunpack.c.h.b16 %v554
    %v2054 = vunpack.c.l.b16 %v555
    %v2055 = vunpack.c.h.b16 %v555
    %v2056 = vunpack.c.l.b16 %v556
    %v2057 = vunpack.c.h.b16 %v556
    %v2058 = vunpack.c.l.b16 %v557
    %v2059 = vunpack.c.h.b16 %v557
    %v2060 = vunpack.c.l.b16 %v558
    %v2061 = vunpack.c.h.b16 %v558
    %v2062 = vunpack.c.l.b16 %v559
    %v2063 = vunpack.c.h.b16 %v559
    %v2064 = vunpack.c.l.b16 %v560
    %v2065 = vunpack.c.h.b16 %v560
    %v2066 = vunpack.c.l.b16 %v561
    %v2067 = vunpack.c.h.b16 %v561
    %v2068 = vunpack.c.l.b16 %v562
    %v2069 = vunpack.c.h.b16 %v562
    %v2070 = vunpack.c.l.b16 %v563
    %v2071 = vunpack.c.h.b16 %v563
    %v2072 = vunpack.c.l.b16 %v564
    %v2073 = vunpack.c.h.b16 %v564
    %v2074 = vunpack.c.l.b16 %v565
    %v2075 = vunpack.c.h.b16 %v565
    %v2076 = vunpack.c.l.b16 %v566
    %v2077 = vunpack.c.h.b16 %v566
    %v2078 = vunpack.c.l.b16 %v567
    %v2079 = vunpack.c.h.b16 %v567
    %v2080 = vunpack.c.l.b16 %v568
    %v2081 = vunpack.c.h.b16 %v568
    %v2082 = vunpack.c.l.b16 %v569
    %v2083 = vunpack.c.h.b16 %v569
    %v2084 = vunpack.c.l.b16 %v570
    %v2085 = vunpack.c.h.b16 %v570
    %v2086 = vunpack.c.l.b16 %v571
    %v2087 = vunpack.c.h.b16 %v571
    %v2088 = vunpack.c.l.b16 %v572
    %v2089 = vunpack.c.h.b16 %v572
    %v2090 = vunpack.c.l.b16 %v573
    %v2091 = vunpack.c.h.b16 %v573
    %v2092 = vunpack.c.l.b16 %v574
    %v2093 = vunpack.c.h.b16 %v574
    %v2094 = vunpack.c.l.b16 %v575
    %v2095 = vunpack.c.h.b16 %v575
    %v2096 = vunpack.c.l.b16 %v576
    %v2097 = vunpack.c.h.b16 %v576
    %v2098 = vunpack.c.l.b16 %v577
    %v2099 = vunpack.c.h.b16 %v577
    %v2100 = vunpack.c.l.b16 %v578
    %v2101 = vunpack.c.h.b16 %v578
    %v2102 = vunpack.c.l.b16 %v579
    %v2103 = vunpack.c.h.b16 %v579
    %v2104 = vunpack.c.l.b16 %v580
    %v2105 = vunpack.c.h.b16 %v580
    %v2106 = vunpack.c.l.b16 %v581
    %v2107 = vunpack.c.h.b16 %v581
    %v2108 = vunpack.c.l.b16 %v582
    %v2109 = vunpack.c.h.b16 %v582
    %v2110 = vunpack.c.l.b16 %v583
    %v2111 = vunpack.c.h.b16 %v583
    %v2112 = vunpack.c.l.b16 %v584
    %v2113 = vunpack.c.h.b16 %v584
    %v2114 = vunpack.c.l.b16 %v585
    %v2115 = vunpack.c.h.b16 %v585
    %v2116 = vunpack.c.l.b16 %v586
    %v2117 = vunpack.c.h.b16 %v586
    %v2118 = vunpack.c.l.b16 %v587
    %v2119 = vunpack.c.h.b16 %v587
    %v2120 = vunpack.c.l.b16 %v588
    %v2121 = vunpack.c.h.b16 %v588
    %v2122 = vunpack.c.l.b16 %v589
    %v2123 = vunpack.c.h.b16 %v589
    %v2124 = vunpack.c.l.b16 %v590
    %v2125 = vunpack.c.h.b16 %v590
    %v2126 = vunpack.c.l.b16 %v591
    %v2127 = vunpack.c.h.b16 %v591
    %v2128 = vunpack.c.l.b16 %v592
    %v2129 = vunpack.c.h.b16 %v592
    %v2130 = vunpack.c.l.b16 %v593
    %v2131 = vunpack.c.h.b16 %v593
    %v2132 = vunpack.c.l.b16 %v594
    %v2133 = vunpack.c.h.b16 %v594
    %v2134 = vunpack.c.l.b16 %v595
    %v2135 = vunpack.c.h.b16 %v595
    %v2136 = vunpack.c.l.b16 %v596
    %v2137 = vunpack.c.h.b16 %v596
    %v2138 = vunpack.c.l.b16 %v597
    %v2139 = vunpack.c.h.b16 %v597
    %v2140 = vunpack.c.l.b16 %v598
    %v2141 = vunpack.c.h.b16 %v598
    %v2142 = vunpack.c.l.b16 %v599
    %v2143 = vunpack.c.h.b16 %v599
    %v2144 = vunpack.c.l.b16 %v600
    %v2145 = vunpack.c.h.b16 %v600
    %v2146 = vunpack.c.l.b16 %v601
    %v2147 = vunpack.c.h.b16 %v601
    %v2148 = vunpack.c.l.b16 %v602
    %v2149 = vunpack.c.h.b16 %v602
    %v2150 = vunpack.c.l.b16 %v603
    %v2151 = vunpack.c.h.b16 %v603
    %v2152 = vunpack.c.l.b16 %v604
    %v2153 = vunpack.c.h.b16 %v604
    %v2154 = vunpack.c.l.b16 %v605
    %v2155 = vunpack.c.h.b16 %v605
    %v2156 = vunpack.c.l.b16 %v606
    %v2157 = vunpack.c.h.b16 %v606
    %v2158 = vunpack.c.l.b16 %v607
    %v2159 = vunpack.c.h.b16 %v607
    %v2160 = vunpack.c.l.b16 %v608
    %v2161 = vunpack.c.h.b16 %v608
    %v2162 = vunpack.c.l.b16 %v609
    %v2163 = vunpack.c.h.b16 %v609
    %v2164 = vunpack.c.l.b16 %v610
    %v2165 = vunpack.c.h.b16 %v610
    %v2166 = vunpack.c.l.b16 %v611
    %v2167 = vunpack.c.h.b16 %v611
    %v2168 = vunpack.c.l.b16 %v612
    %v2169 = vunpack.c.h.b16 %v612
    %v2170 = vunpack.c.l.b16 %v613
    %v2171 = vunpack.c.h.b16 %v613
    %v2172 = vunpack.c.l.b16 %v614
    %v2173 = vunpack.c.h.b16 %v614
    %v2174 = vunpack.c.l.b16 %v615
    %v2175 = vunpack.c.h.b16 %v615
    %v2176 = vunpack.c.l.b16 %v616
    %v2177 = vunpack.c.h.b16 %v616
    %v2178 = vunpack.c.l.b16 %v617
    %v2179 = vunpack.c.h.b16 %v617
    %v2180 = vunpack.c.l.b16 %v618
    %v2181 = vunpack.c.h.b16 %v618
    %v2182 = vunpack.c.l.b16 %v619
    %v2183 = vunpack.c.h.b16 %v619
    %v2184 = vunpack.c.l.b16 %v620
    %v2185 = vunpack.c.h.b16 %v620
    %v2186 = vunpack.c.l.b16 %v621
    %v2187 = vunpack.c.h.b16 %v621
    %v2188 = vunpack.c.l.b16 %v622
    %v2189 = vunpack.c.h.b16 %v622
    %v2190 = vunpack.c.l.b16 %v623
    %v2191 = vunpack.c.h.b16 %v623
    %v2192 = vunpack.c.l.b16 %v624
    %v2193 = vunpack.c.h.b16 %v624
    %v2194 = vunpack.c.l.b16 %v625
    %v2195 = vunpack.c.h.b16 %v625
    %v2196 = vunpack.c.l.b16 %v626
    %v2197 = vunpack.c.h.b16 %v626
    %v2198 = vunpack.c.l.b16 %v627
    %v2199 = vunpack.c.h.b16 %v627
    %v2200 = vunpack.c.l.b16 %v628
    %v2201 = vunpack.c.h.b16 %v628
    %v2202 = vunpack.c.l.b16 %v629
    %v2203 = vunpack.c.h.b16 %v629
    %v2204 = vunpack.c.l.b16 %v630
    %v2205 = vunpack.c.h.b16 %v630
    %v2206 = vunpack.c.l.b16 %v631
    %v2207 = vunpack.c.h.b16 %v631
    %v2208 = vunpack.c.l.b16 %v632
    %v2209 = vunpack.c.h.b16 %v632
    %v2210 = vunpack.c.l.b16 %v633
    %v2211 = vunpack.c.h.b16 %v633
    %v2212 = vunpack.c.l.b16 %v634
    %v2213 = vunpack.c.h.b16 %v634
    %v2214 = vunpack.c.l.b16 %v635
    %v2215 = vunpack.c.h.b16 %v635
    %v2216 = vunpack.c.l.b16 %v636
    %v2217 = vunpack.c.h.b16 %v636
    %v2218 = vunpack.c.l.b16 %v637
    %v2219 = vunpack.c.h.b16 %v637
    %v2220 = vunpack.c.l.b16 %v638
    %v2221 = vunpack.c.h.b16 %v638
    %v2222 = vunpack.c.l.b16 %v639
    %v2223 = vunpack.c.h.b16 %v639
    %v2224 = vunpack.c.l.b16 %v640
    %v2225 = vunpack.c.h.b16 %v640
    %v2226 = vunpack.c.l.b16 %v641
    %v2227 = vunpack.c.h.b16 %v641
    %v2228 = vunpack.c.l.b16 %v642
    %v2229 = vunpack.c.h.b16 %v642
    %v2230 = vunpack.c.l.b16 %v643
    %v2231 = vunpack.c.h.b16 %v643
    %v2232 = vunpack.c.l.b16 %v644
    %v2233 = vunpack.c.h.b16 %v644
    %v2234 = vunpack.c.l.b16 %v645
    %v2235 = vunpack.c.h.b16 %v645
    %v2236 = vunpack.c.l.b16 %v646
    %v2237 = vunpack.c.h.b16 %v646
    %v2238 = vunpack.c.l.b16 %v647
    %v2239 = vunpack.c.h.b16 %v647
    %v2240 = vunpack.c.l.b16 %v648
    %v2241 = vunpack.c.h.b16 %v648
    %v2242 = vunpack.c.l.b16 %v649
    %v2243 = vunpack.c.h.b16 %v649
    %v2244 = vpack.c.b16 %v1228, %v1220
    %v2245 = vpack.c.b16 %v1229, %v1221
    %v2246 = vpack.c.b16 %v1230, %v1222
    %v2247 = vpack.c.b16 %v1231, %v1223
    %v2248 = vpack.c.b16 %v1232, %v1224
    %v2249 = vpack.c.b16 %v1233, %v1225
    %v2250 = vpack.c.b16 %v1234, %v1226
    %v2251 = vpack.c.b16 %v1235, %v1227
    %v2252 = vpack.c.b16 %v1244, %v1236
    %v2253 = vpack.c.b16 %v1245, %v1237
    %v2254 = vpack.c.b16 %v1246, %v1238
    %v2255 = vpack.c.b16 %v1247, %v1239
    %v2256 = vpack.c.b16 %v1248, %v1240
    %v2257 = vpack.c.b16 %v1249, %v1241
    %v2258 = vpack.c.b16 %v1250, %v1242
    %v2259 = vpack.c.b16 %v1251, %v1243
    %v2260 = vpack.c.b16 %v1260, %v1252
    %v2261 = vpack.c.b16 %v1261, %v1253
    %v2262 = vpack.c.b16 %v1262, %v1254
    %v2263 = vpack.c.b16 %v1263, %v1255
    %v2264 = vpack.c.b16 %v1264, %v1256
    %v2265 = vpack.c.b16 %v1265, %v1257
    %v2266 = vpack.c.b16 %v1266, %v1258
    %v2267 = vpack.c.b16 %v1267, %v1259
    %v2268 = vpack.c.b16 %v1276, %v1268
    %v2269 = vpack.c.b16 %v1277, %v1269
    %v2270 = vpack.c.b16 %v1278, %v1270
    %v2271 = vpack.c.b16 %v1279, %v1271
    %v2272 = vpack.c.b16 %v1280, %v1272
    %v2273 = vpack.c.b16 %v1281, %v1273
    %v2274 = vpack.c.b16 %v1282, %v1274
    %v2275 = vpack.c.b16 %v1283, %v1275
    %v2276 = vpack.c.b16 %v1292, %v1284
    %v2277 = vpack.c.b16 %v1293, %v1285
    %v2278 = vpack.c.b16 %v1294, %v1286
    %v2279 = vpack.c.b16 %v1295, %v1287
    %v2280 = vpack.c.b16 %v1296, %v1288
    %v2281 = vpack.c.b16 %v1297, %v1289
    %v2282 = vpack.c.b16 %v1298, %v1290
    %v2283 = vpack.c.b16 %v1299, %v1291
    %v2284 = vpack.c.b16 %v1308, %v1300
    %v2285 = vpack.c.b16 %v1309, %v1301
    %v2286 = vpack.c.b16 %v1310, %v1302
    %v2287 = vpack.c.b16 %v1311, %v1303
    %v2288 = vpack.c.b16 %v1312, %v1304
    %v2289 = vpack.c.b16 %v1313, %v1305
    %v2290 = vpack.c.b16 %v1314, %v1306
    %v2291 = vpack.c.b16 %v1315, %v1307
    %v2292 = vpack.c.b16 %v1324, %v1316
    %v2293 = vpack.c.b16 %v1325, %v1317
    %v2294 = vpack.c.b16 %v1326, %v1318
    %v2295 = vpack.c.b16 %v1327, %v1319
    %v2296 = vpack.c.b16 %v1328, %v1320
    %v2297 = vpack.c.b16 %v1329, %v1321
    %v2298 = vpack.c.b16 %v1330, %v1322
    %v2299 = vpack.c.b16 %v1331, %v1323
    %v2300 = vpack.c.b16 %v1340, %v1332
    %v2301 = vpack.c.b16 %v1341, %v1333
    %v2302 = vpack.c.b16 %v1342, %v1334
    %v2303 = vpack.c.b16 %v1343, %v1335
    %v2304 = vpack.c.b16 %v1344, %v1336
    %v2305 = vpack.c.b16 %v1345, %v1337
    %v2306 = vpack.c.b16 %v1346, %v1338
    %v2307 = vpack.c.b16 %v1347, %v1339
    %v2308 = vpack.c.b16 %v1356, %v1348
    %v2309 = vpack.c.b16 %v1357, %v1349
    %v2310 = vpack.c.b16 %v1358, %v1350
    %v2311 = vpack.c.b16 %v1359, %v1351
    %v2312 = vpack.c.b16 %v1360, %v1352
    %v2313 = vpack.c.b16 %v1361, %v1353
    %v2314 = vpack.c.b16 %v1362, %v1354
    %v2315 = vpack.c.b16 %v1363, %v1355
    %v2316 = vpack.c.b16 %v1372, %v1364
    %v2317 = vpack.c.b16 %v1373, %v1365
    %v2318 = vpack.c.b16 %v1374, %v1366
    %v2319 = vpack.c.b16 %v1375, %v1367
    %v2320 = vpack.c.b16 %v1376, %v1368
    %v2321 = vpack.c.b16 %v1377, %v1369
    %v2322 = vpack.c.b16 %v1378, %v1370
    %v2323 = vpack.c.b16 %v1379, %v1371
    %v2324 = vpack.c.b16 %v1388, %v1380
    %v2325 = vpack.c.b16 %v1389, %v1381
    %v2326 = vpack.c.b16 %v1390, %v1382
    %v2327 = vpack.c.b16 %v1391, %v1383
    %v2328 = vpack.c.b16 %v1392, %v1384
    %v2329 = vpack.c.b16 %v1393, %v1385
    %v2330 = vpack.c.b16 %v1394, %v1386
    %v2331 = vpack.c.b16 %v1395, %v1387
    %v2332 = vpack.c.b16 %v1404, %v1396
    %v2333 = vpack.c.b16 %v1405, %v1397
    %v2334 = vpack.c.b16 %v1406, %v1398
    %v2335 = vpack.c.b16 %v1407, %v1399
    %v2336 = vpack.c.b16 %v1408, %v1400
    %v2337 = vpack.c.b16 %v1409, %v1401
    %v2338 = vpack.c.b16 %v1410, %v1402
    %v2339 = vpack.c.b16 %v1411, %v1403
    %v2340 = vpack.c.b16 %v1420, %v1412
    %v2341 = vpack.c.b16 %v1421, %v1413
    %v2342 = vpack.c.b16 %v1422, %v1414
    %v2343 = vpack.c.b16 %v1423, %v1415
    %v2344 = vpack.c.b16 %v1424, %v1416
    %v2345 = vpack.c.b16 %v1425, %v1417
    %v2346 = vpack.c.b16 %v1426, %v1418
    %v2347 = vpack.c.b16 %v1427, %v1419
    %v2348 = vpack.c.b16 %v1436, %v1428
    %v2349 = vpack.c.b16 %v1437, %v1429
    %v2350 = vpack.c.b16 %v1438, %v1430
    %v2351 = vpack.c.b16 %v1439, %v1431
    %v2352 = vpack.c.b16 %v1440, %v1432
    %v2353 = vpack.c.b16 %v1441, %v1433
    %v2354 = vpack.c.b16 %v1442, %v1434
    %v2355 = vpack.c.b16 %v1443, %v1435
    %v2356 = vpack.c.b16 %v1452, %v1444
    %v2357 = vpack.c.b16 %v1453, %v1445
    %v2358 = vpack.c.b16 %v1454, %v1446
    %v2359 = vpack.c.b16 %v1455, %v1447
    %v2360 = vpack.c.b16 %v1456, %v1448
    %v2361 = vpack.c.b16 %v1457, %v1449
    %v2362 = vpack.c.b16 %v1458, %v1450
    %v2363 = vpack.c.b16 %v1459, %v1451
    %v2364 = vpack.c.b16 %v1468, %v1460
    %v2365 = vpack.c.b16 %v1469, %v1461
    %v2366 = vpack.c.b16 %v1470, %v1462
    %v2367 = vpack.c.b16 %v1471, %v1463
    %v2368 = vpack.c.b16 %v1472, %v1464
    %v2369 = vpack.c.b16 %v1473, %v1465
    %v2370 = vpack.c.b16 %v1474, %v1466
    %v2371 = vpack.c.b16 %v1475, %v1467
    %v2372 = vpack.c.b16 %v1484, %v1476
    %v2373 = vpack.c.b16 %v1485, %v1477
    %v2374 = vpack.c.b16 %v1486, %v1478
    %v2375 = vpack.c.b16 %v1487, %v1479
    %v2376 = vpack.c.b16 %v1488, %v1480
    %v2377 = vpack.c.b16 %v1489, %v1481
    %v2378 = vpack.c.b16 %v1490, %v1482
    %v2379 = vpack.c.b16 %v1491, %v1483
    %v2380 = vpack.c.b16 %v1500, %v1492
    %v2381 = vpack.c.b16 %v1501, %v1493
    %v2382 = vpack.c.b16 %v1502, %v1494
    %v2383 = vpack.c.b16 %v1503, %v1495
    %v2384 = vpack.c.b16 %v1504, %v1496
    %v2385 = vpack.c.b16 %v1505, %v1497
    %v2386 = vpack.c.b16 %v1506, %v1498
    %v2387 = vpack.c.b16 %v1507, %v1499
    %v2388 = vpack.c.b16 %v1516, %v1508
    %v2389 = vpack.c.b16 %v1517, %v1509
    %v2390 = vpack.c.b16 %v1518, %v1510
    %v2391 = vpack.c.b16 %v1519, %v1511
    %v2392 = vpack.c.b16 %v1520, %v1512
    %v2393 = vpack.c.b16 %v1521, %v1513
    %v2394 = vpack.c.b16 %v1522, %v1514
    %v2395 = vpack.c.b16 %v1523, %v1515
    %v2396 = vpack.c.b16 %v1532, %v1524
    %v2397 = vpack.c.b16 %v1533, %v1525
    %v2398 = vpack.c.b16 %v1534, %v1526
    %v2399 = vpack.c.b16 %v1535, %v1527
    %v2400 = vpack.c.b16 %v1536, %v1528
    %v2401 = vpack.c.b16 %v1537, %v1529
    %v2402 = vpack.c.b16 %v1538, %v1530
    %v2403 = vpack.c.b16 %v1539, %v1531
    %v2404 = vpack.c.b16 %v1548, %v1540
    %v2405 = vpack.c.b16 %v1549, %v1541
    %v2406 = vpack.c.b16 %v1550, %v1542
    %v2407 = vpack.c.b16 %v1551, %v1543
    %v2408 = vpack.c.b16 %v1552, %v1544
    %v2409 = vpack.c.b16 %v1553, %v1545
    %v2410 = vpack.c.b16 %v1554, %v1546
    %v2411 = vpack.c.b16 %v1555, %v1547
    %v2412 = vpack.c.b16 %v1564, %v1556
    %v2413 = vpack.c.b16 %v1565, %v1557
    %v2414 = vpack.c.b16 %v1566, %v1558
    %v2415 = vpack.c.b16 %v1567, %v1559
    %v2416 = vpack.c.b16 %v1568, %v1560
    %v2417 = vpack.c.b16 %v1569, %v1561
    %v2418 = vpack.c.b16 %v1570, %v1562
    %v2419 = vpack.c.b16 %v1571, %v1563
    %v2420 = vpack.c.b16 %v1580, %v1572
    %v2421 = vpack.c.b16 %v1581, %v1573
    %v2422 = vpack.c.b16 %v1582, %v1574
    %v2423 = vpack.c.b16 %v1583, %v1575
    %v2424 = vpack.c.b16 %v1584, %v1576
    %v2425 = vpack.c.b16 %v1585, %v1577
    %v2426 = vpack.c.b16 %v1586, %v1578
    %v2427 = vpack.c.b16 %v1587, %v1579
    %v2428 = vpack.c.b16 %v1596, %v1588
    %v2429 = vpack.c.b16 %v1597, %v1589
    %v2430 = vpack.c.b16 %v1598, %v1590
    %v2431 = vpack.c.b16 %v1599, %v1591
    %v2432 = vpack.c.b16 %v1600, %v1592
    %v2433 = vpack.c.b16 %v1601, %v1593
    %v2434 = vpack.c.b16 %v1602, %v1594
    %v2435 = vpack.c.b16 %v1603, %v1595
    %v2436 = vpack.c.b16 %v1612, %v1604
    %v2437 = vpack.c.b16 %v1613, %v1605
    %v2438 = vpack.c.b16 %v1614, %v1606
    %v2439 = vpack.c.b16 %v1615, %v1607
    %v2440 = vpack.c.b16 %v1616, %v1608
    %v2441 = vpack.c.b16 %v1617, %v1609
    %v2442 = vpack.c.b16 %v1618, %v1610
    %v2443 = vpack.c.b16 %v1619, %v1611
    %v2444 = vpack.c.b16 %v1628, %v1620
    %v2445 = vpack.c.b16 %v1629, %v1621
    %v2446 = vpack.c.b16 %v1630, %v1622
    %v2447 = vpack.c.b16 %v1631, %v1623
    %v2448 = vpack.c.b16 %v1632, %v1624
    %v2449 = vpack.c.b16 %v1633, %v1625
    %v2450 = vpack.c.b16 %v1634, %v1626
    %v2451 = vpack.c.b16 %v1635, %v1627
    %v2452 = vpack.c.b16 %v1644, %v1636
    %v2453 = vpack.c.b16 %v1645, %v1637
    %v2454 = vpack.c.b16 %v1646, %v1638
    %v2455 = vpack.c.b16 %v1647, %v1639
    %v2456 = vpack.c.b16 %v1648, %v1640
    %v2457 = vpack.c.b16 %v1649, %v1641
    %v2458 = vpack.c.b16 %v1650, %v1642
    %v2459 = vpack.c.b16 %v1651, %v1643
    %v2460 = vpack.c.b16 %v1660, %v1652
    %v2461 = vpack.c.b16 %v1661, %v1653
    %v2462 = vpack.c.b16 %v1662, %v1654
    %v2463 = vpack.c.b16 %v1663, %v1655
    %v2464 = vpack.c.b16 %v1664, %v1656
    %v2465 = vpack.c.b16 %v1665, %v1657
    %v2466 = vpack.c.b16 %v1666, %v1658
    %v2467 = vpack.c.b16 %v1667, %v1659
    %v2468 = vpack.c.b16 %v1676, %v1668
    %v2469 = vpack.c.b16 %v1677, %v1669
    %v2470 = vpack.c.b16 %v1678, %v1670
    %v2471 = vpack.c.b16 %v1679, %v1671
    %v2472 = vpack.c.b16 %v1680, %v1672
    %v2473 = vpack.c.b16 %v1681, %v1673
    %v2474 = vpack.c.b16 %v1682, %v1674
    %v2475 = vpack.c.b16 %v1683, %v1675
    %v2476 = vpack.c.b16 %v1692, %v1684
    %v2477 = vpack.c.b16 %v1693, %v1685
    %v2478 = vpack.c.b16 %v1694, %v1686
    %v2479 = vpack.c.b16 %v1695, %v1687
    %v2480 = vpack.c.b16 %v1696, %v1688
    %v2481 = vpack.c.b16 %v1697, %v1689
    %v2482 = vpack.c.b16 %v1698, %v1690
    %v2483 = vpack.c.b16 %v1699, %v1691
    %v2484 = vpack.c.b16 %v1708, %v1700
    %v2485 = vpack.c.b16 %v1709, %v1701
    %v2486 = vpack.c.b16 %v1710, %v1702
    %v2487 = vpack.c.b16 %v1711, %v1703
    %v2488 = vpack.c.b16 %v1712, %v1704
    %v2489 = vpack.c.b16 %v1713, %v1705
    %v2490 = vpack.c.b16 %v1714, %v1706
    %v2491 = vpack.c.b16 %v1715, %v1707
    %v2492 = vpack.c.b16 %v1724, %v1716
    %v2493 = vpack.c.b16 %v1725, %v1717
    %v2494 = vpack.c.b16 %v1726, %v1718
    %v2495 = vpack.c.b16 %v1727, %v1719
    %v2496 = vpack.c.b16 %v1728, %v1720
    %v2497 = vpack.c.b16 %v1729, %v1721
    %v2498 = vpack.c.b16 %v1730, %v1722
    %v2499 = vpack.c.b16 %v1731, %v1723
    %v2500 = vpack.c.b16 %v1740, %v1732
    %v2501 = vpack.c.b16 %v1741, %v1733
    %v2502 = vpack.c.b16 %v1742, %v1734
    %v2503 = vpack.c.b16 %v1743, %v1735
    %v2504 = vpack.c.b16 %v1744, %v1736
    %v2505 = vpack.c.b16 %v1745, %v1737
    %v2506 = vpack.c.b16 %v1746, %v1738
    %v2507 = vpack.c.b16 %v1747, %v1739
    %v2508 = vpack.c.b16 %v1756, %v1748
    %v2509 = vpack.c.b16 %v1757, %v1749
    %v2510 = vpack.c.b16 %v1758, %v1750
    %v2511 = vpack.c.b16 %v1759, %v1751
    %v2512 = vpack.c.b16 %v1760, %v1752
    %v2513 = vpack.c.b16 %v1761, %v1753
    %v2514 = vpack.c.b16 %v1762, %v1754
    %v2515 = vpack.c.b16 %v1763, %v1755
    %v2516 = vpack.c.b16 %v1772, %v1764
    %v2517 = vpack.c.b16 %v1773, %v1765
    %v2518 = vpack.c.b16 %v1774, %v1766
    %v2519 = vpack.c.b16 %v1775, %v1767
    %v2520 = vpack.c.b16 %v1776, %v1768
    %v2521 = vpack.c.b16 %v1777, %v1769
    %v2522 = vpack.c.b16 %v1778, %v1770
    %v2523 = vpack.c.b16 %v1779, %v1771
    %v2524 = vpack.c.b16 %v1788, %v1780
    %v2525 = vpack.c.b16 %v1789, %v1781
    %v2526 = vpack.c.b16 %v1790, %v1782
    %v2527 = vpack.c.b16 %v1791, %v1783
    %v2528 = vpack.c.b16 %v1792, %v1784
    %v2529 = vpack.c.b16 %v1793, %v1785
    %v2530 = vpack.c.b16 %v1794, %v1786
    %v2531 = vpack.c.b16 %v1795, %v1787
    %v2532 = vpack.c.b16 %v1804, %v1796
    %v2533 = vpack.c.b16 %v1805, %v1797
    %v2534 = vpack.c.b16 %v1806, %v1798
    %v2535 = vpack.c.b16 %v1807, %v1799
    %v2536 = vpack.c.b16 %v1808, %v1800
    %v2537 = vpack.c.b16 %v1809, %v1801
    %v2538 = vpack.c.b16 %v1810, %v1802
    %v2539 = vpack.c.b16 %v1811, %v1803
    %v2540 = vpack.c.b16 %v1820, %v1812
    %v2541 = vpack.c.b16 %v1821, %v1813
    %v2542 = vpack.c.b16 %v1822, %v1814
    %v2543 = vpack.c.b16 %v1823, %v1815
    %v2544 = vpack.c.b16 %v1824, %v1816
    %v2545 = vpack.c.b16 %v1825, %v1817
    %v2546 = vpack.c.b16 %v1826, %v1818
    %v2547 = vpack.c.b16 %v1827, %v1819
    %v2548 = vpack.c.b16 %v1836, %v1828
    %v2549 = vpack.c.b16 %v1837, %v1829
    %v2550 = vpack.c.b16 %v1838, %v1830
    %v2551 = vpack.c.b16 %v1839, %v1831
    %v2552 = vpack.c.b16 %v1840, %v1832
    %v2553 = vpack.c.b16 %v1841, %v1833
    %v2554 = vpack.c.b16 %v1842, %v1834
    %v2555 = vpack.c.b16 %v1843, %v1835
    %v2556 = vpack.c.b16 %v1852, %v1844
    %v2557 = vpack.c.b16 %v1853, %v1845
    %v2558 = vpack.c.b16 %v1854, %v1846
    %v2559 = vpack.c.b16 %v1855, %v1847
    %v2560 = vpack.c.b16 %v1856, %v1848
    %v2561 = vpack.c.b16 %v1857, %v1849
    %v2562 = vpack.c.b16 %v1858, %v1850
    %v2563 = vpack.c.b16 %v1859, %v1851
    %v2564 = vpack.c.b16 %v1868, %v1860
    %v2565 = vpack.c.b16 %v1869, %v1861
    %v2566 = vpack.c.b16 %v1870, %v1862
    %v2567 = vpack.c.b16 %v1871, %v1863
    %v2568 = vpack.c.b16 %v1872, %v1864
    %v2569 = vpack.c.b16 %v1873, %v1865
    %v2570 = vpack.c.b16 %v1874, %v1866
    %v2571 = vpack.c.b16 %v1875, %v1867
    %v2572 = vpack.c.b16 %v1884, %v1876
    %v2573 = vpack.c.b16 %v1885, %v1877
    %v2574 = vpack.c.b16 %v1886, %v1878
    %v2575 = vpack.c.b16 %v1887, %v1879
    %v2576 = vpack.c.b16 %v1888, %v1880
    %v2577 = vpack.c.b16 %v1889, %v1881
    %v2578 = vpack.c.b16 %v1890, %v1882
    %v2579 = vpack.c.b16 %v1891, %v1883
    %v2580 = vpack.c.b16 %v1900, %v1892
    %v2581 = vpack.c.b16 %v1901, %v1893
    %v2582 = vpack.c.b16 %v1902, %v1894
    %v2583 = vpack.c.b16 %v1903, %v1895
    %v2584 = vpack.c.b16 %v1904, %v1896
    %v2585 = vpack.c.b16 %v1905, %v1897
    %v2586 = vpack.c.b16 %v1906, %v1898
    %v2587 = vpack.c.b16 %v1907, %v1899
    %v2588 = vpack.c.b16 %v1916, %v1908
    %v2589 = vpack.c.b16 %v1917, %v1909
    %v2590 = vpack.c.b16 %v1918, %v1910
    %v2591 = vpack.c.b16 %v1919, %v1911
    %v2592 = vpack.c.b16 %v1920, %v1912
    %v2593 = vpack.c.b16 %v1921, %v1913
    %v2594 = vpack.c.b16 %v1922, %v1914
    %v2595 = vpack.c.b16 %v1923, %v1915
    %v2596 = vpack.c.b16 %v1932, %v1924
    %v2597 = vpack.c.b16 %v1933, %v1925
    %v2598 = vpack.c.b16 %v1934, %v1926
    %v2599 = vpack.c.b16 %v1935, %v1927
    %v2600 = vpack.c.b16 %v1936, %v1928
    %v2601 = vpack.c.b16 %v1937, %v1929
    %v2602 = vpack.c.b16 %v1938, %v1930
    %v2603 = vpack.c.b16 %v1939, %v1931
    %v2604 = vpack.c.b16 %v1948, %v1940
    %v2605 = vpack.c.b16 %v1949, %v1941
    %v2606 = vpack.c.b16 %v1950, %v1942
    %v2607 = vpack.c.b16 %v1951, %v1943
    %v2608 = vpack.c.b16 %v1952, %v1944
    %v2609 = vpack.c.b16 %v1953, %v1945
    %v2610 = vpack.c.b16 %v1954, %v1946
    %v2611 = vpack.c.b16 %v1955, %v1947
    %v2612 = vpack.c.b16 %v1964, %v1956
    %v2613 = vpack.c.b16 %v1965, %v1957
    %v2614 = vpack.c.b16 %v1966, %v1958
    %v2615 = vpack.c.b16 %v1967, %v1959
    %v2616 = vpack.c.b16 %v1968, %v1960
    %v2617 = vpack.c.b16 %v1969, %v1961
    %v2618 = vpack.c.b16 %v1970, %v1962
    %v2619 = vpack.c.b16 %v1971, %v1963
    %v2620 = vpack.c.b16 %v1980, %v1972
    %v2621 = vpack.c.b16 %v1981, %v1973
    %v2622 = vpack.c.b16 %v1982, %v1974
    %v2623 = vpack.c.b16 %v1983, %v1975
    %v2624 = vpack.c.b16 %v1984, %v1976
    %v2625 = vpack.c.b16 %v1985, %v1977
    %v2626 = vpack.c.b16 %v1986, %v1978
    %v2627 = vpack.c.b16 %v1987, %v1979
    %v2628 = vpack.c.b16 %v1996, %v1988
    %v2629 = vpack.c.b16 %v1997, %v1989
    %v2630 = vpack.c.b16 %v1998, %v1990
    %v2631 = vpack.c.b16 %v1999, %v1991
    %v2632 = vpack.c.b16 %v2000, %v1992
    %v2633 = vpack.c.b16 %v2001, %v1993
    %v2634 = vpack.c.b16 %v2002, %v1994
    %v2635 = vpack.c.b16 %v2003, %v1995
    %v2636 = vpack.c.b16 %v2012, %v2004
    %v2637 = vpack.c.b16 %v2013, %v2005
    %v2638 = vpack.c.b16 %v2014, %v2006
    %v2639 = vpack.c.b16 %v2015, %v2007
    %v2640 = vpack.c.b16 %v2016, %v2008
    %v2641 = vpack.c.b16 %v2017, %v2009
    %v2642 = vpack.c.b16 %v2018, %v2010
    %v2643 = vpack.c.b16 %v2019, %v2011
    %v2644 = vpack.c.b16 %v2028, %v2020
    %v2645 = vpack.c.b16 %v2029, %v2021
    %v2646 = vpack.c.b16 %v2030, %v2022
    %v2647 = vpack.c.b16 %v2031, %v2023
    %v2648 = vpack.c.b16 %v2032, %v2024
    %v2649 = vpack.c.b16 %v2033, %v2025
    %v2650 = vpack.c.b16 %v2034, %v2026
    %v2651 = vpack.c.b16 %v2035, %v2027
    %v2652 = vpack.c.b16 %v2044, %v2036
    %v2653 = vpack.c.b16 %v2045, %v2037
    %v2654 = vpack.c.b16 %v2046, %v2038
    %v2655 = vpack.c.b16 %v2047, %v2039
    %v2656 = vpack.c.b16 %v2048, %v2040
    %v2657 = vpack.c.b16 %v2049, %v2041
    %v2658 = vpack.c.b16 %v2050, %v2042
    %v2659 = vpack.c.b16 %v2051, %v2043
    %v2660 = vpack.c.b16 %v2060, %v2052
    %v2661 = vpack.c.b16 %v2061, %v2053
    %v2662 = vpack.c.b16 %v2062, %v2054
    %v2663 = vpack.c.b16 %v2063, %v2055
    %v2664 = vpack.c.b16 %v2064, %v2056
    %v2665 = vpack.c.b16 %v2065, %v2057
    %v2666 = vpack.c.b16 %v2066, %v2058
    %v2667 = vpack.c.b16 %v2067, %v2059
    %v2668 = vpack.c.b16 %v2076, %v2068
    %v2669 = vpack.c.b16 %v2077, %v2069
    %v2670 = vpack.c.b16 %v2078, %v2070
    %v2671 = vpack.c.b16 %v2079, %v2071
    %v2672 = vpack.c.b16 %v2080, %v2072
    %v2673 = vpack.c.b16 %v2081, %v2073
    %v2674 = vpack.c.b16 %v2082, %v2074
    %v2675 = vpack.c.b16 %v2083, %v2075
    %v2676 = vpack.c.b16 %v2092, %v2084
    %v2677 = vpack.c.b16 %v2093, %v2085
    %v2678 = vpack.c.b16 %v2094, %v2086
    %v2679 = vpack.c.b16 %v2095, %v2087
    %v2680 = vpack.c.b16 %v2096, %v2088
    %v2681 = vpack.c.b16 %v2097, %v2089
    %v2682 = vpack.c.b16 %v2098, %v2090
    %v2683 = vpack.c.b16 %v2099, %v2091
    %v2684 = vpack.c.b16 %v2108, %v2100
    %v2685 = vpack.c.b16 %v2109, %v2101
    %v2686 = vpack.c.b16 %v2110, %v2102
    %v2687 = vpack.c.b16 %v2111, %v2103
    %v2688 = vpack.c.b16 %v2112, %v2104
    %v2689 = vpack.c.b16 %v2113, %v2105
    %v2690 = vpack.c.b16 %v2114, %v2106
    %v2691 = vpack.c.b16 %v2115, %v2107
    %v2692 = vpack.c.b16 %v2124, %v2116
    %v2693 = vpack.c.b16 %v2125, %v2117
    %v2694 = vpack.c.b16 %v2126, %v2118
    %v2695 = vpack.c.b16 %v2127, %v2119
    %v2696 = vpack.c.b16 %v2128, %v2120
    %v2697 = vpack.c.b16 %v2129, %v2121
    %v2698 = vpack.c.b16 %v2130, %v2122
    %v2699 = vpack.c.b16 %v2131, %v2123
    %v2700 = vpack.c.b16 %v2140, %v2132
    %v2701 = vpack.c.b16 %v2141, %v2133
    %v2702 = vpack.c.b16 %v2142, %v2134
    %v2703 = vpack.c.b16 %v2143, %v2135
    %v2704 = vpack.c.b16 %v2144, %v2136
    %v2705 = vpack.c.b16 %v2145, %v2137
    %v2706 = vpack.c.b16 %v2146, %v2138
    %v2707 = vpack.c.b16 %v2147, %v2139
    %v2708 = vpack.c.b16 %v2156, %v2148
    %v2709 = vpack.c.b16 %v2157, %v2149
    %v2710 = vpack.c.b16 %v2158, %v2150
    %v2711 = vpack.c.b16 %v2159, %v2151
    %v2712 = vpack.c.b16 %v2160, %v2152
    %v2713 = vpack.c.b16 %v2161, %v2153
    %v2714 = vpack.c.b16 %v2162, %v2154
    %v2715 = vpack.c.b16 %v2163, %v2155
    %v2716 = vpack.c.b16 %v2172, %v2164
    %v2717 = vpack.c.b16 %v2173, %v2165
    %v2718 = vpack.c.b16 %v2174, %v2166
    %v2719 = vpack.c.b16 %v2175, %v2167
    %v2720 = vpack.c.b16 %v2176, %v2168
    %v2721 = vpack.c.b16 %v2177, %v2169
    %v2722 = vpack.c.b16 %v2178, %v2170
    %v2723 = vpack.c.b16 %v2179, %v2171
    %v2724 = vpack.c.b16 %v2188, %v2180
    %v2725 = vpack.c.b16 %v2189, %v2181
    %v2726 = vpack.c.b16 %v2190, %v2182
    %v2727 = vpack.c.b16 %v2191, %v2183
    %v2728 = vpack.c.b16 %v2192, %v2184
    %v2729 = vpack.c.b16 %v2193, %v2185
    %v2730 = vpack.c.b16 %v2194, %v2186
    %v2731 = vpack.c.b16 %v2195, %v2187
    %v2732 = vpack.c.b16 %v2204, %v2196
    %v2733 = vpack.c.b16 %v2205, %v2197
    %v2734 = vpack.c.b16 %v2206, %v2198
    %v2735 = vpack.c.b16 %v2207, %v2199
    %v2736 = vpack.c.b16 %v2208, %v2200
    %v2737 = vpack.c.b16 %v2209, %v2201
    %v2738 = vpack.c.b16 %v2210, %v2202
    %v2739 = vpack.c.b16 %v2211, %v2203
    %v2740 = vpack.c.b16 %v2220, %v2212
    %v2741 = vpack.c.b16 %v2221, %v2213
    %v2742 = vpack.c.b16 %v2222, %v2214
    %v2743 = vpack.c.b16 %v2223, %v2215
    %v2744 = vpack.c.b16 %v2224, %v2216
    %v2745 = vpack.c.b16 %v2225, %v2217
    %v2746 = vpack.c.b16 %v2226, %v2218
    %v2747 = vpack.c.b16 %v2227, %v2219
    %v2748 = vpack.c.b16 %v2236, %v2228
    %v2749 = vpack.c.b16 %v2237, %v2229
    %v2750 = vpack.c.b16 %v2238, %v2230
    %v2751 = vpack.c.b16 %v2239, %v2231
    %v2752 = vpack.c.b16 %v2240, %v2232
    %v2753 = vpack.c.b16 %v2241, %v2233
    %v2754 = vpack.c.b16 %v2242, %v2234
    %v2755 = vpack.c.b16 %v2243, %v2235
    %3268 = vmatpush.bf16.msra.mxu0 %v2300
    %3269 = vmatpush.bf16.msra.mxu0 %v2292
    %3270 = vmatpush.bf16.msra.mxu0 %v2284
    %3271 = vmatpush.bf16.msra.mxu0 %v2276
    %3272 = vmatpush.bf16.msra.mxu0 %v2268
    %3273 = vmatpush.bf16.msra.mxu0 %v2260
    %3274 = vmatpush.bf16.msra.mxu0 %v2252
    %3275 = vmatpush.bf16.msra.mxu0 %v2244
    %3276 = vmatmul.bf16.gmra.mxu0 %v692
    %v3277 = vpop.f32.mrf.mxu0
    %v3278 = vadd.f32 %v652, %v3277
    %v3279 = vpop.f32.mrf.mxu0
    %v3280 = vadd.f32 %v652, %v3279
    %3281 = vdwg.mxu0
    %3282 = vmatpush.bf16.msra.mxu0 %v2364
    %3283 = vmatpush.bf16.msra.mxu0 %v2356
    %3284 = vmatpush.bf16.msra.mxu0 %v2348
    %3285 = vmatpush.bf16.msra.mxu0 %v2340
    %3286 = vmatpush.bf16.msra.mxu0 %v2332
    %3287 = vmatpush.bf16.msra.mxu0 %v2324
    %3288 = vmatpush.bf16.msra.mxu0 %v2316
    %3289 = vmatpush.bf16.msra.mxu0 %v2308
    %3290 = vmatmul.bf16.gmra.mxu0 %v693
    %v3291 = vpop.f32.mrf.mxu0
    %v3292 = vadd.f32 %v3278, %v3291
    %v3293 = vpop.f32.mrf.mxu0
    %v3294 = vadd.f32 %v3280, %v3293
    %3295 = vdwg.mxu0
    %3296 = vmatpush.bf16.msra.mxu0 %v2428
    %3297 = vmatpush.bf16.msra.mxu0 %v2420
    %3298 = vmatpush.bf16.msra.mxu0 %v2412
    %3299 = vmatpush.bf16.msra.mxu0 %v2404
    %3300 = vmatpush.bf16.msra.mxu0 %v2396
    %3301 = vmatpush.bf16.msra.mxu0 %v2388
    %3302 = vmatpush.bf16.msra.mxu0 %v2380
    %3303 = vmatpush.bf16.msra.mxu0 %v2372
    %3304 = vmatmul.bf16.gmra.mxu0 %v694
    %v3305 = vpop.f32.mrf.mxu0
    %v3306 = vadd.f32 %v3292, %v3305
    %v3307 = vpop.f32.mrf.mxu0
    %v3308 = vadd.f32 %v3294, %v3307
    %3309 = vdwg.mxu0
    %3310 = vmatpush.bf16.msra.mxu0 %v2492
    %3311 = vmatpush.bf16.msra.mxu0 %v2484
    %3312 = vmatpush.bf16.msra.mxu0 %v2476
    %3313 = vmatpush.bf16.msra.mxu0 %v2468
    %3314 = vmatpush.bf16.msra.mxu0 %v2460
    %3315 = vmatpush.bf16.msra.mxu0 %v2452
    %3316 = vmatpush.bf16.msra.mxu0 %v2444
    %3317 = vmatpush.bf16.msra.mxu0 %v2436
    %3318 = vmatmul.bf16.gmra.mxu0 %v695
    %v3319 = vpop.f32.mrf.mxu0
    %v3320 = vadd.f32 %v3306, %v3319
    %v3321 = vpop.f32.mrf.mxu0
    %v3322 = vadd.f32 %v3308, %v3321
    %3323 = vdwg.mxu0
    %3324 = vmatpush.bf16.msra.mxu0 %v2556
    %3325 = vmatpush.bf16.msra.mxu0 %v2548
    %3326 = vmatpush.bf16.msra.mxu0 %v2540
    %3327 = vmatpush.bf16.msra.mxu0 %v2532
    %3328 = vmatpush.bf16.msra.mxu0 %v2524
    %3329 = vmatpush.bf16.msra.mxu0 %v2516
    %3330 = vmatpush.bf16.msra.mxu0 %v2508
    %3331 = vmatpush.bf16.msra.mxu0 %v2500
    %3332 = vmatmul.bf16.gmra.mxu0 %v696
    %v3333 = vpop.f32.mrf.mxu0
    %v3334 = vadd.f32 %v3320, %v3333
    %v3335 = vpop.f32.mrf.mxu0
    %v3336 = vadd.f32 %v3322, %v3335
    %3337 = vdwg.mxu0
    %3338 = vmatpush.bf16.msra.mxu0 %v2620
    %3339 = vmatpush.bf16.msra.mxu0 %v2612
    %3340 = vmatpush.bf16.msra.mxu0 %v2604
    %3341 = vmatpush.bf16.msra.mxu0 %v2596
    %3342 = vmatpush.bf16.msra.mxu0 %v2588
    %3343 = vmatpush.bf16.msra.mxu0 %v2580
    %3344 = vmatpush.bf16.msra.mxu0 %v2572
    %3345 = vmatpush.bf16.msra.mxu0 %v2564
    %3346 = vmatmul.bf16.gmra.mxu0 %v697
    %v3347 = vpop.f32.mrf.mxu0
    %v3348 = vadd.f32 %v3334, %v3347
    %v3349 = vpop.f32.mrf.mxu0
    %v3350 = vadd.f32 %v3336, %v3349
    %3351 = vdwg.mxu0
    %3352 = vmatpush.bf16.msra.mxu0 %v2684
    %3353 = vmatpush.bf16.msra.mxu0 %v2676
    %3354 = vmatpush.bf16.msra.mxu0 %v2668
    %3355 = vmatpush.bf16.msra.mxu0 %v2660
    %3356 = vmatpush.bf16.msra.mxu0 %v2652
    %3357 = vmatpush.bf16.msra.mxu0 %v2644
    %3358 = vmatpush.bf16.msra.mxu0 %v2636
    %3359 = vmatpush.bf16.msra.mxu0 %v2628
    %3360 = vmatmul.bf16.gmra.mxu0 %v698
    %v3361 = vpop.f32.mrf.mxu0
    %v3362 = vadd.f32 %v3348, %v3361
    %v3363 = vpop.f32.mrf.mxu0
    %v3364 = vadd.f32 %v3350, %v3363
    %3365 = vdwg.mxu0
    %3366 = vmatpush.bf16.msra.mxu0 %v2748
    %3367 = vmatpush.bf16.msra.mxu0 %v2740
    %3368 = vmatpush.bf16.msra.mxu0 %v2732
    %3369 = vmatpush.bf16.msra.mxu0 %v2724
    %3370 = vmatpush.bf16.msra.mxu0 %v2716
    %3371 = vmatpush.bf16.msra.mxu0 %v2708
    %3372 = vmatpush.bf16.msra.mxu0 %v2700
    %3373 = vmatpush.bf16.msra.mxu0 %v2692
    %3374 = vmatmul.bf16.gmra.mxu0 %v699
    %v3375 = vpop.f32.mrf.mxu0
    %v3376 = vadd.f32 %v3362, %v3375
    %v3377 = vpop.f32.mrf.mxu0
    %v3378 = vadd.f32 %v3364, %v3377
    %3379 = vdwg.mxu0
    %3380 = vmatpush.bf16.msra.mxu0 %v2301
    %3381 = vmatpush.bf16.msra.mxu0 %v2293
    %3382 = vmatpush.bf16.msra.mxu0 %v2285
    %3383 = vmatpush.bf16.msra.mxu0 %v2277
    %3384 = vmatpush.bf16.msra.mxu0 %v2269
    %3385 = vmatpush.bf16.msra.mxu0 %v2261
    %3386 = vmatpush.bf16.msra.mxu0 %v2253
    %3387 = vmatpush.bf16.msra.mxu0 %v2245
    %3388 = vmatmul.bf16.gmra.mxu0 %v692
    %v3389 = vpop.f32.mrf.mxu0
    %v3390 = vadd.f32 %v653, %v3389
    %v3391 = vpop.f32.mrf.mxu0
    %v3392 = vadd.f32 %v653, %v3391
    %3393 = vdwg.mxu0
    %3394 = vmatpush.bf16.msra.mxu0 %v2365
    %3395 = vmatpush.bf16.msra.mxu0 %v2357
    %3396 = vmatpush.bf16.msra.mxu0 %v2349
    %3397 = vmatpush.bf16.msra.mxu0 %v2341
    %3398 = vmatpush.bf16.msra.mxu0 %v2333
    %3399 = vmatpush.bf16.msra.mxu0 %v2325
    %3400 = vmatpush.bf16.msra.mxu0 %v2317
    %3401 = vmatpush.bf16.msra.mxu0 %v2309
    %3402 = vmatmul.bf16.gmra.mxu0 %v693
    %v3403 = vpop.f32.mrf.mxu0
    %v3404 = vadd.f32 %v3390, %v3403
    %v3405 = vpop.f32.mrf.mxu0
    %v3406 = vadd.f32 %v3392, %v3405
    %3407 = vdwg.mxu0
    %3408 = vmatpush.bf16.msra.mxu0 %v2429
    %3409 = vmatpush.bf16.msra.mxu0 %v2421
    %3410 = vmatpush.bf16.msra.mxu0 %v2413
    %3411 = vmatpush.bf16.msra.mxu0 %v2405
    %3412 = vmatpush.bf16.msra.mxu0 %v2397
    %3413 = vmatpush.bf16.msra.mxu0 %v2389
    %3414 = vmatpush.bf16.msra.mxu0 %v2381
    %3415 = vmatpush.bf16.msra.mxu0 %v2373
    %3416 = vmatmul.bf16.gmra.mxu0 %v694
    %v3417 = vpop.f32.mrf.mxu0
    %v3418 = vadd.f32 %v3404, %v3417
    %v3419 = vpop.f32.mrf.mxu0
    %v3420 = vadd.f32 %v3406, %v3419
    %3421 = vdwg.mxu0
    %3422 = vmatpush.bf16.msra.mxu0 %v2493
    %3423 = vmatpush.bf16.msra.mxu0 %v2485
    %3424 = vmatpush.bf16.msra.mxu0 %v2477
    %3425 = vmatpush.bf16.msra.mxu0 %v2469
    %3426 = vmatpush.bf16.msra.mxu0 %v2461
    %3427 = vmatpush.bf16.msra.mxu0 %v2453
    %3428 = vmatpush.bf16.msra.mxu0 %v2445
    %3429 = vmatpush.bf16.msra.mxu0 %v2437
    %3430 = vmatmul.bf16.gmra.mxu0 %v695
    %v3431 = vpop.f32.mrf.mxu0
    %v3432 = vadd.f32 %v3418, %v3431
    %v3433 = vpop.f32.mrf.mxu0
    %v3434 = vadd.f32 %v3420, %v3433
    %3435 = vdwg.mxu0
    %3436 = vmatpush.bf16.msra.mxu0 %v2557
    %3437 = vmatpush.bf16.msra.mxu0 %v2549
    %3438 = vmatpush.bf16.msra.mxu0 %v2541
    %3439 = vmatpush.bf16.msra.mxu0 %v2533
    %3440 = vmatpush.bf16.msra.mxu0 %v2525
    %3441 = vmatpush.bf16.msra.mxu0 %v2517
    %3442 = vmatpush.bf16.msra.mxu0 %v2509
    %3443 = vmatpush.bf16.msra.mxu0 %v2501
    %3444 = vmatmul.bf16.gmra.mxu0 %v696
    %v3445 = vpop.f32.mrf.mxu0
    %v3446 = vadd.f32 %v3432, %v3445
    %v3447 = vpop.f32.mrf.mxu0
    %v3448 = vadd.f32 %v3434, %v3447
    %3449 = vdwg.mxu0
    %3450 = vmatpush.bf16.msra.mxu0 %v2621
    %3451 = vmatpush.bf16.msra.mxu0 %v2613
    %3452 = vmatpush.bf16.msra.mxu0 %v2605
    %3453 = vmatpush.bf16.msra.mxu0 %v2597
    %3454 = vmatpush.bf16.msra.mxu0 %v2589
    %3455 = vmatpush.bf16.msra.mxu0 %v2581
    %3456 = vmatpush.bf16.msra.mxu0 %v2573
    %3457 = vmatpush.bf16.msra.mxu0 %v2565
    %3458 = vmatmul.bf16.gmra.mxu0 %v697
    %v3459 = vpop.f32.mrf.mxu0
    %v3460 = vadd.f32 %v3446, %v3459
    %v3461 = vpop.f32.mrf.mxu0
    %v3462 = vadd.f32 %v3448, %v3461
    %3463 = vdwg.mxu0
    %3464 = vmatpush.bf16.msra.mxu0 %v2685
    %3465 = vmatpush.bf16.msra.mxu0 %v2677
    %3466 = vmatpush.bf16.msra.mxu0 %v2669
    %3467 = vmatpush.bf16.msra.mxu0 %v2661
    %3468 = vmatpush.bf16.msra.mxu0 %v2653
    %3469 = vmatpush.bf16.msra.mxu0 %v2645
    %3470 = vmatpush.bf16.msra.mxu0 %v2637
    %3471 = vmatpush.bf16.msra.mxu0 %v2629
    %3472 = vmatmul.bf16.gmra.mxu0 %v698
    %v3473 = vpop.f32.mrf.mxu0
    %v3474 = vadd.f32 %v3460, %v3473
    %v3475 = vpop.f32.mrf.mxu0
    %v3476 = vadd.f32 %v3462, %v3475
    %3477 = vdwg.mxu0
    %3478 = vmatpush.bf16.msra.mxu0 %v2749
    %3479 = vmatpush.bf16.msra.mxu0 %v2741
    %3480 = vmatpush.bf16.msra.mxu0 %v2733
    %3481 = vmatpush.bf16.msra.mxu0 %v2725
    %3482 = vmatpush.bf16.msra.mxu0 %v2717
    %3483 = vmatpush.bf16.msra.mxu0 %v2709
    %3484 = vmatpush.bf16.msra.mxu0 %v2701
    %3485 = vmatpush.bf16.msra.mxu0 %v2693
    %3486 = vmatmul.bf16.gmra.mxu0 %v699
    %v3487 = vpop.f32.mrf.mxu0
    %v3488 = vadd.f32 %v3474, %v3487
    %v3489 = vpop.f32.mrf.mxu0
    %v3490 = vadd.f32 %v3476, %v3489
    %3491 = vdwg.mxu0
    %3492 = vmatpush.bf16.msra.mxu0 %v2302
    %3493 = vmatpush.bf16.msra.mxu0 %v2294
    %3494 = vmatpush.bf16.msra.mxu0 %v2286
    %3495 = vmatpush.bf16.msra.mxu0 %v2278
    %3496 = vmatpush.bf16.msra.mxu0 %v2270
    %3497 = vmatpush.bf16.msra.mxu0 %v2262
    %3498 = vmatpush.bf16.msra.mxu0 %v2254
    %3499 = vmatpush.bf16.msra.mxu0 %v2246
    %3500 = vmatmul.bf16.gmra.mxu0 %v692
    %v3501 = vpop.f32.mrf.mxu0
    %v3502 = vadd.f32 %v654, %v3501
    %v3503 = vpop.f32.mrf.mxu0
    %v3504 = vadd.f32 %v654, %v3503
    %3505 = vdwg.mxu0
    %3506 = vmatpush.bf16.msra.mxu0 %v2366
    %3507 = vmatpush.bf16.msra.mxu0 %v2358
    %3508 = vmatpush.bf16.msra.mxu0 %v2350
    %3509 = vmatpush.bf16.msra.mxu0 %v2342
    %3510 = vmatpush.bf16.msra.mxu0 %v2334
    %3511 = vmatpush.bf16.msra.mxu0 %v2326
    %3512 = vmatpush.bf16.msra.mxu0 %v2318
    %3513 = vmatpush.bf16.msra.mxu0 %v2310
    %3514 = vmatmul.bf16.gmra.mxu0 %v693
    %v3515 = vpop.f32.mrf.mxu0
    %v3516 = vadd.f32 %v3502, %v3515
    %v3517 = vpop.f32.mrf.mxu0
    %v3518 = vadd.f32 %v3504, %v3517
    %3519 = vdwg.mxu0
    %3520 = vmatpush.bf16.msra.mxu0 %v2430
    %3521 = vmatpush.bf16.msra.mxu0 %v2422
    %3522 = vmatpush.bf16.msra.mxu0 %v2414
    %3523 = vmatpush.bf16.msra.mxu0 %v2406
    %3524 = vmatpush.bf16.msra.mxu0 %v2398
    %3525 = vmatpush.bf16.msra.mxu0 %v2390
    %3526 = vmatpush.bf16.msra.mxu0 %v2382
    %3527 = vmatpush.bf16.msra.mxu0 %v2374
    %3528 = vmatmul.bf16.gmra.mxu0 %v694
    %v3529 = vpop.f32.mrf.mxu0
    %v3530 = vadd.f32 %v3516, %v3529
    %v3531 = vpop.f32.mrf.mxu0
    %v3532 = vadd.f32 %v3518, %v3531
    %3533 = vdwg.mxu0
    %3534 = vmatpush.bf16.msra.mxu0 %v2494
    %3535 = vmatpush.bf16.msra.mxu0 %v2486
    %3536 = vmatpush.bf16.msra.mxu0 %v2478
    %3537 = vmatpush.bf16.msra.mxu0 %v2470
    %3538 = vmatpush.bf16.msra.mxu0 %v2462
    %3539 = vmatpush.bf16.msra.mxu0 %v2454
    %3540 = vmatpush.bf16.msra.mxu0 %v2446
    %3541 = vmatpush.bf16.msra.mxu0 %v2438
    %3542 = vmatmul.bf16.gmra.mxu0 %v695
    %v3543 = vpop.f32.mrf.mxu0
    %v3544 = vadd.f32 %v3530, %v3543
    %v3545 = vpop.f32.mrf.mxu0
    %v3546 = vadd.f32 %v3532, %v3545
    %3547 = vdwg.mxu0
    %3548 = vmatpush.bf16.msra.mxu0 %v2558
    %3549 = vmatpush.bf16.msra.mxu0 %v2550
    %3550 = vmatpush.bf16.msra.mxu0 %v2542
    %3551 = vmatpush.bf16.msra.mxu0 %v2534
    %3552 = vmatpush.bf16.msra.mxu0 %v2526
    %3553 = vmatpush.bf16.msra.mxu0 %v2518
    %3554 = vmatpush.bf16.msra.mxu0 %v2510
    %3555 = vmatpush.bf16.msra.mxu0 %v2502
    %3556 = vmatmul.bf16.gmra.mxu0 %v696
    %v3557 = vpop.f32.mrf.mxu0
    %v3558 = vadd.f32 %v3544, %v3557
    %v3559 = vpop.f32.mrf.mxu0
    %v3560 = vadd.f32 %v3546, %v3559
    %3561 = vdwg.mxu0
    %3562 = vmatpush.bf16.msra.mxu0 %v2622
    %3563 = vmatpush.bf16.msra.mxu0 %v2614
    %3564 = vmatpush.bf16.msra.mxu0 %v2606
    %3565 = vmatpush.bf16.msra.mxu0 %v2598
    %3566 = vmatpush.bf16.msra.mxu0 %v2590
    %3567 = vmatpush.bf16.msra.mxu0 %v2582
    %3568 = vmatpush.bf16.msra.mxu0 %v2574
    %3569 = vmatpush.bf16.msra.mxu0 %v2566
    %3570 = vmatmul.bf16.gmra.mxu0 %v697
    %v3571 = vpop.f32.mrf.mxu0
    %v3572 = vadd.f32 %v3558, %v3571
    %v3573 = vpop.f32.mrf.mxu0
    %v3574 = vadd.f32 %v3560, %v3573
    %3575 = vdwg.mxu0
    %3576 = vmatpush.bf16.msra.mxu0 %v2686
    %3577 = vmatpush.bf16.msra.mxu0 %v2678
    %3578 = vmatpush.bf16.msra.mxu0 %v2670
    %3579 = vmatpush.bf16.msra.mxu0 %v2662
    %3580 = vmatpush.bf16.msra.mxu0 %v2654
    %3581 = vmatpush.bf16.msra.mxu0 %v2646
    %3582 = vmatpush.bf16.msra.mxu0 %v2638
    %3583 = vmatpush.bf16.msra.mxu0 %v2630
    %3584 = vmatmul.bf16.gmra.mxu0 %v698
    %v3585 = vpop.f32.mrf.mxu0
    %v3586 = vadd.f32 %v3572, %v3585
    %v3587 = vpop.f32.mrf.mxu0
    %v3588 = vadd.f32 %v3574, %v3587
    %3589 = vdwg.mxu0
    %3590 = vmatpush.bf16.msra.mxu0 %v2750
    %3591 = vmatpush.bf16.msra.mxu0 %v2742
    %3592 = vmatpush.bf16.msra.mxu0 %v2734
    %3593 = vmatpush.bf16.msra.mxu0 %v2726
    %3594 = vmatpush.bf16.msra.mxu0 %v2718
    %3595 = vmatpush.bf16.msra.mxu0 %v2710
    %3596 = vmatpush.bf16.msra.mxu0 %v2702
    %3597 = vmatpush.bf16.msra.mxu0 %v2694
    %3598 = vmatmul.bf16.gmra.mxu0 %v699
    %v3599 = vpop.f32.mrf.mxu0
    %v3600 = vadd.f32 %v3586, %v3599
    %v3601 = vpop.f32.mrf.mxu0
    %v3602 = vadd.f32 %v3588, %v3601
    %3603 = vdwg.mxu0
    %3604 = vmatpush.bf16.msra.mxu0 %v2303
    %3605 = vmatpush.bf16.msra.mxu0 %v2295
    %3606 = vmatpush.bf16.msra.mxu0 %v2287
    %3607 = vmatpush.bf16.msra.mxu0 %v2279
    %3608 = vmatpush.bf16.msra.mxu0 %v2271
    %3609 = vmatpush.bf16.msra.mxu0 %v2263
    %3610 = vmatpush.bf16.msra.mxu0 %v2255
    %3611 = vmatpush.bf16.msra.mxu0 %v2247
    %3612 = vmatmul.bf16.gmra.mxu0 %v692
    %v3613 = vpop.f32.mrf.mxu0
    %v3614 = vadd.f32 %v655, %v3613
    %v3615 = vpop.f32.mrf.mxu0
    %v3616 = vadd.f32 %v655, %v3615
    %3617 = vdwg.mxu0
    %3618 = vmatpush.bf16.msra.mxu0 %v2367
    %3619 = vmatpush.bf16.msra.mxu0 %v2359
    %3620 = vmatpush.bf16.msra.mxu0 %v2351
    %3621 = vmatpush.bf16.msra.mxu0 %v2343
    %3622 = vmatpush.bf16.msra.mxu0 %v2335
    %3623 = vmatpush.bf16.msra.mxu0 %v2327
    %3624 = vmatpush.bf16.msra.mxu0 %v2319
    %3625 = vmatpush.bf16.msra.mxu0 %v2311
    %3626 = vmatmul.bf16.gmra.mxu0 %v693
    %v3627 = vpop.f32.mrf.mxu0
    %v3628 = vadd.f32 %v3614, %v3627
    %v3629 = vpop.f32.mrf.mxu0
    %v3630 = vadd.f32 %v3616, %v3629
    %3631 = vdwg.mxu0
    %3632 = vmatpush.bf16.msra.mxu0 %v2431
    %3633 = vmatpush.bf16.msra.mxu0 %v2423
    %3634 = vmatpush.bf16.msra.mxu0 %v2415
    %3635 = vmatpush.bf16.msra.mxu0 %v2407
    %3636 = vmatpush.bf16.msra.mxu0 %v2399
    %3637 = vmatpush.bf16.msra.mxu0 %v2391
    %3638 = vmatpush.bf16.msra.mxu0 %v2383
    %3639 = vmatpush.bf16.msra.mxu0 %v2375
    %3640 = vmatmul.bf16.gmra.mxu0 %v694
    %v3641 = vpop.f32.mrf.mxu0
    %v3642 = vadd.f32 %v3628, %v3641
    %v3643 = vpop.f32.mrf.mxu0
    %v3644 = vadd.f32 %v3630, %v3643
    %3645 = vdwg.mxu0
    %3646 = vmatpush.bf16.msra.mxu0 %v2495
    %3647 = vmatpush.bf16.msra.mxu0 %v2487
    %3648 = vmatpush.bf16.msra.mxu0 %v2479
    %3649 = vmatpush.bf16.msra.mxu0 %v2471
    %3650 = vmatpush.bf16.msra.mxu0 %v2463
    %3651 = vmatpush.bf16.msra.mxu0 %v2455
    %3652 = vmatpush.bf16.msra.mxu0 %v2447
    %3653 = vmatpush.bf16.msra.mxu0 %v2439
    %3654 = vmatmul.bf16.gmra.mxu0 %v695
    %v3655 = vpop.f32.mrf.mxu0
    %v3656 = vadd.f32 %v3642, %v3655
    %v3657 = vpop.f32.mrf.mxu0
    %v3658 = vadd.f32 %v3644, %v3657
    %3659 = vdwg.mxu0
    %3660 = vmatpush.bf16.msra.mxu0 %v2559
    %3661 = vmatpush.bf16.msra.mxu0 %v2551
    %3662 = vmatpush.bf16.msra.mxu0 %v2543
    %3663 = vmatpush.bf16.msra.mxu0 %v2535
    %3664 = vmatpush.bf16.msra.mxu0 %v2527
    %3665 = vmatpush.bf16.msra.mxu0 %v2519
    %3666 = vmatpush.bf16.msra.mxu0 %v2511
    %3667 = vmatpush.bf16.msra.mxu0 %v2503
    %3668 = vmatmul.bf16.gmra.mxu0 %v696
    %v3669 = vpop.f32.mrf.mxu0
    %v3670 = vadd.f32 %v3656, %v3669
    %v3671 = vpop.f32.mrf.mxu0
    %v3672 = vadd.f32 %v3658, %v3671
    %3673 = vdwg.mxu0
    %3674 = vmatpush.bf16.msra.mxu0 %v2623
    %3675 = vmatpush.bf16.msra.mxu0 %v2615
    %3676 = vmatpush.bf16.msra.mxu0 %v2607
    %3677 = vmatpush.bf16.msra.mxu0 %v2599
    %3678 = vmatpush.bf16.msra.mxu0 %v2591
    %3679 = vmatpush.bf16.msra.mxu0 %v2583
    %3680 = vmatpush.bf16.msra.mxu0 %v2575
    %3681 = vmatpush.bf16.msra.mxu0 %v2567
    %3682 = vmatmul.bf16.gmra.mxu0 %v697
    %v3683 = vpop.f32.mrf.mxu0
    %v3684 = vadd.f32 %v3670, %v3683
    %v3685 = vpop.f32.mrf.mxu0
    %v3686 = vadd.f32 %v3672, %v3685
    %3687 = vdwg.mxu0
    %3688 = vmatpush.bf16.msra.mxu0 %v2687
    %3689 = vmatpush.bf16.msra.mxu0 %v2679
    %3690 = vmatpush.bf16.msra.mxu0 %v2671
    %3691 = vmatpush.bf16.msra.mxu0 %v2663
    %3692 = vmatpush.bf16.msra.mxu0 %v2655
    %3693 = vmatpush.bf16.msra.mxu0 %v2647
    %3694 = vmatpush.bf16.msra.mxu0 %v2639
    %3695 = vmatpush.bf16.msra.mxu0 %v2631
    %3696 = vmatmul.bf16.gmra.mxu0 %v698
    %v3697 = vpop.f32.mrf.mxu0
    %v3698 = vadd.f32 %v3684, %v3697
    %v3699 = vpop.f32.mrf.mxu0
    %v3700 = vadd.f32 %v3686, %v3699
    %3701 = vdwg.mxu0
    %3702 = vmatpush.bf16.msra.mxu0 %v2751
    %3703 = vmatpush.bf16.msra.mxu0 %v2743
    %3704 = vmatpush.bf16.msra.mxu0 %v2735
    %3705 = vmatpush.bf16.msra.mxu0 %v2727
    %3706 = vmatpush.bf16.msra.mxu0 %v2719
    %3707 = vmatpush.bf16.msra.mxu0 %v2711
    %3708 = vmatpush.bf16.msra.mxu0 %v2703
    %3709 = vmatpush.bf16.msra.mxu0 %v2695
    %3710 = vmatmul.bf16.gmra.mxu0 %v699
    %v3711 = vpop.f32.mrf.mxu0
    %v3712 = vadd.f32 %v3698, %v3711
    %v3713 = vpop.f32.mrf.mxu0
    %v3714 = vadd.f32 %v3700, %v3713
    %3715 = vdwg.mxu0
    %3716 = vmatpush.bf16.msra.mxu0 %v2304
    %3717 = vmatpush.bf16.msra.mxu0 %v2296
    %3718 = vmatpush.bf16.msra.mxu0 %v2288
    %3719 = vmatpush.bf16.msra.mxu0 %v2280
    %3720 = vmatpush.bf16.msra.mxu0 %v2272
    %3721 = vmatpush.bf16.msra.mxu0 %v2264
    %3722 = vmatpush.bf16.msra.mxu0 %v2256
    %3723 = vmatpush.bf16.msra.mxu0 %v2248
    %3724 = vmatmul.bf16.gmra.mxu0 %v692
    %v3725 = vpop.f32.mrf.mxu0
    %v3726 = vadd.f32 %v656, %v3725
    %v3727 = vpop.f32.mrf.mxu0
    %v3728 = vadd.f32 %v656, %v3727
    %3729 = vdwg.mxu0
    %3730 = vmatpush.bf16.msra.mxu0 %v2368
    %3731 = vmatpush.bf16.msra.mxu0 %v2360
    %3732 = vmatpush.bf16.msra.mxu0 %v2352
    %3733 = vmatpush.bf16.msra.mxu0 %v2344
    %3734 = vmatpush.bf16.msra.mxu0 %v2336
    %3735 = vmatpush.bf16.msra.mxu0 %v2328
    %3736 = vmatpush.bf16.msra.mxu0 %v2320
    %3737 = vmatpush.bf16.msra.mxu0 %v2312
    %3738 = vmatmul.bf16.gmra.mxu0 %v693
    %v3739 = vpop.f32.mrf.mxu0
    %v3740 = vadd.f32 %v3726, %v3739
    %v3741 = vpop.f32.mrf.mxu0
    %v3742 = vadd.f32 %v3728, %v3741
    %3743 = vdwg.mxu0
    %3744 = vmatpush.bf16.msra.mxu0 %v2432
    %3745 = vmatpush.bf16.msra.mxu0 %v2424
    %3746 = vmatpush.bf16.msra.mxu0 %v2416
    %3747 = vmatpush.bf16.msra.mxu0 %v2408
    %3748 = vmatpush.bf16.msra.mxu0 %v2400
    %3749 = vmatpush.bf16.msra.mxu0 %v2392
    %3750 = vmatpush.bf16.msra.mxu0 %v2384
    %3751 = vmatpush.bf16.msra.mxu0 %v2376
    %3752 = vmatmul.bf16.gmra.mxu0 %v694
    %v3753 = vpop.f32.mrf.mxu0
    %v3754 = vadd.f32 %v3740, %v3753
    %v3755 = vpop.f32.mrf.mxu0
    %v3756 = vadd.f32 %v3742, %v3755
    %3757 = vdwg.mxu0
    %3758 = vmatpush.bf16.msra.mxu0 %v2496
    %3759 = vmatpush.bf16.msra.mxu0 %v2488
    %3760 = vmatpush.bf16.msra.mxu0 %v2480
    %3761 = vmatpush.bf16.msra.mxu0 %v2472
    %3762 = vmatpush.bf16.msra.mxu0 %v2464
    %3763 = vmatpush.bf16.msra.mxu0 %v2456
    %3764 = vmatpush.bf16.msra.mxu0 %v2448
    %3765 = vmatpush.bf16.msra.mxu0 %v2440
    %3766 = vmatmul.bf16.gmra.mxu0 %v695
    %v3767 = vpop.f32.mrf.mxu0
    %v3768 = vadd.f32 %v3754, %v3767
    %v3769 = vpop.f32.mrf.mxu0
    %v3770 = vadd.f32 %v3756, %v3769
    %3771 = vdwg.mxu0
    %3772 = vmatpush.bf16.msra.mxu0 %v2560
    %3773 = vmatpush.bf16.msra.mxu0 %v2552
    %3774 = vmatpush.bf16.msra.mxu0 %v2544
    %3775 = vmatpush.bf16.msra.mxu0 %v2536
    %3776 = vmatpush.bf16.msra.mxu0 %v2528
    %3777 = vmatpush.bf16.msra.mxu0 %v2520
    %3778 = vmatpush.bf16.msra.mxu0 %v2512
    %3779 = vmatpush.bf16.msra.mxu0 %v2504
    %3780 = vmatmul.bf16.gmra.mxu0 %v696
    %v3781 = vpop.f32.mrf.mxu0
    %v3782 = vadd.f32 %v3768, %v3781
    %v3783 = vpop.f32.mrf.mxu0
    %v3784 = vadd.f32 %v3770, %v3783
    %3785 = vdwg.mxu0
    %3786 = vmatpush.bf16.msra.mxu0 %v2624
    %3787 = vmatpush.bf16.msra.mxu0 %v2616
    %3788 = vmatpush.bf16.msra.mxu0 %v2608
    %3789 = vmatpush.bf16.msra.mxu0 %v2600
    %3790 = vmatpush.bf16.msra.mxu0 %v2592
    %3791 = vmatpush.bf16.msra.mxu0 %v2584
    %3792 = vmatpush.bf16.msra.mxu0 %v2576
    %3793 = vmatpush.bf16.msra.mxu0 %v2568
    %3794 = vmatmul.bf16.gmra.mxu0 %v697
    %v3795 = vpop.f32.mrf.mxu0
    %v3796 = vadd.f32 %v3782, %v3795
    %v3797 = vpop.f32.mrf.mxu0
    %v3798 = vadd.f32 %v3784, %v3797
    %3799 = vdwg.mxu0
    %3800 = vmatpush.bf16.msra.mxu0 %v2688
    %3801 = vmatpush.bf16.msra.mxu0 %v2680
    %3802 = vmatpush.bf16.msra.mxu0 %v2672
    %3803 = vmatpush.bf16.msra.mxu0 %v2664
    %3804 = vmatpush.bf16.msra.mxu0 %v2656
    %3805 = vmatpush.bf16.msra.mxu0 %v2648
    %3806 = vmatpush.bf16.msra.mxu0 %v2640
    %3807 = vmatpush.bf16.msra.mxu0 %v2632
    %3808 = vmatmul.bf16.gmra.mxu0 %v698
    %v3809 = vpop.f32.mrf.mxu0
    %v3810 = vadd.f32 %v3796, %v3809
    %v3811 = vpop.f32.mrf.mxu0
    %v3812 = vadd.f32 %v3798, %v3811
    %3813 = vdwg.mxu0
    %3814 = vmatpush.bf16.msra.mxu0 %v2752
    %3815 = vmatpush.bf16.msra.mxu0 %v2744
    %3816 = vmatpush.bf16.msra.mxu0 %v2736
    %3817 = vmatpush.bf16.msra.mxu0 %v2728
    %3818 = vmatpush.bf16.msra.mxu0 %v2720
    %3819 = vmatpush.bf16.msra.mxu0 %v2712
    %3820 = vmatpush.bf16.msra.mxu0 %v2704
    %3821 = vmatpush.bf16.msra.mxu0 %v2696
    %3822 = vmatmul.bf16.gmra.mxu0 %v699
    %v3823 = vpop.f32.mrf.mxu0
    %v3824 = vadd.f32 %v3810, %v3823
    %v3825 = vpop.f32.mrf.mxu0
    %v3826 = vadd.f32 %v3812, %v3825
    %3827 = vdwg.mxu0
    %3828 = vmatpush.bf16.msra.mxu0 %v2305
    %3829 = vmatpush.bf16.msra.mxu0 %v2297
    %3830 = vmatpush.bf16.msra.mxu0 %v2289
    %3831 = vmatpush.bf16.msra.mxu0 %v2281
    %3832 = vmatpush.bf16.msra.mxu0 %v2273
    %3833 = vmatpush.bf16.msra.mxu0 %v2265
    %3834 = vmatpush.bf16.msra.mxu0 %v2257
    %3835 = vmatpush.bf16.msra.mxu0 %v2249
    %3836 = vmatmul.bf16.gmra.mxu0 %v692
    %v3837 = vpop.f32.mrf.mxu0
    %v3838 = vadd.f32 %v657, %v3837
    %v3839 = vpop.f32.mrf.mxu0
    %v3840 = vadd.f32 %v657, %v3839
    %3841 = vdwg.mxu0
    %3842 = vmatpush.bf16.msra.mxu0 %v2369
    %3843 = vmatpush.bf16.msra.mxu0 %v2361
    %3844 = vmatpush.bf16.msra.mxu0 %v2353
    %3845 = vmatpush.bf16.msra.mxu0 %v2345
    %3846 = vmatpush.bf16.msra.mxu0 %v2337
    %3847 = vmatpush.bf16.msra.mxu0 %v2329
    %3848 = vmatpush.bf16.msra.mxu0 %v2321
    %3849 = vmatpush.bf16.msra.mxu0 %v2313
    %3850 = vmatmul.bf16.gmra.mxu0 %v693
    %v3851 = vpop.f32.mrf.mxu0
    %v3852 = vadd.f32 %v3838, %v3851
    %v3853 = vpop.f32.mrf.mxu0
    %v3854 = vadd.f32 %v3840, %v3853
    %3855 = vdwg.mxu0
    %3856 = vmatpush.bf16.msra.mxu0 %v2433
    %3857 = vmatpush.bf16.msra.mxu0 %v2425
    %3858 = vmatpush.bf16.msra.mxu0 %v2417
    %3859 = vmatpush.bf16.msra.mxu0 %v2409
    %3860 = vmatpush.bf16.msra.mxu0 %v2401
    %3861 = vmatpush.bf16.msra.mxu0 %v2393
    %3862 = vmatpush.bf16.msra.mxu0 %v2385
    %3863 = vmatpush.bf16.msra.mxu0 %v2377
    %3864 = vmatmul.bf16.gmra.mxu0 %v694
    %v3865 = vpop.f32.mrf.mxu0
    %v3866 = vadd.f32 %v3852, %v3865
    %v3867 = vpop.f32.mrf.mxu0
    %v3868 = vadd.f32 %v3854, %v3867
    %3869 = vdwg.mxu0
    %3870 = vmatpush.bf16.msra.mxu0 %v2497
    %3871 = vmatpush.bf16.msra.mxu0 %v2489
    %3872 = vmatpush.bf16.msra.mxu0 %v2481
    %3873 = vmatpush.bf16.msra.mxu0 %v2473
    %3874 = vmatpush.bf16.msra.mxu0 %v2465
    %3875 = vmatpush.bf16.msra.mxu0 %v2457
    %3876 = vmatpush.bf16.msra.mxu0 %v2449
    %3877 = vmatpush.bf16.msra.mxu0 %v2441
    %3878 = vmatmul.bf16.gmra.mxu0 %v695
    %v3879 = vpop.f32.mrf.mxu0
    %v3880 = vadd.f32 %v3866, %v3879
    %v3881 = vpop.f32.mrf.mxu0
    %v3882 = vadd.f32 %v3868, %v3881
    %3883 = vdwg.mxu0
    %3884 = vmatpush.bf16.msra.mxu0 %v2561
    %3885 = vmatpush.bf16.msra.mxu0 %v2553
    %3886 = vmatpush.bf16.msra.mxu0 %v2545
    %3887 = vmatpush.bf16.msra.mxu0 %v2537
    %3888 = vmatpush.bf16.msra.mxu0 %v2529
    %3889 = vmatpush.bf16.msra.mxu0 %v2521
    %3890 = vmatpush.bf16.msra.mxu0 %v2513
    %3891 = vmatpush.bf16.msra.mxu0 %v2505
    %3892 = vmatmul.bf16.gmra.mxu0 %v696
    %v3893 = vpop.f32.mrf.mxu0
    %v3894 = vadd.f32 %v3880, %v3893
    %v3895 = vpop.f32.mrf.mxu0
    %v3896 = vadd.f32 %v3882, %v3895
    %3897 = vdwg.mxu0
    %3898 = vmatpush.bf16.msra.mxu0 %v2625
    %3899 = vmatpush.bf16.msra.mxu0 %v2617
    %3900 = vmatpush.bf16.msra.mxu0 %v2609
    %3901 = vmatpush.bf16.msra.mxu0 %v2601
    %3902 = vmatpush.bf16.msra.mxu0 %v2593
    %3903 = vmatpush.bf16.msra.mxu0 %v2585
    %3904 = vmatpush.bf16.msra.mxu0 %v2577
    %3905 = vmatpush.bf16.msra.mxu0 %v2569
    %3906 = vmatmul.bf16.gmra.mxu0 %v697
    %v3907 = vpop.f32.mrf.mxu0
    %v3908 = vadd.f32 %v3894, %v3907
    %v3909 = vpop.f32.mrf.mxu0
    %v3910 = vadd.f32 %v3896, %v3909
    %3911 = vdwg.mxu0
    %3912 = vmatpush.bf16.msra.mxu0 %v2689
    %3913 = vmatpush.bf16.msra.mxu0 %v2681
    %3914 = vmatpush.bf16.msra.mxu0 %v2673
    %3915 = vmatpush.bf16.msra.mxu0 %v2665
    %3916 = vmatpush.bf16.msra.mxu0 %v2657
    %3917 = vmatpush.bf16.msra.mxu0 %v2649
    %3918 = vmatpush.bf16.msra.mxu0 %v2641
    %3919 = vmatpush.bf16.msra.mxu0 %v2633
    %3920 = vmatmul.bf16.gmra.mxu0 %v698
    %v3921 = vpop.f32.mrf.mxu0
    %v3922 = vadd.f32 %v3908, %v3921
    %v3923 = vpop.f32.mrf.mxu0
    %v3924 = vadd.f32 %v3910, %v3923
    %3925 = vdwg.mxu0
    %3926 = vmatpush.bf16.msra.mxu0 %v2753
    %3927 = vmatpush.bf16.msra.mxu0 %v2745
    %3928 = vmatpush.bf16.msra.mxu0 %v2737
    %3929 = vmatpush.bf16.msra.mxu0 %v2729
    %3930 = vmatpush.bf16.msra.mxu0 %v2721
    %3931 = vmatpush.bf16.msra.mxu0 %v2713
    %3932 = vmatpush.bf16.msra.mxu0 %v2705
    %3933 = vmatpush.bf16.msra.mxu0 %v2697
    %3934 = vmatmul.bf16.gmra.mxu0 %v699
    %v3935 = vpop.f32.mrf.mxu0
    %v3936 = vadd.f32 %v3922, %v3935
    %v3937 = vpop.f32.mrf.mxu0
    %v3938 = vadd.f32 %v3924, %v3937
    %3939 = vdwg.mxu0
    %3940 = vmatpush.bf16.msra.mxu0 %v2306
    %3941 = vmatpush.bf16.msra.mxu0 %v2298
    %3942 = vmatpush.bf16.msra.mxu0 %v2290
    %3943 = vmatpush.bf16.msra.mxu0 %v2282
    %3944 = vmatpush.bf16.msra.mxu0 %v2274
    %3945 = vmatpush.bf16.msra.mxu0 %v2266
    %3946 = vmatpush.bf16.msra.mxu0 %v2258
    %3947 = vmatpush.bf16.msra.mxu0 %v2250
    %3948 = vmatmul.bf16.gmra.mxu0 %v692
    %v3949 = vpop.f32.mrf.mxu0
    %v3950 = vadd.f32 %v658, %v3949
    %v3951 = vpop.f32.mrf.mxu0
    %v3952 = vadd.f32 %v658, %v3951
    %3953 = vdwg.mxu0
    %3954 = vmatpush.bf16.msra.mxu0 %v2370
    %3955 = vmatpush.bf16.msra.mxu0 %v2362
    %3956 = vmatpush.bf16.msra.mxu0 %v2354
    %3957 = vmatpush.bf16.msra.mxu0 %v2346
    %3958 = vmatpush.bf16.msra.mxu0 %v2338
    %3959 = vmatpush.bf16.msra.mxu0 %v2330
    %3960 = vmatpush.bf16.msra.mxu0 %v2322
    %3961 = vmatpush.bf16.msra.mxu0 %v2314
    %3962 = vmatmul.bf16.gmra.mxu0 %v693
    %v3963 = vpop.f32.mrf.mxu0
    %v3964 = vadd.f32 %v3950, %v3963
    %v3965 = vpop.f32.mrf.mxu0
    %v3966 = vadd.f32 %v3952, %v3965
    %3967 = vdwg.mxu0
    %3968 = vmatpush.bf16.msra.mxu0 %v2434
    %3969 = vmatpush.bf16.msra.mxu0 %v2426
    %3970 = vmatpush.bf16.msra.mxu0 %v2418
    %3971 = vmatpush.bf16.msra.mxu0 %v2410
    %3972 = vmatpush.bf16.msra.mxu0 %v2402
    %3973 = vmatpush.bf16.msra.mxu0 %v2394
    %3974 = vmatpush.bf16.msra.mxu0 %v2386
    %3975 = vmatpush.bf16.msra.mxu0 %v2378
    %3976 = vmatmul.bf16.gmra.mxu0 %v694
    %v3977 = vpop.f32.mrf.mxu0
    %v3978 = vadd.f32 %v3964, %v3977
    %v3979 = vpop.f32.mrf.mxu0
    %v3980 = vadd.f32 %v3966, %v3979
    %3981 = vdwg.mxu0
    %3982 = vmatpush.bf16.msra.mxu0 %v2498
    %3983 = vmatpush.bf16.msra.mxu0 %v2490
    %3984 = vmatpush.bf16.msra.mxu0 %v2482
    %3985 = vmatpush.bf16.msra.mxu0 %v2474
    %3986 = vmatpush.bf16.msra.mxu0 %v2466
    %3987 = vmatpush.bf16.msra.mxu0 %v2458
    %3988 = vmatpush.bf16.msra.mxu0 %v2450
    %3989 = vmatpush.bf16.msra.mxu0 %v2442
    %3990 = vmatmul.bf16.gmra.mxu0 %v695
    %v3991 = vpop.f32.mrf.mxu0
    %v3992 = vadd.f32 %v3978, %v3991
    %v3993 = vpop.f32.mrf.mxu0
    %v3994 = vadd.f32 %v3980, %v3993
    %3995 = vdwg.mxu0
    %3996 = vmatpush.bf16.msra.mxu0 %v2562
    %3997 = vmatpush.bf16.msra.mxu0 %v2554
    %3998 = vmatpush.bf16.msra.mxu0 %v2546
    %3999 = vmatpush.bf16.msra.mxu0 %v2538
    %4000 = vmatpush.bf16.msra.mxu0 %v2530
    %4001 = vmatpush.bf16.msra.mxu0 %v2522
    %4002 = vmatpush.bf16.msra.mxu0 %v2514
    %4003 = vmatpush.bf16.msra.mxu0 %v2506
    %4004 = vmatmul.bf16.gmra.mxu0 %v696
    %v4005 = vpop.f32.mrf.mxu0
    %v4006 = vadd.f32 %v3992, %v4005
    %v4007 = vpop.f32.mrf.mxu0
    %v4008 = vadd.f32 %v3994, %v4007
    %4009 = vdwg.mxu0
    %4010 = vmatpush.bf16.msra.mxu0 %v2626
    %4011 = vmatpush.bf16.msra.mxu0 %v2618
    %4012 = vmatpush.bf16.msra.mxu0 %v2610
    %4013 = vmatpush.bf16.msra.mxu0 %v2602
    %4014 = vmatpush.bf16.msra.mxu0 %v2594
    %4015 = vmatpush.bf16.msra.mxu0 %v2586
    %4016 = vmatpush.bf16.msra.mxu0 %v2578
    %4017 = vmatpush.bf16.msra.mxu0 %v2570
    %4018 = vmatmul.bf16.gmra.mxu0 %v697
    %v4019 = vpop.f32.mrf.mxu0
    %v4020 = vadd.f32 %v4006, %v4019
    %v4021 = vpop.f32.mrf.mxu0
    %v4022 = vadd.f32 %v4008, %v4021
    %4023 = vdwg.mxu0
    %4024 = vmatpush.bf16.msra.mxu0 %v2690
    %4025 = vmatpush.bf16.msra.mxu0 %v2682
    %4026 = vmatpush.bf16.msra.mxu0 %v2674
    %4027 = vmatpush.bf16.msra.mxu0 %v2666
    %4028 = vmatpush.bf16.msra.mxu0 %v2658
    %4029 = vmatpush.bf16.msra.mxu0 %v2650
    %4030 = vmatpush.bf16.msra.mxu0 %v2642
    %4031 = vmatpush.bf16.msra.mxu0 %v2634
    %4032 = vmatmul.bf16.gmra.mxu0 %v698
    %v4033 = vpop.f32.mrf.mxu0
    %v4034 = vadd.f32 %v4020, %v4033
    %v4035 = vpop.f32.mrf.mxu0
    %v4036 = vadd.f32 %v4022, %v4035
    %4037 = vdwg.mxu0
    %4038 = vmatpush.bf16.msra.mxu0 %v2754
    %4039 = vmatpush.bf16.msra.mxu0 %v2746
    %4040 = vmatpush.bf16.msra.mxu0 %v2738
    %4041 = vmatpush.bf16.msra.mxu0 %v2730
    %4042 = vmatpush.bf16.msra.mxu0 %v2722
    %4043 = vmatpush.bf16.msra.mxu0 %v2714
    %4044 = vmatpush.bf16.msra.mxu0 %v2706
    %4045 = vmatpush.bf16.msra.mxu0 %v2698
    %4046 = vmatmul.bf16.gmra.mxu0 %v699
    %v4047 = vpop.f32.mrf.mxu0
    %v4048 = vadd.f32 %v4034, %v4047
    %v4049 = vpop.f32.mrf.mxu0
    %v4050 = vadd.f32 %v4036, %v4049
    %4051 = vdwg.mxu0
    %4052 = vmatpush.bf16.msra.mxu0 %v2307
    %4053 = vmatpush.bf16.msra.mxu0 %v2299
    %4054 = vmatpush.bf16.msra.mxu0 %v2291
    %4055 = vmatpush.bf16.msra.mxu0 %v2283
    %4056 = vmatpush.bf16.msra.mxu0 %v2275
    %4057 = vmatpush.bf16.msra.mxu0 %v2267
    %4058 = vmatpush.bf16.msra.mxu0 %v2259
    %4059 = vmatpush.bf16.msra.mxu0 %v2251
    %4060 = vmatmul.bf16.gmra.mxu0 %v692
    %v4061 = vpop.f32.mrf.mxu0
    %v4062 = vadd.f32 %v659, %v4061
    %v4063 = vpop.f32.mrf.mxu0
    %v4064 = vadd.f32 %v659, %v4063
    %4065 = vdwg.mxu0
    %4066 = vmatpush.bf16.msra.mxu0 %v2371
    %4067 = vmatpush.bf16.msra.mxu0 %v2363
    %4068 = vmatpush.bf16.msra.mxu0 %v2355
    %4069 = vmatpush.bf16.msra.mxu0 %v2347
    %4070 = vmatpush.bf16.msra.mxu0 %v2339
    %4071 = vmatpush.bf16.msra.mxu0 %v2331
    %4072 = vmatpush.bf16.msra.mxu0 %v2323
    %4073 = vmatpush.bf16.msra.mxu0 %v2315
    %4074 = vmatmul.bf16.gmra.mxu0 %v693
    %v4075 = vpop.f32.mrf.mxu0
    %v4076 = vadd.f32 %v4062, %v4075
    %v4077 = vpop.f32.mrf.mxu0
    %v4078 = vadd.f32 %v4064, %v4077
    %4079 = vdwg.mxu0
    %4080 = vmatpush.bf16.msra.mxu0 %v2435
    %4081 = vmatpush.bf16.msra.mxu0 %v2427
    %4082 = vmatpush.bf16.msra.mxu0 %v2419
    %4083 = vmatpush.bf16.msra.mxu0 %v2411
    %4084 = vmatpush.bf16.msra.mxu0 %v2403
    %4085 = vmatpush.bf16.msra.mxu0 %v2395
    %4086 = vmatpush.bf16.msra.mxu0 %v2387
    %4087 = vmatpush.bf16.msra.mxu0 %v2379
    %4088 = vmatmul.bf16.gmra.mxu0 %v694
    %v4089 = vpop.f32.mrf.mxu0
    %v4090 = vadd.f32 %v4076, %v4089
    %v4091 = vpop.f32.mrf.mxu0
    %v4092 = vadd.f32 %v4078, %v4091
    %4093 = vdwg.mxu0
    %4094 = vmatpush.bf16.msra.mxu0 %v2499
    %4095 = vmatpush.bf16.msra.mxu0 %v2491
    %4096 = vmatpush.bf16.msra.mxu0 %v2483
    %4097 = vmatpush.bf16.msra.mxu0 %v2475
    %4098 = vmatpush.bf16.msra.mxu0 %v2467
    %4099 = vmatpush.bf16.msra.mxu0 %v2459
    %4100 = vmatpush.bf16.msra.mxu0 %v2451
    %4101 = vmatpush.bf16.msra.mxu0 %v2443
    %4102 = vmatmul.bf16.gmra.mxu0 %v695
    %v4103 = vpop.f32.mrf.mxu0
    %v4104 = vadd.f32 %v4090, %v4103
    %v4105 = vpop.f32.mrf.mxu0
    %v4106 = vadd.f32 %v4092, %v4105
    %4107 = vdwg.mxu0
    %4108 = vmatpush.bf16.msra.mxu0 %v2563
    %4109 = vmatpush.bf16.msra.mxu0 %v2555
    %4110 = vmatpush.bf16.msra.mxu0 %v2547
    %4111 = vmatpush.bf16.msra.mxu0 %v2539
    %4112 = vmatpush.bf16.msra.mxu0 %v2531
    %4113 = vmatpush.bf16.msra.mxu0 %v2523
    %4114 = vmatpush.bf16.msra.mxu0 %v2515
    %4115 = vmatpush.bf16.msra.mxu0 %v2507
    %4116 = vmatmul.bf16.gmra.mxu0 %v696
    %v4117 = vpop.f32.mrf.mxu0
    %v4118 = vadd.f32 %v4104, %v4117
    %v4119 = vpop.f32.mrf.mxu0
    %v4120 = vadd.f32 %v4106, %v4119
    %4121 = vdwg.mxu0
    %4122 = vmatpush.bf16.msra.mxu0 %v2627
    %4123 = vmatpush.bf16.msra.mxu0 %v2619
    %4124 = vmatpush.bf16.msra.mxu0 %v2611
    %4125 = vmatpush.bf16.msra.mxu0 %v2603
    %4126 = vmatpush.bf16.msra.mxu0 %v2595
    %4127 = vmatpush.bf16.msra.mxu0 %v2587
    %4128 = vmatpush.bf16.msra.mxu0 %v2579
    %4129 = vmatpush.bf16.msra.mxu0 %v2571
    %4130 = vmatmul.bf16.gmra.mxu0 %v697
    %v4131 = vpop.f32.mrf.mxu0
    %v4132 = vadd.f32 %v4118, %v4131
    %v4133 = vpop.f32.mrf.mxu0
    %v4134 = vadd.f32 %v4120, %v4133
    %4135 = vdwg.mxu0
    %4136 = vmatpush.bf16.msra.mxu0 %v2691
    %4137 = vmatpush.bf16.msra.mxu0 %v2683
    %4138 = vmatpush.bf16.msra.mxu0 %v2675
    %4139 = vmatpush.bf16.msra.mxu0 %v2667
    %4140 = vmatpush.bf16.msra.mxu0 %v2659
    %4141 = vmatpush.bf16.msra.mxu0 %v2651
    %4142 = vmatpush.bf16.msra.mxu0 %v2643
    %4143 = vmatpush.bf16.msra.mxu0 %v2635
    %4144 = vmatmul.bf16.gmra.mxu0 %v698
    %v4145 = vpop.f32.mrf.mxu0
    %v4146 = vadd.f32 %v4132, %v4145
    %v4147 = vpop.f32.mrf.mxu0
    %v4148 = vadd.f32 %v4134, %v4147
    %4149 = vdwg.mxu0
    %4150 = vmatpush.bf16.msra.mxu0 %v2755
    %4151 = vmatpush.bf16.msra.mxu0 %v2747
    %4152 = vmatpush.bf16.msra.mxu0 %v2739
    %4153 = vmatpush.bf16.msra.mxu0 %v2731
    %4154 = vmatpush.bf16.msra.mxu0 %v2723
    %4155 = vmatpush.bf16.msra.mxu0 %v2715
    %4156 = vmatpush.bf16.msra.mxu0 %v2707
    %4157 = vmatpush.bf16.msra.mxu0 %v2699
    %4158 = vmatmul.bf16.gmra.mxu0 %v699
    %v4159 = vpop.f32.mrf.mxu0
    %v4160 = vadd.f32 %v4146, %v4159
    %v4161 = vpop.f32.mrf.mxu0
    %v4162 = vadd.f32 %v4148, %v4161
    %4163 = vdwg.mxu0
    %v4164 = vmax.f32 %v3376, 0.0
    %v4165 = vmax.f32 %v3488, 0.0
    %v4166 = vmax.f32 %v3600, 0.0
    %v4167 = vmax.f32 %v3712, 0.0
    %v4168 = vmax.f32 %v3824, 0.0
    %v4169 = vmax.f32 %v3936, 0.0
    %v4170 = vmax.f32 %v4048, 0.0
    %v4171 = vmax.f32 %v4160, 0.0
    %v4172 = vmax.f32 %v3378, 0.0
    %v4173 = vmax.f32 %v3490, 0.0
    %v4174 = vmax.f32 %v3602, 0.0
    %v4175 = vmax.f32 %v3714, 0.0
    %v4176 = vmax.f32 %v3826, 0.0
    %v4177 = vmax.f32 %v3938, 0.0
    %v4178 = vmax.f32 %v4050, 0.0
    %v4179 = vmax.f32 %v4162, 0.0
    %v4180 = vpack.c.bf16 %v4172, %v4164
    %v4181 = vpack.c.bf16 %v4173, %v4165
    %v4182 = vpack.c.bf16 %v4174, %v4166
    %v4183 = vpack.c.bf16 %v4175, %v4167
    %v4184 = vpack.c.bf16 %v4176, %v4168
    %v4185 = vpack.c.bf16 %v4177, %v4169
    %v4186 = vpack.c.bf16 %v4178, %v4170
    %v4187 = vpack.c.bf16 %v4179, %v4171
    %v4188 = vld [vmem:[#allocation8] sm:$0xff]
    %v4189 = vld [vmem:[#allocation8 + $0x8] sm:$0xff]
    %v4190 = vld [vmem:[#allocation8 + $0x10] sm:$0xff]
    %v4191 = vld [vmem:[#allocation8 + $0x18] sm:$0xff]
    %v4192 = vld [vmem:[#allocation8 + $0x20] sm:$0xff]
    %v4193 = vld [vmem:[#allocation8 + $0x28] sm:$0xff]
    %v4194 = vld [vmem:[#allocation8 + $0x30] sm:$0xff]
    %v4195 = vld [vmem:[#allocation8 + $0x38] sm:$0xff]
    %v4196 = vld [vmem:[#allocation8 + $0x40] sm:$0xff]
    %v4197 = vld [vmem:[#allocation8 + $0x48] sm:$0xff]
    %v4198 = vld [vmem:[#allocation8 + $0x50] sm:$0xff]
    %v4199 = vld [vmem:[#allocation8 + $0x58] sm:$0xff]
    %v4200 = vld [vmem:[#allocation8 + $0x60] sm:$0xff]
    %v4201 = vld [vmem:[#allocation8 + $0x68] sm:$0xff]
    %v4202 = vld [vmem:[#allocation8 + $0x70] sm:$0xff]
    %v4203 = vld [vmem:[#allocation8 + $0x78] sm:$0xff]
    %v4204 = vld [vmem:[#allocation8 + $0x80] sm:$0xff]
    %v4205 = vld [vmem:[#allocation8 + $0x88] sm:$0xff]
    %v4206 = vld [vmem:[#allocation8 + $0x90] sm:$0xff]
    %v4207 = vld [vmem:[#allocation8 + $0x98] sm:$0xff]
    %v4208 = vld [vmem:[#allocation8 + $0xa0] sm:$0xff]
    %v4209 = vld [vmem:[#allocation8 + $0xa8] sm:$0xff]
    %v4210 = vld [vmem:[#allocation8 + $0xb0] sm:$0xff]
    %v4211 = vld [vmem:[#allocation8 + $0xb8] sm:$0xff]
    %v4212 = vld [vmem:[#allocation8 + $0xc0] sm:$0xff]
    %v4213 = vld [vmem:[#allocation8 + $0xc8] sm:$0xff]
    %v4214 = vld [vmem:[#allocation8 + $0xd0] sm:$0xff]
    %v4215 = vld [vmem:[#allocation8 + $0xd8] sm:$0xff]
    %v4216 = vld [vmem:[#allocation8 + $0xe0] sm:$0xff]
    %v4217 = vld [vmem:[#allocation8 + $0xe8] sm:$0xff]
    %v4218 = vld [vmem:[#allocation8 + $0xf0] sm:$0xff]
    %v4219 = vld [vmem:[#allocation8 + $0xf8] sm:$0xff]
    %v4220 = vld [vmem:[#allocation8 + $0x100] sm:$0xff]
    %v4221 = vld [vmem:[#allocation8 + $0x108] sm:$0xff]
    %v4222 = vld [vmem:[#allocation8 + $0x110] sm:$0xff]
    %v4223 = vld [vmem:[#allocation8 + $0x118] sm:$0xff]
    %v4224 = vld [vmem:[#allocation8 + $0x120] sm:$0xff]
    %v4225 = vld [vmem:[#allocation8 + $0x128] sm:$0xff]
    %v4226 = vld [vmem:[#allocation8 + $0x130] sm:$0xff]
    %v4227 = vld [vmem:[#allocation8 + $0x138] sm:$0xff]
    %v4228 = vld [vmem:[#allocation8 + $0x140] sm:$0xff]
    %v4229 = vld [vmem:[#allocation8 + $0x148] sm:$0xff]
    %v4230 = vld [vmem:[#allocation8 + $0x150] sm:$0xff]
    %v4231 = vld [vmem:[#allocation8 + $0x158] sm:$0xff]
    %v4232 = vld [vmem:[#allocation8 + $0x160] sm:$0xff]
    %v4233 = vld [vmem:[#allocation8 + $0x168] sm:$0xff]
    %v4234 = vld [vmem:[#allocation8 + $0x170] sm:$0xff]
    %v4235 = vld [vmem:[#allocation8 + $0x178] sm:$0xff]
    %v4236 = vld [vmem:[#allocation8 + $0x180] sm:$0xff]
    %v4237 = vld [vmem:[#allocation8 + $0x188] sm:$0xff]
    %v4238 = vld [vmem:[#allocation8 + $0x190] sm:$0xff]
    %v4239 = vld [vmem:[#allocation8 + $0x198] sm:$0xff]
    %v4240 = vld [vmem:[#allocation8 + $0x1a0] sm:$0xff]
    %v4241 = vld [vmem:[#allocation8 + $0x1a8] sm:$0xff]
    %v4242 = vld [vmem:[#allocation8 + $0x1b0] sm:$0xff]
    %v4243 = vld [vmem:[#allocation8 + $0x1b8] sm:$0xff]
    %v4244 = vld [vmem:[#allocation8 + $0x1c0] sm:$0xff]
    %v4245 = vld [vmem:[#allocation8 + $0x1c8] sm:$0xff]
    %v4246 = vld [vmem:[#allocation8 + $0x1d0] sm:$0xff]
    %v4247 = vld [vmem:[#allocation8 + $0x1d8] sm:$0xff]
    %v4248 = vld [vmem:[#allocation8 + $0x1e0] sm:$0xff]
    %v4249 = vld [vmem:[#allocation8 + $0x1e8] sm:$0xff]
    %v4250 = vld [vmem:[#allocation8 + $0x1f0] sm:$0xff]
    %v4251 = vld [vmem:[#allocation8 + $0x1f8] sm:$0xff]
    %v4252 = vld [vmem:[#allocation8 + $0x200] sm:$0xff]
    %v4253 = vld [vmem:[#allocation8 + $0x208] sm:$0xff]
    %v4254 = vld [vmem:[#allocation8 + $0x210] sm:$0xff]
    %v4255 = vld [vmem:[#allocation8 + $0x218] sm:$0xff]
    %v4256 = vld [vmem:[#allocation8 + $0x220] sm:$0xff]
    %v4257 = vld [vmem:[#allocation8 + $0x228] sm:$0xff]
    %v4258 = vld [vmem:[#allocation8 + $0x230] sm:$0xff]
    %v4259 = vld [vmem:[#allocation8 + $0x238] sm:$0xff]
    %v4260 = vld [vmem:[#allocation8 + $0x240] sm:$0xff]
    %v4261 = vld [vmem:[#allocation8 + $0x248] sm:$0xff]
    %v4262 = vld [vmem:[#allocation8 + $0x250] sm:$0xff]
    %v4263 = vld [vmem:[#allocation8 + $0x258] sm:$0xff]
    %v4264 = vld [vmem:[#allocation8 + $0x260] sm:$0xff]
    %v4265 = vld [vmem:[#allocation8 + $0x268] sm:$0xff]
    %v4266 = vld [vmem:[#allocation8 + $0x270] sm:$0xff]
    %v4267 = vld [vmem:[#allocation8 + $0x278] sm:$0xff]
    %v4268 = vld [vmem:[#allocation8 + $0x280] sm:$0xff]
    %v4269 = vld [vmem:[#allocation8 + $0x288] sm:$0xff]
    %v4270 = vld [vmem:[#allocation8 + $0x290] sm:$0xff]
    %v4271 = vld [vmem:[#allocation8 + $0x298] sm:$0xff]
    %v4272 = vld [vmem:[#allocation8 + $0x2a0] sm:$0xff]
    %v4273 = vld [vmem:[#allocation8 + $0x2a8] sm:$0xff]
    %v4274 = vld [vmem:[#allocation8 + $0x2b0] sm:$0xff]
    %v4275 = vld [vmem:[#allocation8 + $0x2b8] sm:$0xff]
    %v4276 = vld [vmem:[#allocation8 + $0x2c0] sm:$0xff]
    %v4277 = vld [vmem:[#allocation8 + $0x2c8] sm:$0xff]
    %v4278 = vld [vmem:[#allocation8 + $0x2d0] sm:$0xff]
    %v4279 = vld [vmem:[#allocation8 + $0x2d8] sm:$0xff]
    %v4280 = vld [vmem:[#allocation8 + $0x2e0] sm:$0xff]
    %v4281 = vld [vmem:[#allocation8 + $0x2e8] sm:$0xff]
    %v4282 = vld [vmem:[#allocation8 + $0x2f0] sm:$0xff]
    %v4283 = vld [vmem:[#allocation8 + $0x2f8] sm:$0xff]
    %v4284 = vld [vmem:[#allocation8 + $0x300] sm:$0xff]
    %v4285 = vld [vmem:[#allocation8 + $0x308] sm:$0xff]
    %v4286 = vld [vmem:[#allocation8 + $0x310] sm:$0xff]
    %v4287 = vld [vmem:[#allocation8 + $0x318] sm:$0xff]
    %v4288 = vld [vmem:[#allocation8 + $0x320] sm:$0xff]
    %v4289 = vld [vmem:[#allocation8 + $0x328] sm:$0xff]
    %v4290 = vld [vmem:[#allocation8 + $0x330] sm:$0xff]
    %v4291 = vld [vmem:[#allocation8 + $0x338] sm:$0xff]
    %v4292 = vld [vmem:[#allocation8 + $0x340] sm:$0xff]
    %v4293 = vld [vmem:[#allocation8 + $0x348] sm:$0xff]
    %v4294 = vld [vmem:[#allocation8 + $0x350] sm:$0xff]
    %v4295 = vld [vmem:[#allocation8 + $0x358] sm:$0xff]
    %v4296 = vld [vmem:[#allocation8 + $0x360] sm:$0xff]
    %v4297 = vld [vmem:[#allocation8 + $0x368] sm:$0xff]
    %v4298 = vld [vmem:[#allocation8 + $0x370] sm:$0xff]
    %v4299 = vld [vmem:[#allocation8 + $0x378] sm:$0xff]
    %v4300 = vld [vmem:[#allocation8 + $0x380] sm:$0xff]
    %v4301 = vld [vmem:[#allocation8 + $0x388] sm:$0xff]
    %v4302 = vld [vmem:[#allocation8 + $0x390] sm:$0xff]
    %v4303 = vld [vmem:[#allocation8 + $0x398] sm:$0xff]
    %v4304 = vld [vmem:[#allocation8 + $0x3a0] sm:$0xff]
    %v4305 = vld [vmem:[#allocation8 + $0x3a8] sm:$0xff]
    %v4306 = vld [vmem:[#allocation8 + $0x3b0] sm:$0xff]
    %v4307 = vld [vmem:[#allocation8 + $0x3b8] sm:$0xff]
    %v4308 = vld [vmem:[#allocation8 + $0x3c0] sm:$0xff]
    %v4309 = vld [vmem:[#allocation8 + $0x3c8] sm:$0xff]
    %v4310 = vld [vmem:[#allocation8 + $0x3d0] sm:$0xff]
    %v4311 = vld [vmem:[#allocation8 + $0x3d8] sm:$0xff]
    %v4312 = vld [vmem:[#allocation8 + $0x3e0] sm:$0xff]
    %v4313 = vld [vmem:[#allocation8 + $0x3e8] sm:$0xff]
    %v4314 = vld [vmem:[#allocation8 + $0x3f0] sm:$0xff]
    %v4315 = vld [vmem:[#allocation8 + $0x3f8] sm:$0xff]
    %v4316 = vld [vmem:[#allocation8 + $0x400] sm:$0xff]
    %v4317 = vld [vmem:[#allocation8 + $0x408] sm:$0xff]
    %v4318 = vld [vmem:[#allocation8 + $0x410] sm:$0xff]
    %v4319 = vld [vmem:[#allocation8 + $0x418] sm:$0xff]
    %v4320 = vld [vmem:[#allocation8 + $0x420] sm:$0xff]
    %v4321 = vld [vmem:[#allocation8 + $0x428] sm:$0xff]
    %v4322 = vld [vmem:[#allocation8 + $0x430] sm:$0xff]
    %v4323 = vld [vmem:[#allocation8 + $0x438] sm:$0xff]
    %v4324 = vld [vmem:[#allocation8 + $0x440] sm:$0xff]
    %v4325 = vld [vmem:[#allocation8 + $0x448] sm:$0xff]
    %v4326 = vld [vmem:[#allocation8 + $0x450] sm:$0xff]
    %v4327 = vld [vmem:[#allocation8 + $0x458] sm:$0xff]
    %v4328 = vld [vmem:[#allocation8 + $0x460] sm:$0xff]
    %v4329 = vld [vmem:[#allocation8 + $0x468] sm:$0xff]
    %v4330 = vld [vmem:[#allocation8 + $0x470] sm:$0xff]
    %v4331 = vld [vmem:[#allocation8 + $0x478] sm:$0xff]
    %v4332 = vld [vmem:[#allocation8 + $0x480] sm:$0xff]
    %v4333 = vld [vmem:[#allocation8 + $0x488] sm:$0xff]
    %v4334 = vld [vmem:[#allocation8 + $0x490] sm:$0xff]
    %v4335 = vld [vmem:[#allocation8 + $0x498] sm:$0xff]
    %v4336 = vld [vmem:[#allocation8 + $0x4a0] sm:$0xff]
    %v4337 = vld [vmem:[#allocation8 + $0x4a8] sm:$0xff]
    %v4338 = vld [vmem:[#allocation8 + $0x4b0] sm:$0xff]
    %v4339 = vld [vmem:[#allocation8 + $0x4b8] sm:$0xff]
    %v4340 = vld [vmem:[#allocation8 + $0x4c0] sm:$0xff]
    %v4341 = vld [vmem:[#allocation8 + $0x4c8] sm:$0xff]
    %v4342 = vld [vmem:[#allocation8 + $0x4d0] sm:$0xff]
    %v4343 = vld [vmem:[#allocation8 + $0x4d8] sm:$0xff]
    %v4344 = vld [vmem:[#allocation8 + $0x4e0] sm:$0xff]
    %v4345 = vld [vmem:[#allocation8 + $0x4e8] sm:$0xff]
    %v4346 = vld [vmem:[#allocation8 + $0x4f0] sm:$0xff]
    %v4347 = vld [vmem:[#allocation8 + $0x4f8] sm:$0xff]
    %v4348 = vld [vmem:[#allocation8 + $0x500] sm:$0xff]
    %v4349 = vld [vmem:[#allocation8 + $0x508] sm:$0xff]
    %v4350 = vld [vmem:[#allocation8 + $0x510] sm:$0xff]
    %v4351 = vld [vmem:[#allocation8 + $0x518] sm:$0xff]
    %v4352 = vld [vmem:[#allocation8 + $0x520] sm:$0xff]
    %v4353 = vld [vmem:[#allocation8 + $0x528] sm:$0xff]
    %v4354 = vld [vmem:[#allocation8 + $0x530] sm:$0xff]
    %v4355 = vld [vmem:[#allocation8 + $0x538] sm:$0xff]
    %v4356 = vld [vmem:[#allocation8 + $0x540] sm:$0xff]
    %v4357 = vld [vmem:[#allocation8 + $0x548] sm:$0xff]
    %v4358 = vld [vmem:[#allocation8 + $0x550] sm:$0xff]
    %v4359 = vld [vmem:[#allocation8 + $0x558] sm:$0xff]
    %v4360 = vld [vmem:[#allocation8 + $0x560] sm:$0xff]
    %v4361 = vld [vmem:[#allocation8 + $0x568] sm:$0xff]
    %v4362 = vld [vmem:[#allocation8 + $0x570] sm:$0xff]
    %v4363 = vld [vmem:[#allocation8 + $0x578] sm:$0xff]
    %v4364 = vld [vmem:[#allocation8 + $0x580] sm:$0xff]
    %v4365 = vld [vmem:[#allocation8 + $0x588] sm:$0xff]
    %v4366 = vld [vmem:[#allocation8 + $0x590] sm:$0xff]
    %v4367 = vld [vmem:[#allocation8 + $0x598] sm:$0xff]
    %v4368 = vld [vmem:[#allocation8 + $0x5a0] sm:$0xff]
    %v4369 = vld [vmem:[#allocation8 + $0x5a8] sm:$0xff]
    %v4370 = vld [vmem:[#allocation8 + $0x5b0] sm:$0xff]
    %v4371 = vld [vmem:[#allocation8 + $0x5b8] sm:$0xff]
    %v4372 = vld [vmem:[#allocation8 + $0x5c0] sm:$0xff]
    %v4373 = vld [vmem:[#allocation8 + $0x5c8] sm:$0xff]
    %v4374 = vld [vmem:[#allocation8 + $0x5d0] sm:$0xff]
    %v4375 = vld [vmem:[#allocation8 + $0x5d8] sm:$0xff]
    %v4376 = vld [vmem:[#allocation8 + $0x5e0] sm:$0xff]
    %v4377 = vld [vmem:[#allocation8 + $0x5e8] sm:$0xff]
    %v4378 = vld [vmem:[#allocation8 + $0x5f0] sm:$0xff]
    %v4379 = vld [vmem:[#allocation8 + $0x5f8] sm:$0xff]
    %v4380 = vld [vmem:[#allocation8 + $0x600] sm:$0xff]
    %v4381 = vld [vmem:[#allocation8 + $0x608] sm:$0xff]
    %v4382 = vld [vmem:[#allocation8 + $0x610] sm:$0xff]
    %v4383 = vld [vmem:[#allocation8 + $0x618] sm:$0xff]
    %v4384 = vld [vmem:[#allocation8 + $0x620] sm:$0xff]
    %v4385 = vld [vmem:[#allocation8 + $0x628] sm:$0xff]
    %v4386 = vld [vmem:[#allocation8 + $0x630] sm:$0xff]
    %v4387 = vld [vmem:[#allocation8 + $0x638] sm:$0xff]
    %v4388 = vld [vmem:[#allocation8 + $0x640] sm:$0xff]
    %v4389 = vld [vmem:[#allocation8 + $0x648] sm:$0xff]
    %v4390 = vld [vmem:[#allocation8 + $0x650] sm:$0xff]
    %v4391 = vld [vmem:[#allocation8 + $0x658] sm:$0xff]
    %v4392 = vld [vmem:[#allocation8 + $0x660] sm:$0xff]
    %v4393 = vld [vmem:[#allocation8 + $0x668] sm:$0xff]
    %v4394 = vld [vmem:[#allocation8 + $0x670] sm:$0xff]
    %v4395 = vld [vmem:[#allocation8 + $0x678] sm:$0xff]
    %v4396 = vld [vmem:[#allocation8 + $0x680] sm:$0xff]
    %v4397 = vld [vmem:[#allocation8 + $0x688] sm:$0xff]
    %v4398 = vld [vmem:[#allocation8 + $0x690] sm:$0xff]
    %v4399 = vld [vmem:[#allocation8 + $0x698] sm:$0xff]
    %v4400 = vld [vmem:[#allocation8 + $0x6a0] sm:$0xff]
    %v4401 = vld [vmem:[#allocation8 + $0x6a8] sm:$0xff]
    %v4402 = vld [vmem:[#allocation8 + $0x6b0] sm:$0xff]
    %v4403 = vld [vmem:[#allocation8 + $0x6b8] sm:$0xff]
    %v4404 = vld [vmem:[#allocation8 + $0x6c0] sm:$0xff]
    %v4405 = vld [vmem:[#allocation8 + $0x6c8] sm:$0xff]
    %v4406 = vld [vmem:[#allocation8 + $0x6d0] sm:$0xff]
    %v4407 = vld [vmem:[#allocation8 + $0x6d8] sm:$0xff]
    %v4408 = vld [vmem:[#allocation8 + $0x6e0] sm:$0xff]
    %v4409 = vld [vmem:[#allocation8 + $0x6e8] sm:$0xff]
    %v4410 = vld [vmem:[#allocation8 + $0x6f0] sm:$0xff]
    %v4411 = vld [vmem:[#allocation8 + $0x6f8] sm:$0xff]
    %v4412 = vld [vmem:[#allocation8 + $0x700] sm:$0xff]
    %v4413 = vld [vmem:[#allocation8 + $0x708] sm:$0xff]
    %v4414 = vld [vmem:[#allocation8 + $0x710] sm:$0xff]
    %v4415 = vld [vmem:[#allocation8 + $0x718] sm:$0xff]
    %v4416 = vld [vmem:[#allocation8 + $0x720] sm:$0xff]
    %v4417 = vld [vmem:[#allocation8 + $0x728] sm:$0xff]
    %v4418 = vld [vmem:[#allocation8 + $0x730] sm:$0xff]
    %v4419 = vld [vmem:[#allocation8 + $0x738] sm:$0xff]
    %v4420 = vld [vmem:[#allocation8 + $0x740] sm:$0xff]
    %v4421 = vld [vmem:[#allocation8 + $0x748] sm:$0xff]
    %v4422 = vld [vmem:[#allocation8 + $0x750] sm:$0xff]
    %v4423 = vld [vmem:[#allocation8 + $0x758] sm:$0xff]
    %v4424 = vld [vmem:[#allocation8 + $0x760] sm:$0xff]
    %v4425 = vld [vmem:[#allocation8 + $0x768] sm:$0xff]
    %v4426 = vld [vmem:[#allocation8 + $0x770] sm:$0xff]
    %v4427 = vld [vmem:[#allocation8 + $0x778] sm:$0xff]
    %v4428 = vld [vmem:[#allocation8 + $0x780] sm:$0xff]
    %v4429 = vld [vmem:[#allocation8 + $0x788] sm:$0xff]
    %v4430 = vld [vmem:[#allocation8 + $0x790] sm:$0xff]
    %v4431 = vld [vmem:[#allocation8 + $0x798] sm:$0xff]
    %v4432 = vld [vmem:[#allocation8 + $0x7a0] sm:$0xff]
    %v4433 = vld [vmem:[#allocation8 + $0x7a8] sm:$0xff]
    %v4434 = vld [vmem:[#allocation8 + $0x7b0] sm:$0xff]
    %v4435 = vld [vmem:[#allocation8 + $0x7b8] sm:$0xff]
    %v4436 = vld [vmem:[#allocation8 + $0x7c0] sm:$0xff]
    %v4437 = vld [vmem:[#allocation8 + $0x7c8] sm:$0xff]
    %v4438 = vld [vmem:[#allocation8 + $0x7d0] sm:$0xff]
    %v4439 = vld [vmem:[#allocation8 + $0x7d8] sm:$0xff]
    %v4440 = vld [vmem:[#allocation8 + $0x7e0] sm:$0xff]
    %v4441 = vld [vmem:[#allocation8 + $0x7e8] sm:$0xff]
    %v4442 = vld [vmem:[#allocation8 + $0x7f0] sm:$0xff]
    %v4443 = vld [vmem:[#allocation8 + $0x7f8] sm:$0xff]
    %v4444 = vld [vmem:[#allocation10] sm:$0xf]
    %v4446 = vperm.slane %v4444, 0
    %v4447 = vperm.slane %v4444, 1
    %v4448 = vperm.slane %v4444, 2
    %v4449 = vperm.slane %v4444, 3
    %v4710 = vunpack.c.l.b16 %v4188
    %v4711 = vunpack.c.h.b16 %v4188
    %v4712 = vunpack.c.l.b16 %v4189
    %v4713 = vunpack.c.h.b16 %v4189
    %v4714 = vunpack.c.l.b16 %v4190
    %v4715 = vunpack.c.h.b16 %v4190
    %v4716 = vunpack.c.l.b16 %v4191
    %v4717 = vunpack.c.h.b16 %v4191
    %v4718 = vunpack.c.l.b16 %v4192
    %v4719 = vunpack.c.h.b16 %v4192
    %v4720 = vunpack.c.l.b16 %v4193
    %v4721 = vunpack.c.h.b16 %v4193
    %v4722 = vunpack.c.l.b16 %v4194
    %v4723 = vunpack.c.h.b16 %v4194
    %v4724 = vunpack.c.l.b16 %v4195
    %v4725 = vunpack.c.h.b16 %v4195
    %v4726 = vunpack.c.l.b16 %v4196
    %v4727 = vunpack.c.h.b16 %v4196
    %v4728 = vunpack.c.l.b16 %v4197
    %v4729 = vunpack.c.h.b16 %v4197
    %v4730 = vunpack.c.l.b16 %v4198
    %v4731 = vunpack.c.h.b16 %v4198
    %v4732 = vunpack.c.l.b16 %v4199
    %v4733 = vunpack.c.h.b16 %v4199
    %v4734 = vunpack.c.l.b16 %v4200
    %v4735 = vunpack.c.h.b16 %v4200
    %v4736 = vunpack.c.l.b16 %v4201
    %v4737 = vunpack.c.h.b16 %v4201
    %v4738 = vunpack.c.l.b16 %v4202
    %v4739 = vunpack.c.h.b16 %v4202
    %v4740 = vunpack.c.l.b16 %v4203
    %v4741 = vunpack.c.h.b16 %v4203
    %v4742 = vunpack.c.l.b16 %v4204
    %v4743 = vunpack.c.h.b16 %v4204
    %v4744 = vunpack.c.l.b16 %v4205
    %v4745 = vunpack.c.h.b16 %v4205
    %v4746 = vunpack.c.l.b16 %v4206
    %v4747 = vunpack.c.h.b16 %v4206
    %v4748 = vunpack.c.l.b16 %v4207
    %v4749 = vunpack.c.h.b16 %v4207
    %v4750 = vunpack.c.l.b16 %v4208
    %v4751 = vunpack.c.h.b16 %v4208
    %v4752 = vunpack.c.l.b16 %v4209
    %v4753 = vunpack.c.h.b16 %v4209
    %v4754 = vunpack.c.l.b16 %v4210
    %v4755 = vunpack.c.h.b16 %v4210
    %v4756 = vunpack.c.l.b16 %v4211
    %v4757 = vunpack.c.h.b16 %v4211
    %v4758 = vunpack.c.l.b16 %v4212
    %v4759 = vunpack.c.h.b16 %v4212
    %v4760 = vunpack.c.l.b16 %v4213
    %v4761 = vunpack.c.h.b16 %v4213
    %v4762 = vunpack.c.l.b16 %v4214
    %v4763 = vunpack.c.h.b16 %v4214
    %v4764 = vunpack.c.l.b16 %v4215
    %v4765 = vunpack.c.h.b16 %v4215
    %v4766 = vunpack.c.l.b16 %v4216
    %v4767 = vunpack.c.h.b16 %v4216
    %v4768 = vunpack.c.l.b16 %v4217
    %v4769 = vunpack.c.h.b16 %v4217
    %v4770 = vunpack.c.l.b16 %v4218
    %v4771 = vunpack.c.h.b16 %v4218
    %v4772 = vunpack.c.l.b16 %v4219
    %v4773 = vunpack.c.h.b16 %v4219
    %v4774 = vunpack.c.l.b16 %v4220
    %v4775 = vunpack.c.h.b16 %v4220
    %v4776 = vunpack.c.l.b16 %v4221
    %v4777 = vunpack.c.h.b16 %v4221
    %v4778 = vunpack.c.l.b16 %v4222
    %v4779 = vunpack.c.h.b16 %v4222
    %v4780 = vunpack.c.l.b16 %v4223
    %v4781 = vunpack.c.h.b16 %v4223
    %v4782 = vunpack.c.l.b16 %v4224
    %v4783 = vunpack.c.h.b16 %v4224
    %v4784 = vunpack.c.l.b16 %v4225
    %v4785 = vunpack.c.h.b16 %v4225
    %v4786 = vunpack.c.l.b16 %v4226
    %v4787 = vunpack.c.h.b16 %v4226
    %v4788 = vunpack.c.l.b16 %v4227
    %v4789 = vunpack.c.h.b16 %v4227
    %v4790 = vunpack.c.l.b16 %v4228
    %v4791 = vunpack.c.h.b16 %v4228
    %v4792 = vunpack.c.l.b16 %v4229
    %v4793 = vunpack.c.h.b16 %v4229
    %v4794 = vunpack.c.l.b16 %v4230
    %v4795 = vunpack.c.h.b16 %v4230
    %v4796 = vunpack.c.l.b16 %v4231
    %v4797 = vunpack.c.h.b16 %v4231
    %v4798 = vunpack.c.l.b16 %v4232
    %v4799 = vunpack.c.h.b16 %v4232
    %v4800 = vunpack.c.l.b16 %v4233
    %v4801 = vunpack.c.h.b16 %v4233
    %v4802 = vunpack.c.l.b16 %v4234
    %v4803 = vunpack.c.h.b16 %v4234
    %v4804 = vunpack.c.l.b16 %v4235
    %v4805 = vunpack.c.h.b16 %v4235
    %v4806 = vunpack.c.l.b16 %v4236
    %v4807 = vunpack.c.h.b16 %v4236
    %v4808 = vunpack.c.l.b16 %v4237
    %v4809 = vunpack.c.h.b16 %v4237
    %v4810 = vunpack.c.l.b16 %v4238
    %v4811 = vunpack.c.h.b16 %v4238
    %v4812 = vunpack.c.l.b16 %v4239
    %v4813 = vunpack.c.h.b16 %v4239
    %v4814 = vunpack.c.l.b16 %v4240
    %v4815 = vunpack.c.h.b16 %v4240
    %v4816 = vunpack.c.l.b16 %v4241
    %v4817 = vunpack.c.h.b16 %v4241
    %v4818 = vunpack.c.l.b16 %v4242
    %v4819 = vunpack.c.h.b16 %v4242
    %v4820 = vunpack.c.l.b16 %v4243
    %v4821 = vunpack.c.h.b16 %v4243
    %v4822 = vunpack.c.l.b16 %v4244
    %v4823 = vunpack.c.h.b16 %v4244
    %v4824 = vunpack.c.l.b16 %v4245
    %v4825 = vunpack.c.h.b16 %v4245
    %v4826 = vunpack.c.l.b16 %v4246
    %v4827 = vunpack.c.h.b16 %v4246
    %v4828 = vunpack.c.l.b16 %v4247
    %v4829 = vunpack.c.h.b16 %v4247
    %v4830 = vunpack.c.l.b16 %v4248
    %v4831 = vunpack.c.h.b16 %v4248
    %v4832 = vunpack.c.l.b16 %v4249
    %v4833 = vunpack.c.h.b16 %v4249
    %v4834 = vunpack.c.l.b16 %v4250
    %v4835 = vunpack.c.h.b16 %v4250
    %v4836 = vunpack.c.l.b16 %v4251
    %v4837 = vunpack.c.h.b16 %v4251
    %v4838 = vunpack.c.l.b16 %v4252
    %v4839 = vunpack.c.h.b16 %v4252
    %v4840 = vunpack.c.l.b16 %v4253
    %v4841 = vunpack.c.h.b16 %v4253
    %v4842 = vunpack.c.l.b16 %v4254
    %v4843 = vunpack.c.h.b16 %v4254
    %v4844 = vunpack.c.l.b16 %v4255
    %v4845 = vunpack.c.h.b16 %v4255
    %v4846 = vunpack.c.l.b16 %v4256
    %v4847 = vunpack.c.h.b16 %v4256
    %v4848 = vunpack.c.l.b16 %v4257
    %v4849 = vunpack.c.h.b16 %v4257
    %v4850 = vunpack.c.l.b16 %v4258
    %v4851 = vunpack.c.h.b16 %v4258
    %v4852 = vunpack.c.l.b16 %v4259
    %v4853 = vunpack.c.h.b16 %v4259
    %v4854 = vunpack.c.l.b16 %v4260
    %v4855 = vunpack.c.h.b16 %v4260
    %v4856 = vunpack.c.l.b16 %v4261
    %v4857 = vunpack.c.h.b16 %v4261
    %v4858 = vunpack.c.l.b16 %v4262
    %v4859 = vunpack.c.h.b16 %v4262
    %v4860 = vunpack.c.l.b16 %v4263
    %v4861 = vunpack.c.h.b16 %v4263
    %v4862 = vunpack.c.l.b16 %v4264
    %v4863 = vunpack.c.h.b16 %v4264
    %v4864 = vunpack.c.l.b16 %v4265
    %v4865 = vunpack.c.h.b16 %v4265
    %v4866 = vunpack.c.l.b16 %v4266
    %v4867 = vunpack.c.h.b16 %v4266
    %v4868 = vunpack.c.l.b16 %v4267
    %v4869 = vunpack.c.h.b16 %v4267
    %v4870 = vunpack.c.l.b16 %v4268
    %v4871 = vunpack.c.h.b16 %v4268
    %v4872 = vunpack.c.l.b16 %v4269
    %v4873 = vunpack.c.h.b16 %v4269
    %v4874 = vunpack.c.l.b16 %v4270
    %v4875 = vunpack.c.h.b16 %v4270
    %v4876 = vunpack.c.l.b16 %v4271
    %v4877 = vunpack.c.h.b16 %v4271
    %v4878 = vunpack.c.l.b16 %v4272
    %v4879 = vunpack.c.h.b16 %v4272
    %v4880 = vunpack.c.l.b16 %v4273
    %v4881 = vunpack.c.h.b16 %v4273
    %v4882 = vunpack.c.l.b16 %v4274
    %v4883 = vunpack.c.h.b16 %v4274
    %v4884 = vunpack.c.l.b16 %v4275
    %v4885 = vunpack.c.h.b16 %v4275
    %v4886 = vunpack.c.l.b16 %v4276
    %v4887 = vunpack.c.h.b16 %v4276
    %v4888 = vunpack.c.l.b16 %v4277
    %v4889 = vunpack.c.h.b16 %v4277
    %v4890 = vunpack.c.l.b16 %v4278
    %v4891 = vunpack.c.h.b16 %v4278
    %v4892 = vunpack.c.l.b16 %v4279
    %v4893 = vunpack.c.h.b16 %v4279
    %v4894 = vunpack.c.l.b16 %v4280
    %v4895 = vunpack.c.h.b16 %v4280
    %v4896 = vunpack.c.l.b16 %v4281
    %v4897 = vunpack.c.h.b16 %v4281
    %v4898 = vunpack.c.l.b16 %v4282
    %v4899 = vunpack.c.h.b16 %v4282
    %v4900 = vunpack.c.l.b16 %v4283
    %v4901 = vunpack.c.h.b16 %v4283
    %v4902 = vunpack.c.l.b16 %v4284
    %v4903 = vunpack.c.h.b16 %v4284
    %v4904 = vunpack.c.l.b16 %v4285
    %v4905 = vunpack.c.h.b16 %v4285
    %v4906 = vunpack.c.l.b16 %v4286
    %v4907 = vunpack.c.h.b16 %v4286
    %v4908 = vunpack.c.l.b16 %v4287
    %v4909 = vunpack.c.h.b16 %v4287
    %v4910 = vunpack.c.l.b16 %v4288
    %v4911 = vunpack.c.h.b16 %v4288
    %v4912 = vunpack.c.l.b16 %v4289
    %v4913 = vunpack.c.h.b16 %v4289
    %v4914 = vunpack.c.l.b16 %v4290
    %v4915 = vunpack.c.h.b16 %v4290
    %v4916 = vunpack.c.l.b16 %v4291
    %v4917 = vunpack.c.h.b16 %v4291
    %v4918 = vunpack.c.l.b16 %v4292
    %v4919 = vunpack.c.h.b16 %v4292
    %v4920 = vunpack.c.l.b16 %v4293
    %v4921 = vunpack.c.h.b16 %v4293
    %v4922 = vunpack.c.l.b16 %v4294
    %v4923 = vunpack.c.h.b16 %v4294
    %v4924 = vunpack.c.l.b16 %v4295
    %v4925 = vunpack.c.h.b16 %v4295
    %v4926 = vunpack.c.l.b16 %v4296
    %v4927 = vunpack.c.h.b16 %v4296
    %v4928 = vunpack.c.l.b16 %v4297
    %v4929 = vunpack.c.h.b16 %v4297
    %v4930 = vunpack.c.l.b16 %v4298
    %v4931 = vunpack.c.h.b16 %v4298
    %v4932 = vunpack.c.l.b16 %v4299
    %v4933 = vunpack.c.h.b16 %v4299
    %v4934 = vunpack.c.l.b16 %v4300
    %v4935 = vunpack.c.h.b16 %v4300
    %v4936 = vunpack.c.l.b16 %v4301
    %v4937 = vunpack.c.h.b16 %v4301
    %v4938 = vunpack.c.l.b16 %v4302
    %v4939 = vunpack.c.h.b16 %v4302
    %v4940 = vunpack.c.l.b16 %v4303
    %v4941 = vunpack.c.h.b16 %v4303
    %v4942 = vunpack.c.l.b16 %v4304
    %v4943 = vunpack.c.h.b16 %v4304
    %v4944 = vunpack.c.l.b16 %v4305
    %v4945 = vunpack.c.h.b16 %v4305
    %v4946 = vunpack.c.l.b16 %v4306
    %v4947 = vunpack.c.h.b16 %v4306
    %v4948 = vunpack.c.l.b16 %v4307
    %v4949 = vunpack.c.h.b16 %v4307
    %v4950 = vunpack.c.l.b16 %v4308
    %v4951 = vunpack.c.h.b16 %v4308
    %v4952 = vunpack.c.l.b16 %v4309
    %v4953 = vunpack.c.h.b16 %v4309
    %v4954 = vunpack.c.l.b16 %v4310
    %v4955 = vunpack.c.h.b16 %v4310
    %v4956 = vunpack.c.l.b16 %v4311
    %v4957 = vunpack.c.h.b16 %v4311
    %v4958 = vunpack.c.l.b16 %v4312
    %v4959 = vunpack.c.h.b16 %v4312
    %v4960 = vunpack.c.l.b16 %v4313
    %v4961 = vunpack.c.h.b16 %v4313
    %v4962 = vunpack.c.l.b16 %v4314
    %v4963 = vunpack.c.h.b16 %v4314
    %v4964 = vunpack.c.l.b16 %v4315
    %v4965 = vunpack.c.h.b16 %v4315
    %v4966 = vunpack.c.l.b16 %v4316
    %v4967 = vunpack.c.h.b16 %v4316
    %v4968 = vunpack.c.l.b16 %v4317
    %v4969 = vunpack.c.h.b16 %v4317
    %v4970 = vunpack.c.l.b16 %v4318
    %v4971 = vunpack.c.h.b16 %v4318
    %v4972 = vunpack.c.l.b16 %v4319
    %v4973 = vunpack.c.h.b16 %v4319
    %v4974 = vunpack.c.l.b16 %v4320
    %v4975 = vunpack.c.h.b16 %v4320
    %v4976 = vunpack.c.l.b16 %v4321
    %v4977 = vunpack.c.h.b16 %v4321
    %v4978 = vunpack.c.l.b16 %v4322
    %v4979 = vunpack.c.h.b16 %v4322
    %v4980 = vunpack.c.l.b16 %v4323
    %v4981 = vunpack.c.h.b16 %v4323
    %v4982 = vunpack.c.l.b16 %v4324
    %v4983 = vunpack.c.h.b16 %v4324
    %v4984 = vunpack.c.l.b16 %v4325
    %v4985 = vunpack.c.h.b16 %v4325
    %v4986 = vunpack.c.l.b16 %v4326
    %v4987 = vunpack.c.h.b16 %v4326
    %v4988 = vunpack.c.l.b16 %v4327
    %v4989 = vunpack.c.h.b16 %v4327
    %v4990 = vunpack.c.l.b16 %v4328
    %v4991 = vunpack.c.h.b16 %v4328
    %v4992 = vunpack.c.l.b16 %v4329
    %v4993 = vunpack.c.h.b16 %v4329
    %v4994 = vunpack.c.l.b16 %v4330
    %v4995 = vunpack.c.h.b16 %v4330
    %v4996 = vunpack.c.l.b16 %v4331
    %v4997 = vunpack.c.h.b16 %v4331
    %v4998 = vunpack.c.l.b16 %v4332
    %v4999 = vunpack.c.h.b16 %v4332
    %v5000 = vunpack.c.l.b16 %v4333
    %v5001 = vunpack.c.h.b16 %v4333
    %v5002 = vunpack.c.l.b16 %v4334
    %v5003 = vunpack.c.h.b16 %v4334
    %v5004 = vunpack.c.l.b16 %v4335
    %v5005 = vunpack.c.h.b16 %v4335
    %v5006 = vunpack.c.l.b16 %v4336
    %v5007 = vunpack.c.h.b16 %v4336
    %v5008 = vunpack.c.l.b16 %v4337
    %v5009 = vunpack.c.h.b16 %v4337
    %v5010 = vunpack.c.l.b16 %v4338
    %v5011 = vunpack.c.h.b16 %v4338
    %v5012 = vunpack.c.l.b16 %v4339
    %v5013 = vunpack.c.h.b16 %v4339
    %v5014 = vunpack.c.l.b16 %v4340
    %v5015 = vunpack.c.h.b16 %v4340
    %v5016 = vunpack.c.l.b16 %v4341
    %v5017 = vunpack.c.h.b16 %v4341
    %v5018 = vunpack.c.l.b16 %v4342
    %v5019 = vunpack.c.h.b16 %v4342
    %v5020 = vunpack.c.l.b16 %v4343
    %v5021 = vunpack.c.h.b16 %v4343
    %v5022 = vunpack.c.l.b16 %v4344
    %v5023 = vunpack.c.h.b16 %v4344
    %v5024 = vunpack.c.l.b16 %v4345
    %v5025 = vunpack.c.h.b16 %v4345
    %v5026 = vunpack.c.l.b16 %v4346
    %v5027 = vunpack.c.h.b16 %v4346
    %v5028 = vunpack.c.l.b16 %v4347
    %v5029 = vunpack.c.h.b16 %v4347
    %v5030 = vunpack.c.l.b16 %v4348
    %v5031 = vunpack.c.h.b16 %v4348
    %v5032 = vunpack.c.l.b16 %v4349
    %v5033 = vunpack.c.h.b16 %v4349
    %v5034 = vunpack.c.l.b16 %v4350
    %v5035 = vunpack.c.h.b16 %v4350
    %v5036 = vunpack.c.l.b16 %v4351
    %v5037 = vunpack.c.h.b16 %v4351
    %v5038 = vunpack.c.l.b16 %v4352
    %v5039 = vunpack.c.h.b16 %v4352
    %v5040 = vunpack.c.l.b16 %v4353
    %v5041 = vunpack.c.h.b16 %v4353
    %v5042 = vunpack.c.l.b16 %v4354
    %v5043 = vunpack.c.h.b16 %v4354
    %v5044 = vunpack.c.l.b16 %v4355
    %v5045 = vunpack.c.h.b16 %v4355
    %v5046 = vunpack.c.l.b16 %v4356
    %v5047 = vunpack.c.h.b16 %v4356
    %v5048 = vunpack.c.l.b16 %v4357
    %v5049 = vunpack.c.h.b16 %v4357
    %v5050 = vunpack.c.l.b16 %v4358
    %v5051 = vunpack.c.h.b16 %v4358
    %v5052 = vunpack.c.l.b16 %v4359
    %v5053 = vunpack.c.h.b16 %v4359
    %v5054 = vunpack.c.l.b16 %v4360
    %v5055 = vunpack.c.h.b16 %v4360
    %v5056 = vunpack.c.l.b16 %v4361
    %v5057 = vunpack.c.h.b16 %v4361
    %v5058 = vunpack.c.l.b16 %v4362
    %v5059 = vunpack.c.h.b16 %v4362
    %v5060 = vunpack.c.l.b16 %v4363
    %v5061 = vunpack.c.h.b16 %v4363
    %v5062 = vunpack.c.l.b16 %v4364
    %v5063 = vunpack.c.h.b16 %v4364
    %v5064 = vunpack.c.l.b16 %v4365
    %v5065 = vunpack.c.h.b16 %v4365
    %v5066 = vunpack.c.l.b16 %v4366
    %v5067 = vunpack.c.h.b16 %v4366
    %v5068 = vunpack.c.l.b16 %v4367
    %v5069 = vunpack.c.h.b16 %v4367
    %v5070 = vunpack.c.l.b16 %v4368
    %v5071 = vunpack.c.h.b16 %v4368
    %v5072 = vunpack.c.l.b16 %v4369
    %v5073 = vunpack.c.h.b16 %v4369
    %v5074 = vunpack.c.l.b16 %v4370
    %v5075 = vunpack.c.h.b16 %v4370
    %v5076 = vunpack.c.l.b16 %v4371
    %v5077 = vunpack.c.h.b16 %v4371
    %v5078 = vunpack.c.l.b16 %v4372
    %v5079 = vunpack.c.h.b16 %v4372
    %v5080 = vunpack.c.l.b16 %v4373
    %v5081 = vunpack.c.h.b16 %v4373
    %v5082 = vunpack.c.l.b16 %v4374
    %v5083 = vunpack.c.h.b16 %v4374
    %v5084 = vunpack.c.l.b16 %v4375
    %v5085 = vunpack.c.h.b16 %v4375
    %v5086 = vunpack.c.l.b16 %v4376
    %v5087 = vunpack.c.h.b16 %v4376
    %v5088 = vunpack.c.l.b16 %v4377
    %v5089 = vunpack.c.h.b16 %v4377
    %v5090 = vunpack.c.l.b16 %v4378
    %v5091 = vunpack.c.h.b16 %v4378
    %v5092 = vunpack.c.l.b16 %v4379
    %v5093 = vunpack.c.h.b16 %v4379
    %v5094 = vunpack.c.l.b16 %v4380
    %v5095 = vunpack.c.h.b16 %v4380
    %v5096 = vunpack.c.l.b16 %v4381
    %v5097 = vunpack.c.h.b16 %v4381
    %v5098 = vunpack.c.l.b16 %v4382
    %v5099 = vunpack.c.h.b16 %v4382
    %v5100 = vunpack.c.l.b16 %v4383
    %v5101 = vunpack.c.h.b16 %v4383
    %v5102 = vunpack.c.l.b16 %v4384
    %v5103 = vunpack.c.h.b16 %v4384
    %v5104 = vunpack.c.l.b16 %v4385
    %v5105 = vunpack.c.h.b16 %v4385
    %v5106 = vunpack.c.l.b16 %v4386
    %v5107 = vunpack.c.h.b16 %v4386
    %v5108 = vunpack.c.l.b16 %v4387
    %v5109 = vunpack.c.h.b16 %v4387
    %v5110 = vunpack.c.l.b16 %v4388
    %v5111 = vunpack.c.h.b16 %v4388
    %v5112 = vunpack.c.l.b16 %v4389
    %v5113 = vunpack.c.h.b16 %v4389
    %v5114 = vunpack.c.l.b16 %v4390
    %v5115 = vunpack.c.h.b16 %v4390
    %v5116 = vunpack.c.l.b16 %v4391
    %v5117 = vunpack.c.h.b16 %v4391
    %v5118 = vunpack.c.l.b16 %v4392
    %v5119 = vunpack.c.h.b16 %v4392
    %v5120 = vunpack.c.l.b16 %v4393
    %v5121 = vunpack.c.h.b16 %v4393
    %v5122 = vunpack.c.l.b16 %v4394
    %v5123 = vunpack.c.h.b16 %v4394
    %v5124 = vunpack.c.l.b16 %v4395
    %v5125 = vunpack.c.h.b16 %v4395
    %v5126 = vunpack.c.l.b16 %v4396
    %v5127 = vunpack.c.h.b16 %v4396
    %v5128 = vunpack.c.l.b16 %v4397
    %v5129 = vunpack.c.h.b16 %v4397
    %v5130 = vunpack.c.l.b16 %v4398
    %v5131 = vunpack.c.h.b16 %v4398
    %v5132 = vunpack.c.l.b16 %v4399
    %v5133 = vunpack.c.h.b16 %v4399
    %v5134 = vunpack.c.l.b16 %v4400
    %v5135 = vunpack.c.h.b16 %v4400
    %v5136 = vunpack.c.l.b16 %v4401
    %v5137 = vunpack.c.h.b16 %v4401
    %v5138 = vunpack.c.l.b16 %v4402
    %v5139 = vunpack.c.h.b16 %v4402
    %v5140 = vunpack.c.l.b16 %v4403
    %v5141 = vunpack.c.h.b16 %v4403
    %v5142 = vunpack.c.l.b16 %v4404
    %v5143 = vunpack.c.h.b16 %v4404
    %v5144 = vunpack.c.l.b16 %v4405
    %v5145 = vunpack.c.h.b16 %v4405
    %v5146 = vunpack.c.l.b16 %v4406
    %v5147 = vunpack.c.h.b16 %v4406
    %v5148 = vunpack.c.l.b16 %v4407
    %v5149 = vunpack.c.h.b16 %v4407
    %v5150 = vunpack.c.l.b16 %v4408
    %v5151 = vunpack.c.h.b16 %v4408
    %v5152 = vunpack.c.l.b16 %v4409
    %v5153 = vunpack.c.h.b16 %v4409
    %v5154 = vunpack.c.l.b16 %v4410
    %v5155 = vunpack.c.h.b16 %v4410
    %v5156 = vunpack.c.l.b16 %v4411
    %v5157 = vunpack.c.h.b16 %v4411
    %v5158 = vunpack.c.l.b16 %v4412
    %v5159 = vunpack.c.h.b16 %v4412
    %v5160 = vunpack.c.l.b16 %v4413
    %v5161 = vunpack.c.h.b16 %v4413
    %v5162 = vunpack.c.l.b16 %v4414
    %v5163 = vunpack.c.h.b16 %v4414
    %v5164 = vunpack.c.l.b16 %v4415
    %v5165 = vunpack.c.h.b16 %v4415
    %v5166 = vunpack.c.l.b16 %v4416
    %v5167 = vunpack.c.h.b16 %v4416
    %v5168 = vunpack.c.l.b16 %v4417
    %v5169 = vunpack.c.h.b16 %v4417
    %v5170 = vunpack.c.l.b16 %v4418
    %v5171 = vunpack.c.h.b16 %v4418
    %v5172 = vunpack.c.l.b16 %v4419
    %v5173 = vunpack.c.h.b16 %v4419
    %v5174 = vunpack.c.l.b16 %v4420
    %v5175 = vunpack.c.h.b16 %v4420
    %v5176 = vunpack.c.l.b16 %v4421
    %v5177 = vunpack.c.h.b16 %v4421
    %v5178 = vunpack.c.l.b16 %v4422
    %v5179 = vunpack.c.h.b16 %v4422
    %v5180 = vunpack.c.l.b16 %v4423
    %v5181 = vunpack.c.h.b16 %v4423
    %v5182 = vunpack.c.l.b16 %v4424
    %v5183 = vunpack.c.h.b16 %v4424
    %v5184 = vunpack.c.l.b16 %v4425
    %v5185 = vunpack.c.h.b16 %v4425
    %v5186 = vunpack.c.l.b16 %v4426
    %v5187 = vunpack.c.h.b16 %v4426
    %v5188 = vunpack.c.l.b16 %v4427
    %v5189 = vunpack.c.h.b16 %v4427
    %v5190 = vunpack.c.l.b16 %v4428
    %v5191 = vunpack.c.h.b16 %v4428
    %v5192 = vunpack.c.l.b16 %v4429
    %v5193 = vunpack.c.h.b16 %v4429
    %v5194 = vunpack.c.l.b16 %v4430
    %v5195 = vunpack.c.h.b16 %v4430
    %v5196 = vunpack.c.l.b16 %v4431
    %v5197 = vunpack.c.h.b16 %v4431
    %v5198 = vunpack.c.l.b16 %v4432
    %v5199 = vunpack.c.h.b16 %v4432
    %v5200 = vunpack.c.l.b16 %v4433
    %v5201 = vunpack.c.h.b16 %v4433
    %v5202 = vunpack.c.l.b16 %v4434
    %v5203 = vunpack.c.h.b16 %v4434
    %v5204 = vunpack.c.l.b16 %v4435
    %v5205 = vunpack.c.h.b16 %v4435
    %v5206 = vunpack.c.l.b16 %v4436
    %v5207 = vunpack.c.h.b16 %v4436
    %v5208 = vunpack.c.l.b16 %v4437
    %v5209 = vunpack.c.h.b16 %v4437
    %v5210 = vunpack.c.l.b16 %v4438
    %v5211 = vunpack.c.h.b16 %v4438
    %v5212 = vunpack.c.l.b16 %v4439
    %v5213 = vunpack.c.h.b16 %v4439
    %v5214 = vunpack.c.l.b16 %v4440
    %v5215 = vunpack.c.h.b16 %v4440
    %v5216 = vunpack.c.l.b16 %v4441
    %v5217 = vunpack.c.h.b16 %v4441
    %v5218 = vunpack.c.l.b16 %v4442
    %v5219 = vunpack.c.h.b16 %v4442
    %v5220 = vunpack.c.l.b16 %v4443
    %v5221 = vunpack.c.h.b16 %v4443
    %v5222 = vpack.c.b16 %v4714, %v4710
    %v5223 = vpack.c.b16 %v4715, %v4711
    %v5224 = vpack.c.b16 %v4716, %v4712
    %v5225 = vpack.c.b16 %v4717, %v4713
    %v5226 = vpack.c.b16 %v4722, %v4718
    %v5227 = vpack.c.b16 %v4723, %v4719
    %v5228 = vpack.c.b16 %v4724, %v4720
    %v5229 = vpack.c.b16 %v4725, %v4721
    %v5230 = vpack.c.b16 %v4730, %v4726
    %v5231 = vpack.c.b16 %v4731, %v4727
    %v5232 = vpack.c.b16 %v4732, %v4728
    %v5233 = vpack.c.b16 %v4733, %v4729
    %v5234 = vpack.c.b16 %v4738, %v4734
    %v5235 = vpack.c.b16 %v4739, %v4735
    %v5236 = vpack.c.b16 %v4740, %v4736
    %v5237 = vpack.c.b16 %v4741, %v4737
    %v5238 = vpack.c.b16 %v4746, %v4742
    %v5239 = vpack.c.b16 %v4747, %v4743
    %v5240 = vpack.c.b16 %v4748, %v4744
    %v5241 = vpack.c.b16 %v4749, %v4745
    %v5242 = vpack.c.b16 %v4754, %v4750
    %v5243 = vpack.c.b16 %v4755, %v4751
    %v5244 = vpack.c.b16 %v4756, %v4752
    %v5245 = vpack.c.b16 %v4757, %v4753
    %v5246 = vpack.c.b16 %v4762, %v4758
    %v5247 = vpack.c.b16 %v4763, %v4759
    %v5248 = vpack.c.b16 %v4764, %v4760
    %v5249 = vpack.c.b16 %v4765, %v4761
    %v5250 = vpack.c.b16 %v4770, %v4766
    %v5251 = vpack.c.b16 %v4771, %v4767
    %v5252 = vpack.c.b16 %v4772, %v4768
    %v5253 = vpack.c.b16 %v4773, %v4769
    %v5254 = vpack.c.b16 %v4778, %v4774
    %v5255 = vpack.c.b16 %v4779, %v4775
    %v5256 = vpack.c.b16 %v4780, %v4776
    %v5257 = vpack.c.b16 %v4781, %v4777
    %v5258 = vpack.c.b16 %v4786, %v4782
    %v5259 = vpack.c.b16 %v4787, %v4783
    %v5260 = vpack.c.b16 %v4788, %v4784
    %v5261 = vpack.c.b16 %v4789, %v4785
    %v5262 = vpack.c.b16 %v4794, %v4790
    %v5263 = vpack.c.b16 %v4795, %v4791
    %v5264 = vpack.c.b16 %v4796, %v4792
    %v5265 = vpack.c.b16 %v4797, %v4793
    %v5266 = vpack.c.b16 %v4802, %v4798
    %v5267 = vpack.c.b16 %v4803, %v4799
    %v5268 = vpack.c.b16 %v4804, %v4800
    %v5269 = vpack.c.b16 %v4805, %v4801
    %v5270 = vpack.c.b16 %v4810, %v4806
    %v5271 = vpack.c.b16 %v4811, %v4807
    %v5272 = vpack.c.b16 %v4812, %v4808
    %v5273 = vpack.c.b16 %v4813, %v4809
    %v5274 = vpack.c.b16 %v4818, %v4814
    %v5275 = vpack.c.b16 %v4819, %v4815
    %v5276 = vpack.c.b16 %v4820, %v4816
    %v5277 = vpack.c.b16 %v4821, %v4817
    %v5278 = vpack.c.b16 %v4826, %v4822
    %v5279 = vpack.c.b16 %v4827, %v4823
    %v5280 = vpack.c.b16 %v4828, %v4824
    %v5281 = vpack.c.b16 %v4829, %v4825
    %v5282 = vpack.c.b16 %v4834, %v4830
    %v5283 = vpack.c.b16 %v4835, %v4831
    %v5284 = vpack.c.b16 %v4836, %v4832
    %v5285 = vpack.c.b16 %v4837, %v4833
    %v5286 = vpack.c.b16 %v4842, %v4838
    %v5287 = vpack.c.b16 %v4843, %v4839
    %v5288 = vpack.c.b16 %v4844, %v4840
    %v5289 = vpack.c.b16 %v4845, %v4841
    %v5290 = vpack.c.b16 %v4850, %v4846
    %v5291 = vpack.c.b16 %v4851, %v4847
    %v5292 = vpack.c.b16 %v4852, %v4848
    %v5293 = vpack.c.b16 %v4853, %v4849
    %v5294 = vpack.c.b16 %v4858, %v4854
    %v5295 = vpack.c.b16 %v4859, %v4855
    %v5296 = vpack.c.b16 %v4860, %v4856
    %v5297 = vpack.c.b16 %v4861, %v4857
    %v5298 = vpack.c.b16 %v4866, %v4862
    %v5299 = vpack.c.b16 %v4867, %v4863
    %v5300 = vpack.c.b16 %v4868, %v4864
    %v5301 = vpack.c.b16 %v4869, %v4865
    %v5302 = vpack.c.b16 %v4874, %v4870
    %v5303 = vpack.c.b16 %v4875, %v4871
    %v5304 = vpack.c.b16 %v4876, %v4872
    %v5305 = vpack.c.b16 %v4877, %v4873
    %v5306 = vpack.c.b16 %v4882, %v4878
    %v5307 = vpack.c.b16 %v4883, %v4879
    %v5308 = vpack.c.b16 %v4884, %v4880
    %v5309 = vpack.c.b16 %v4885, %v4881
    %v5310 = vpack.c.b16 %v4890, %v4886
    %v5311 = vpack.c.b16 %v4891, %v4887
    %v5312 = vpack.c.b16 %v4892, %v4888
    %v5313 = vpack.c.b16 %v4893, %v4889
    %v5314 = vpack.c.b16 %v4898, %v4894
    %v5315 = vpack.c.b16 %v4899, %v4895
    %v5316 = vpack.c.b16 %v4900, %v4896
    %v5317 = vpack.c.b16 %v4901, %v4897
    %v5318 = vpack.c.b16 %v4906, %v4902
    %v5319 = vpack.c.b16 %v4907, %v4903
    %v5320 = vpack.c.b16 %v4908, %v4904
    %v5321 = vpack.c.b16 %v4909, %v4905
    %v5322 = vpack.c.b16 %v4914, %v4910
    %v5323 = vpack.c.b16 %v4915, %v4911
    %v5324 = vpack.c.b16 %v4916, %v4912
    %v5325 = vpack.c.b16 %v4917, %v4913
    %v5326 = vpack.c.b16 %v4922, %v4918
    %v5327 = vpack.c.b16 %v4923, %v4919
    %v5328 = vpack.c.b16 %v4924, %v4920
    %v5329 = vpack.c.b16 %v4925, %v4921
    %v5330 = vpack.c.b16 %v4930, %v4926
    %v5331 = vpack.c.b16 %v4931, %v4927
    %v5332 = vpack.c.b16 %v4932, %v4928
    %v5333 = vpack.c.b16 %v4933, %v4929
    %v5334 = vpack.c.b16 %v4938, %v4934
    %v5335 = vpack.c.b16 %v4939, %v4935
    %v5336 = vpack.c.b16 %v4940, %v4936
    %v5337 = vpack.c.b16 %v4941, %v4937
    %v5338 = vpack.c.b16 %v4946, %v4942
    %v5339 = vpack.c.b16 %v4947, %v4943
    %v5340 = vpack.c.b16 %v4948, %v4944
    %v5341 = vpack.c.b16 %v4949, %v4945
    %v5342 = vpack.c.b16 %v4954, %v4950
    %v5343 = vpack.c.b16 %v4955, %v4951
    %v5344 = vpack.c.b16 %v4956, %v4952
    %v5345 = vpack.c.b16 %v4957, %v4953
    %v5346 = vpack.c.b16 %v4962, %v4958
    %v5347 = vpack.c.b16 %v4963, %v4959
    %v5348 = vpack.c.b16 %v4964, %v4960
    %v5349 = vpack.c.b16 %v4965, %v4961
    %v5350 = vpack.c.b16 %v4970, %v4966
    %v5351 = vpack.c.b16 %v4971, %v4967
    %v5352 = vpack.c.b16 %v4972, %v4968
    %v5353 = vpack.c.b16 %v4973, %v4969
    %v5354 = vpack.c.b16 %v4978, %v4974
    %v5355 = vpack.c.b16 %v4979, %v4975
    %v5356 = vpack.c.b16 %v4980, %v4976
    %v5357 = vpack.c.b16 %v4981, %v4977
    %v5358 = vpack.c.b16 %v4986, %v4982
    %v5359 = vpack.c.b16 %v4987, %v4983
    %v5360 = vpack.c.b16 %v4988, %v4984
    %v5361 = vpack.c.b16 %v4989, %v4985
    %v5362 = vpack.c.b16 %v4994, %v4990
    %v5363 = vpack.c.b16 %v4995, %v4991
    %v5364 = vpack.c.b16 %v4996, %v4992
    %v5365 = vpack.c.b16 %v4997, %v4993
    %v5366 = vpack.c.b16 %v5002, %v4998
    %v5367 = vpack.c.b16 %v5003, %v4999
    %v5368 = vpack.c.b16 %v5004, %v5000
    %v5369 = vpack.c.b16 %v5005, %v5001
    %v5370 = vpack.c.b16 %v5010, %v5006
    %v5371 = vpack.c.b16 %v5011, %v5007
    %v5372 = vpack.c.b16 %v5012, %v5008
    %v5373 = vpack.c.b16 %v5013, %v5009
    %v5374 = vpack.c.b16 %v5018, %v5014
    %v5375 = vpack.c.b16 %v5019, %v5015
    %v5376 = vpack.c.b16 %v5020, %v5016
    %v5377 = vpack.c.b16 %v5021, %v5017
    %v5378 = vpack.c.b16 %v5026, %v5022
    %v5379 = vpack.c.b16 %v5027, %v5023
    %v5380 = vpack.c.b16 %v5028, %v5024
    %v5381 = vpack.c.b16 %v5029, %v5025
    %v5382 = vpack.c.b16 %v5034, %v5030
    %v5383 = vpack.c.b16 %v5035, %v5031
    %v5384 = vpack.c.b16 %v5036, %v5032
    %v5385 = vpack.c.b16 %v5037, %v5033
    %v5386 = vpack.c.b16 %v5042, %v5038
    %v5387 = vpack.c.b16 %v5043, %v5039
    %v5388 = vpack.c.b16 %v5044, %v5040
    %v5389 = vpack.c.b16 %v5045, %v5041
    %v5390 = vpack.c.b16 %v5050, %v5046
    %v5391 = vpack.c.b16 %v5051, %v5047
    %v5392 = vpack.c.b16 %v5052, %v5048
    %v5393 = vpack.c.b16 %v5053, %v5049
    %v5394 = vpack.c.b16 %v5058, %v5054
    %v5395 = vpack.c.b16 %v5059, %v5055
    %v5396 = vpack.c.b16 %v5060, %v5056
    %v5397 = vpack.c.b16 %v5061, %v5057
    %v5398 = vpack.c.b16 %v5066, %v5062
    %v5399 = vpack.c.b16 %v5067, %v5063
    %v5400 = vpack.c.b16 %v5068, %v5064
    %v5401 = vpack.c.b16 %v5069, %v5065
    %v5402 = vpack.c.b16 %v5074, %v5070
    %v5403 = vpack.c.b16 %v5075, %v5071
    %v5404 = vpack.c.b16 %v5076, %v5072
    %v5405 = vpack.c.b16 %v5077, %v5073
    %v5406 = vpack.c.b16 %v5082, %v5078
    %v5407 = vpack.c.b16 %v5083, %v5079
    %v5408 = vpack.c.b16 %v5084, %v5080
    %v5409 = vpack.c.b16 %v5085, %v5081
    %v5410 = vpack.c.b16 %v5090, %v5086
    %v5411 = vpack.c.b16 %v5091, %v5087
    %v5412 = vpack.c.b16 %v5092, %v5088
    %v5413 = vpack.c.b16 %v5093, %v5089
    %v5414 = vpack.c.b16 %v5098, %v5094
    %v5415 = vpack.c.b16 %v5099, %v5095
    %v5416 = vpack.c.b16 %v5100, %v5096
    %v5417 = vpack.c.b16 %v5101, %v5097
    %v5418 = vpack.c.b16 %v5106, %v5102
    %v5419 = vpack.c.b16 %v5107, %v5103
    %v5420 = vpack.c.b16 %v5108, %v5104
    %v5421 = vpack.c.b16 %v5109, %v5105
    %v5422 = vpack.c.b16 %v5114, %v5110
    %v5423 = vpack.c.b16 %v5115, %v5111
    %v5424 = vpack.c.b16 %v5116, %v5112
    %v5425 = vpack.c.b16 %v5117, %v5113
    %v5426 = vpack.c.b16 %v5122, %v5118
    %v5427 = vpack.c.b16 %v5123, %v5119
    %v5428 = vpack.c.b16 %v5124, %v5120
    %v5429 = vpack.c.b16 %v5125, %v5121
    %v5430 = vpack.c.b16 %v5130, %v5126
    %v5431 = vpack.c.b16 %v5131, %v5127
    %v5432 = vpack.c.b16 %v5132, %v5128
    %v5433 = vpack.c.b16 %v5133, %v5129
    %v5434 = vpack.c.b16 %v5138, %v5134
    %v5435 = vpack.c.b16 %v5139, %v5135
    %v5436 = vpack.c.b16 %v5140, %v5136
    %v5437 = vpack.c.b16 %v5141, %v5137
    %v5438 = vpack.c.b16 %v5146, %v5142
    %v5439 = vpack.c.b16 %v5147, %v5143
    %v5440 = vpack.c.b16 %v5148, %v5144
    %v5441 = vpack.c.b16 %v5149, %v5145
    %v5442 = vpack.c.b16 %v5154, %v5150
    %v5443 = vpack.c.b16 %v5155, %v5151
    %v5444 = vpack.c.b16 %v5156, %v5152
    %v5445 = vpack.c.b16 %v5157, %v5153
    %v5446 = vpack.c.b16 %v5162, %v5158
    %v5447 = vpack.c.b16 %v5163, %v5159
    %v5448 = vpack.c.b16 %v5164, %v5160
    %v5449 = vpack.c.b16 %v5165, %v5161
    %v5450 = vpack.c.b16 %v5170, %v5166
    %v5451 = vpack.c.b16 %v5171, %v5167
    %v5452 = vpack.c.b16 %v5172, %v5168
    %v5453 = vpack.c.b16 %v5173, %v5169
    %v5454 = vpack.c.b16 %v5178, %v5174
    %v5455 = vpack.c.b16 %v5179, %v5175
    %v5456 = vpack.c.b16 %v5180, %v5176
    %v5457 = vpack.c.b16 %v5181, %v5177
    %v5458 = vpack.c.b16 %v5186, %v5182
    %v5459 = vpack.c.b16 %v5187, %v5183
    %v5460 = vpack.c.b16 %v5188, %v5184
    %v5461 = vpack.c.b16 %v5189, %v5185
    %v5462 = vpack.c.b16 %v5194, %v5190
    %v5463 = vpack.c.b16 %v5195, %v5191
    %v5464 = vpack.c.b16 %v5196, %v5192
    %v5465 = vpack.c.b16 %v5197, %v5193
    %v5466 = vpack.c.b16 %v5202, %v5198
    %v5467 = vpack.c.b16 %v5203, %v5199
    %v5468 = vpack.c.b16 %v5204, %v5200
    %v5469 = vpack.c.b16 %v5205, %v5201
    %v5470 = vpack.c.b16 %v5210, %v5206
    %v5471 = vpack.c.b16 %v5211, %v5207
    %v5472 = vpack.c.b16 %v5212, %v5208
    %v5473 = vpack.c.b16 %v5213, %v5209
    %v5474 = vpack.c.b16 %v5218, %v5214
    %v5475 = vpack.c.b16 %v5219, %v5215
    %v5476 = vpack.c.b16 %v5220, %v5216
    %v5477 = vpack.c.b16 %v5221, %v5217
    %5734 = vmatpush.bf16.msra.mxu0 %v5250
    %5735 = vmatpush.bf16.msra.mxu0 %v5246
    %5736 = vmatpush.bf16.msra.mxu0 %v5242
    %5737 = vmatpush.bf16.msra.mxu0 %v5238
    %5738 = vmatpush.bf16.msra.mxu0 %v5234
    %5739 = vmatpush.bf16.msra.mxu0 %v5230
    %5740 = vmatpush.bf16.msra.mxu0 %v5226
    %5741 = vmatpush.bf16.msra.mxu0 %v5222
    %5742 = vmatmul.bf16.gmra.mxu0 %v4180
    %v5743 = vpop.f32.mrf.mxu0
    %v5744 = vadd.f32 %v4446, %v5743
    %v5745 = vpop.f32.mrf.mxu0
    %v5746 = vadd.f32 %v4446, %v5745
    %5747 = vdwg.mxu0
    %5748 = vmatpush.bf16.msra.mxu0 %v5282
    %5749 = vmatpush.bf16.msra.mxu0 %v5278
    %5750 = vmatpush.bf16.msra.mxu0 %v5274
    %5751 = vmatpush.bf16.msra.mxu0 %v5270
    %5752 = vmatpush.bf16.msra.mxu0 %v5266
    %5753 = vmatpush.bf16.msra.mxu0 %v5262
    %5754 = vmatpush.bf16.msra.mxu0 %v5258
    %5755 = vmatpush.bf16.msra.mxu0 %v5254
    %5756 = vmatmul.bf16.gmra.mxu0 %v4181
    %v5757 = vpop.f32.mrf.mxu0
    %v5758 = vadd.f32 %v5744, %v5757
    %v5759 = vpop.f32.mrf.mxu0
    %v5760 = vadd.f32 %v5746, %v5759
    %5761 = vdwg.mxu0
    %5762 = vmatpush.bf16.msra.mxu0 %v5314
    %5763 = vmatpush.bf16.msra.mxu0 %v5310
    %5764 = vmatpush.bf16.msra.mxu0 %v5306
    %5765 = vmatpush.bf16.msra.mxu0 %v5302
    %5766 = vmatpush.bf16.msra.mxu0 %v5298
    %5767 = vmatpush.bf16.msra.mxu0 %v5294
    %5768 = vmatpush.bf16.msra.mxu0 %v5290
    %5769 = vmatpush.bf16.msra.mxu0 %v5286
    %5770 = vmatmul.bf16.gmra.mxu0 %v4182
    %v5771 = vpop.f32.mrf.mxu0
    %v5772 = vadd.f32 %v5758, %v5771
    %v5773 = vpop.f32.mrf.mxu0
    %v5774 = vadd.f32 %v5760, %v5773
    %5775 = vdwg.mxu0
    %5776 = vmatpush.bf16.msra.mxu0 %v5346
    %5777 = vmatpush.bf16.msra.mxu0 %v5342
    %5778 = vmatpush.bf16.msra.mxu0 %v5338
    %5779 = vmatpush.bf16.msra.mxu0 %v5334
    %5780 = vmatpush.bf16.msra.mxu0 %v5330
    %5781 = vmatpush.bf16.msra.mxu0 %v5326
    %5782 = vmatpush.bf16.msra.mxu0 %v5322
    %5783 = vmatpush.bf16.msra.mxu0 %v5318
    %5784 = vmatmul.bf16.gmra.mxu0 %v4183
    %v5785 = vpop.f32.mrf.mxu0
    %v5786 = vadd.f32 %v5772, %v5785
    %v5787 = vpop.f32.mrf.mxu0
    %v5788 = vadd.f32 %v5774, %v5787
    %5789 = vdwg.mxu0
    %5790 = vmatpush.bf16.msra.mxu0 %v5378
    %5791 = vmatpush.bf16.msra.mxu0 %v5374
    %5792 = vmatpush.bf16.msra.mxu0 %v5370
    %5793 = vmatpush.bf16.msra.mxu0 %v5366
    %5794 = vmatpush.bf16.msra.mxu0 %v5362
    %5795 = vmatpush.bf16.msra.mxu0 %v5358
    %5796 = vmatpush.bf16.msra.mxu0 %v5354
    %5797 = vmatpush.bf16.msra.mxu0 %v5350
    %5798 = vmatmul.bf16.gmra.mxu0 %v4184
    %v5799 = vpop.f32.mrf.mxu0
    %v5800 = vadd.f32 %v5786, %v5799
    %v5801 = vpop.f32.mrf.mxu0
    %v5802 = vadd.f32 %v5788, %v5801
    %5803 = vdwg.mxu0
    %5804 = vmatpush.bf16.msra.mxu0 %v5410
    %5805 = vmatpush.bf16.msra.mxu0 %v5406
    %5806 = vmatpush.bf16.msra.mxu0 %v5402
    %5807 = vmatpush.bf16.msra.mxu0 %v5398
    %5808 = vmatpush.bf16.msra.mxu0 %v5394
    %5809 = vmatpush.bf16.msra.mxu0 %v5390
    %5810 = vmatpush.bf16.msra.mxu0 %v5386
    %5811 = vmatpush.bf16.msra.mxu0 %v5382
    %5812 = vmatmul.bf16.gmra.mxu0 %v4185
    %v5813 = vpop.f32.mrf.mxu0
    %v5814 = vadd.f32 %v5800, %v5813
    %v5815 = vpop.f32.mrf.mxu0
    %v5816 = vadd.f32 %v5802, %v5815
    %5817 = vdwg.mxu0
    %5818 = vmatpush.bf16.msra.mxu0 %v5442
    %5819 = vmatpush.bf16.msra.mxu0 %v5438
    %5820 = vmatpush.bf16.msra.mxu0 %v5434
    %5821 = vmatpush.bf16.msra.mxu0 %v5430
    %5822 = vmatpush.bf16.msra.mxu0 %v5426
    %5823 = vmatpush.bf16.msra.mxu0 %v5422
    %5824 = vmatpush.bf16.msra.mxu0 %v5418
    %5825 = vmatpush.bf16.msra.mxu0 %v5414
    %5826 = vmatmul.bf16.gmra.mxu0 %v4186
    %v5827 = vpop.f32.mrf.mxu0
    %v5828 = vadd.f32 %v5814, %v5827
    %v5829 = vpop.f32.mrf.mxu0
    %v5830 = vadd.f32 %v5816, %v5829
    %5831 = vdwg.mxu0
    %5832 = vmatpush.bf16.msra.mxu0 %v5474
    %5833 = vmatpush.bf16.msra.mxu0 %v5470
    %5834 = vmatpush.bf16.msra.mxu0 %v5466
    %5835 = vmatpush.bf16.msra.mxu0 %v5462
    %5836 = vmatpush.bf16.msra.mxu0 %v5458
    %5837 = vmatpush.bf16.msra.mxu0 %v5454
    %5838 = vmatpush.bf16.msra.mxu0 %v5450
    %5839 = vmatpush.bf16.msra.mxu0 %v5446
    %5840 = vmatmul.bf16.gmra.mxu0 %v4187
    %v5841 = vpop.f32.mrf.mxu0
    %v5842 = vadd.f32 %v5828, %v5841
    %v5843 = vpop.f32.mrf.mxu0
    %v5844 = vadd.f32 %v5830, %v5843
    %5845 = vdwg.mxu0
    %5846 = vmatpush.bf16.msra.mxu0 %v5251
    %5847 = vmatpush.bf16.msra.mxu0 %v5247
    %5848 = vmatpush.bf16.msra.mxu0 %v5243
    %5849 = vmatpush.bf16.msra.mxu0 %v5239
    %5850 = vmatpush.bf16.msra.mxu0 %v5235
    %5851 = vmatpush.bf16.msra.mxu0 %v5231
    %5852 = vmatpush.bf16.msra.mxu0 %v5227
    %5853 = vmatpush.bf16.msra.mxu0 %v5223
    %5854 = vmatmul.bf16.gmra.mxu0 %v4180
    %v5855 = vpop.f32.mrf.mxu0
    %v5856 = vadd.f32 %v4447, %v5855
    %v5857 = vpop.f32.mrf.mxu0
    %v5858 = vadd.f32 %v4447, %v5857
    %5859 = vdwg.mxu0
    %5860 = vmatpush.bf16.msra.mxu0 %v5283
    %5861 = vmatpush.bf16.msra.mxu0 %v5279
    %5862 = vmatpush.bf16.msra.mxu0 %v5275
    %5863 = vmatpush.bf16.msra.mxu0 %v5271
    %5864 = vmatpush.bf16.msra.mxu0 %v5267
    %5865 = vmatpush.bf16.msra.mxu0 %v5263
    %5866 = vmatpush.bf16.msra.mxu0 %v5259
    %5867 = vmatpush.bf16.msra.mxu0 %v5255
    %5868 = vmatmul.bf16.gmra.mxu0 %v4181
    %v5869 = vpop.f32.mrf.mxu0
    %v5870 = vadd.f32 %v5856, %v5869
    %v5871 = vpop.f32.mrf.mxu0
    %v5872 = vadd.f32 %v5858, %v5871
    %5873 = vdwg.mxu0
    %5874 = vmatpush.bf16.msra.mxu0 %v5315
    %5875 = vmatpush.bf16.msra.mxu0 %v5311
    %5876 = vmatpush.bf16.msra.mxu0 %v5307
    %5877 = vmatpush.bf16.msra.mxu0 %v5303
    %5878 = vmatpush.bf16.msra.mxu0 %v5299
    %5879 = vmatpush.bf16.msra.mxu0 %v5295
    %5880 = vmatpush.bf16.msra.mxu0 %v5291
    %5881 = vmatpush.bf16.msra.mxu0 %v5287
    %5882 = vmatmul.bf16.gmra.mxu0 %v4182
    %v5883 = vpop.f32.mrf.mxu0
    %v5884 = vadd.f32 %v5870, %v5883
    %v5885 = vpop.f32.mrf.mxu0
    %v5886 = vadd.f32 %v5872, %v5885
    %5887 = vdwg.mxu0
    %5888 = vmatpush.bf16.msra.mxu0 %v5347
    %5889 = vmatpush.bf16.msra.mxu0 %v5343
    %5890 = vmatpush.bf16.msra.mxu0 %v5339
    %5891 = vmatpush.bf16.msra.mxu0 %v5335
    %5892 = vmatpush.bf16.msra.mxu0 %v5331
    %5893 = vmatpush.bf16.msra.mxu0 %v5327
    %5894 = vmatpush.bf16.msra.mxu0 %v5323
    %5895 = vmatpush.bf16.msra.mxu0 %v5319
    %5896 = vmatmul.bf16.gmra.mxu0 %v4183
    %v5897 = vpop.f32.mrf.mxu0
    %v5898 = vadd.f32 %v5884, %v5897
    %v5899 = vpop.f32.mrf.mxu0
    %v5900 = vadd.f32 %v5886, %v5899
    %5901 = vdwg.mxu0
    %5902 = vmatpush.bf16.msra.mxu0 %v5379
    %5903 = vmatpush.bf16.msra.mxu0 %v5375
    %5904 = vmatpush.bf16.msra.mxu0 %v5371
    %5905 = vmatpush.bf16.msra.mxu0 %v5367
    %5906 = vmatpush.bf16.msra.mxu0 %v5363
    %5907 = vmatpush.bf16.msra.mxu0 %v5359
    %5908 = vmatpush.bf16.msra.mxu0 %v5355
    %5909 = vmatpush.bf16.msra.mxu0 %v5351
    %5910 = vmatmul.bf16.gmra.mxu0 %v4184
    %v5911 = vpop.f32.mrf.mxu0
    %v5912 = vadd.f32 %v5898, %v5911
    %v5913 = vpop.f32.mrf.mxu0
    %v5914 = vadd.f32 %v5900, %v5913
    %5915 = vdwg.mxu0
    %5916 = vmatpush.bf16.msra.mxu0 %v5411
    %5917 = vmatpush.bf16.msra.mxu0 %v5407
    %5918 = vmatpush.bf16.msra.mxu0 %v5403
    %5919 = vmatpush.bf16.msra.mxu0 %v5399
    %5920 = vmatpush.bf16.msra.mxu0 %v5395
    %5921 = vmatpush.bf16.msra.mxu0 %v5391
    %5922 = vmatpush.bf16.msra.mxu0 %v5387
    %5923 = vmatpush.bf16.msra.mxu0 %v5383
    %5924 = vmatmul.bf16.gmra.mxu0 %v4185
    %v5925 = vpop.f32.mrf.mxu0
    %v5926 = vadd.f32 %v5912, %v5925
    %v5927 = vpop.f32.mrf.mxu0
    %v5928 = vadd.f32 %v5914, %v5927
    %5929 = vdwg.mxu0
    %5930 = vmatpush.bf16.msra.mxu0 %v5443
    %5931 = vmatpush.bf16.msra.mxu0 %v5439
    %5932 = vmatpush.bf16.msra.mxu0 %v5435
    %5933 = vmatpush.bf16.msra.mxu0 %v5431
    %5934 = vmatpush.bf16.msra.mxu0 %v5427
    %5935 = vmatpush.bf16.msra.mxu0 %v5423
    %5936 = vmatpush.bf16.msra.mxu0 %v5419
    %5937 = vmatpush.bf16.msra.mxu0 %v5415
    %5938 = vmatmul.bf16.gmra.mxu0 %v4186
    %v5939 = vpop.f32.mrf.mxu0
    %v5940 = vadd.f32 %v5926, %v5939
    %v5941 = vpop.f32.mrf.mxu0
    %v5942 = vadd.f32 %v5928, %v5941
    %5943 = vdwg.mxu0
    %5944 = vmatpush.bf16.msra.mxu0 %v5475
    %5945 = vmatpush.bf16.msra.mxu0 %v5471
    %5946 = vmatpush.bf16.msra.mxu0 %v5467
    %5947 = vmatpush.bf16.msra.mxu0 %v5463
    %5948 = vmatpush.bf16.msra.mxu0 %v5459
    %5949 = vmatpush.bf16.msra.mxu0 %v5455
    %5950 = vmatpush.bf16.msra.mxu0 %v5451
    %5951 = vmatpush.bf16.msra.mxu0 %v5447
    %5952 = vmatmul.bf16.gmra.mxu0 %v4187
    %v5953 = vpop.f32.mrf.mxu0
    %v5954 = vadd.f32 %v5940, %v5953
    %v5955 = vpop.f32.mrf.mxu0
    %v5956 = vadd.f32 %v5942, %v5955
    %5957 = vdwg.mxu0
    %5958 = vmatpush.bf16.msra.mxu0 %v5252
    %5959 = vmatpush.bf16.msra.mxu0 %v5248
    %5960 = vmatpush.bf16.msra.mxu0 %v5244
    %5961 = vmatpush.bf16.msra.mxu0 %v5240
    %5962 = vmatpush.bf16.msra.mxu0 %v5236
    %5963 = vmatpush.bf16.msra.mxu0 %v5232
    %5964 = vmatpush.bf16.msra.mxu0 %v5228
    %5965 = vmatpush.bf16.msra.mxu0 %v5224
    %5966 = vmatmul.bf16.gmra.mxu0 %v4180
    %v5967 = vpop.f32.mrf.mxu0
    %v5968 = vadd.f32 %v4448, %v5967
    %v5969 = vpop.f32.mrf.mxu0
    %v5970 = vadd.f32 %v4448, %v5969
    %5971 = vdwg.mxu0
    %5972 = vmatpush.bf16.msra.mxu0 %v5284
    %5973 = vmatpush.bf16.msra.mxu0 %v5280
    %5974 = vmatpush.bf16.msra.mxu0 %v5276
    %5975 = vmatpush.bf16.msra.mxu0 %v5272
    %5976 = vmatpush.bf16.msra.mxu0 %v5268
    %5977 = vmatpush.bf16.msra.mxu0 %v5264
    %5978 = vmatpush.bf16.msra.mxu0 %v5260
    %5979 = vmatpush.bf16.msra.mxu0 %v5256
    %5980 = vmatmul.bf16.gmra.mxu0 %v4181
    %v5981 = vpop.f32.mrf.mxu0
    %v5982 = vadd.f32 %v5968, %v5981
    %v5983 = vpop.f32.mrf.mxu0
    %v5984 = vadd.f32 %v5970, %v5983
    %5985 = vdwg.mxu0
    %5986 = vmatpush.bf16.msra.mxu0 %v5316
    %5987 = vmatpush.bf16.msra.mxu0 %v5312
    %5988 = vmatpush.bf16.msra.mxu0 %v5308
    %5989 = vmatpush.bf16.msra.mxu0 %v5304
    %5990 = vmatpush.bf16.msra.mxu0 %v5300
    %5991 = vmatpush.bf16.msra.mxu0 %v5296
    %5992 = vmatpush.bf16.msra.mxu0 %v5292
    %5993 = vmatpush.bf16.msra.mxu0 %v5288
    %5994 = vmatmul.bf16.gmra.mxu0 %v4182
    %v5995 = vpop.f32.mrf.mxu0
    %v5996 = vadd.f32 %v5982, %v5995
    %v5997 = vpop.f32.mrf.mxu0
    %v5998 = vadd.f32 %v5984, %v5997
    %5999 = vdwg.mxu0
    %6000 = vmatpush.bf16.msra.mxu0 %v5348
    %6001 = vmatpush.bf16.msra.mxu0 %v5344
    %6002 = vmatpush.bf16.msra.mxu0 %v5340
    %6003 = vmatpush.bf16.msra.mxu0 %v5336
    %6004 = vmatpush.bf16.msra.mxu0 %v5332
    %6005 = vmatpush.bf16.msra.mxu0 %v5328
    %6006 = vmatpush.bf16.msra.mxu0 %v5324
    %6007 = vmatpush.bf16.msra.mxu0 %v5320
    %6008 = vmatmul.bf16.gmra.mxu0 %v4183
    %v6009 = vpop.f32.mrf.mxu0
    %v6010 = vadd.f32 %v5996, %v6009
    %v6011 = vpop.f32.mrf.mxu0
    %v6012 = vadd.f32 %v5998, %v6011
    %6013 = vdwg.mxu0
    %6014 = vmatpush.bf16.msra.mxu0 %v5380
    %6015 = vmatpush.bf16.msra.mxu0 %v5376
    %6016 = vmatpush.bf16.msra.mxu0 %v5372
    %6017 = vmatpush.bf16.msra.mxu0 %v5368
    %6018 = vmatpush.bf16.msra.mxu0 %v5364
    %6019 = vmatpush.bf16.msra.mxu0 %v5360
    %6020 = vmatpush.bf16.msra.mxu0 %v5356
    %6021 = vmatpush.bf16.msra.mxu0 %v5352
    %6022 = vmatmul.bf16.gmra.mxu0 %v4184
    %v6023 = vpop.f32.mrf.mxu0
    %v6024 = vadd.f32 %v6010, %v6023
    %v6025 = vpop.f32.mrf.mxu0
    %v6026 = vadd.f32 %v6012, %v6025
    %6027 = vdwg.mxu0
    %6028 = vmatpush.bf16.msra.mxu0 %v5412
    %6029 = vmatpush.bf16.msra.mxu0 %v5408
    %6030 = vmatpush.bf16.msra.mxu0 %v5404
    %6031 = vmatpush.bf16.msra.mxu0 %v5400
    %6032 = vmatpush.bf16.msra.mxu0 %v5396
    %6033 = vmatpush.bf16.msra.mxu0 %v5392
    %6034 = vmatpush.bf16.msra.mxu0 %v5388
    %6035 = vmatpush.bf16.msra.mxu0 %v5384
    %6036 = vmatmul.bf16.gmra.mxu0 %v4185
    %v6037 = vpop.f32.mrf.mxu0
    %v6038 = vadd.f32 %v6024, %v6037
    %v6039 = vpop.f32.mrf.mxu0
    %v6040 = vadd.f32 %v6026, %v6039
    %6041 = vdwg.mxu0
    %6042 = vmatpush.bf16.msra.mxu0 %v5444
    %6043 = vmatpush.bf16.msra.mxu0 %v5440
    %6044 = vmatpush.bf16.msra.mxu0 %v5436
    %6045 = vmatpush.bf16.msra.mxu0 %v5432
    %6046 = vmatpush.bf16.msra.mxu0 %v5428
    %6047 = vmatpush.bf16.msra.mxu0 %v5424
    %6048 = vmatpush.bf16.msra.mxu0 %v5420
    %6049 = vmatpush.bf16.msra.mxu0 %v5416
    %6050 = vmatmul.bf16.gmra.mxu0 %v4186
    %v6051 = vpop.f32.mrf.mxu0
    %v6052 = vadd.f32 %v6038, %v6051
    %v6053 = vpop.f32.mrf.mxu0
    %v6054 = vadd.f32 %v6040, %v6053
    %6055 = vdwg.mxu0
    %6056 = vmatpush.bf16.msra.mxu0 %v5476
    %6057 = vmatpush.bf16.msra.mxu0 %v5472
    %6058 = vmatpush.bf16.msra.mxu0 %v5468
    %6059 = vmatpush.bf16.msra.mxu0 %v5464
    %6060 = vmatpush.bf16.msra.mxu0 %v5460
    %6061 = vmatpush.bf16.msra.mxu0 %v5456
    %6062 = vmatpush.bf16.msra.mxu0 %v5452
    %6063 = vmatpush.bf16.msra.mxu0 %v5448
    %6064 = vmatmul.bf16.gmra.mxu0 %v4187
    %v6065 = vpop.f32.mrf.mxu0
    %v6066 = vadd.f32 %v6052, %v6065
    %v6067 = vpop.f32.mrf.mxu0
    %v6068 = vadd.f32 %v6054, %v6067
    %6069 = vdwg.mxu0
    %6070 = vmatpush.bf16.msra.mxu0 %v5253
    %6071 = vmatpush.bf16.msra.mxu0 %v5249
    %6072 = vmatpush.bf16.msra.mxu0 %v5245
    %6073 = vmatpush.bf16.msra.mxu0 %v5241
    %6074 = vmatpush.bf16.msra.mxu0 %v5237
    %6075 = vmatpush.bf16.msra.mxu0 %v5233
    %6076 = vmatpush.bf16.msra.mxu0 %v5229
    %6077 = vmatpush.bf16.msra.mxu0 %v5225
    %6078 = vmatmul.bf16.gmra.mxu0 %v4180
    %v6079 = vpop.f32.mrf.mxu0
    %v6080 = vadd.f32 %v4449, %v6079
    %v6081 = vpop.f32.mrf.mxu0
    %v6082 = vadd.f32 %v4449, %v6081
    %6083 = vdwg.mxu0
    %6084 = vmatpush.bf16.msra.mxu0 %v5285
    %6085 = vmatpush.bf16.msra.mxu0 %v5281
    %6086 = vmatpush.bf16.msra.mxu0 %v5277
    %6087 = vmatpush.bf16.msra.mxu0 %v5273
    %6088 = vmatpush.bf16.msra.mxu0 %v5269
    %6089 = vmatpush.bf16.msra.mxu0 %v5265
    %6090 = vmatpush.bf16.msra.mxu0 %v5261
    %6091 = vmatpush.bf16.msra.mxu0 %v5257
    %6092 = vmatmul.bf16.gmra.mxu0 %v4181
    %v6093 = vpop.f32.mrf.mxu0
    %v6094 = vadd.f32 %v6080, %v6093
    %v6095 = vpop.f32.mrf.mxu0
    %v6096 = vadd.f32 %v6082, %v6095
    %6097 = vdwg.mxu0
    %6098 = vmatpush.bf16.msra.mxu0 %v5317
    %6099 = vmatpush.bf16.msra.mxu0 %v5313
    %6100 = vmatpush.bf16.msra.mxu0 %v5309
    %6101 = vmatpush.bf16.msra.mxu0 %v5305
    %6102 = vmatpush.bf16.msra.mxu0 %v5301
    %6103 = vmatpush.bf16.msra.mxu0 %v5297
    %6104 = vmatpush.bf16.msra.mxu0 %v5293
    %6105 = vmatpush.bf16.msra.mxu0 %v5289
    %6106 = vmatmul.bf16.gmra.mxu0 %v4182
    %v6107 = vpop.f32.mrf.mxu0
    %v6108 = vadd.f32 %v6094, %v6107
    %v6109 = vpop.f32.mrf.mxu0
    %v6110 = vadd.f32 %v6096, %v6109
    %6111 = vdwg.mxu0
    %6112 = vmatpush.bf16.msra.mxu0 %v5349
    %6113 = vmatpush.bf16.msra.mxu0 %v5345
    %6114 = vmatpush.bf16.msra.mxu0 %v5341
    %6115 = vmatpush.bf16.msra.mxu0 %v5337
    %6116 = vmatpush.bf16.msra.mxu0 %v5333
    %6117 = vmatpush.bf16.msra.mxu0 %v5329
    %6118 = vmatpush.bf16.msra.mxu0 %v5325
    %6119 = vmatpush.bf16.msra.mxu0 %v5321
    %6120 = vmatmul.bf16.gmra.mxu0 %v4183
    %v6121 = vpop.f32.mrf.mxu0
    %v6122 = vadd.f32 %v6108, %v6121
    %v6123 = vpop.f32.mrf.mxu0
    %v6124 = vadd.f32 %v6110, %v6123
    %6125 = vdwg.mxu0
    %6126 = vmatpush.bf16.msra.mxu0 %v5381
    %6127 = vmatpush.bf16.msra.mxu0 %v5377
    %6128 = vmatpush.bf16.msra.mxu0 %v5373
    %6129 = vmatpush.bf16.msra.mxu0 %v5369
    %6130 = vmatpush.bf16.msra.mxu0 %v5365
    %6131 = vmatpush.bf16.msra.mxu0 %v5361
    %6132 = vmatpush.bf16.msra.mxu0 %v5357
    %6133 = vmatpush.bf16.msra.mxu0 %v5353
    %6134 = vmatmul.bf16.gmra.mxu0 %v4184
    %v6135 = vpop.f32.mrf.mxu0
    %v6136 = vadd.f32 %v6122, %v6135
    %v6137 = vpop.f32.mrf.mxu0
    %v6138 = vadd.f32 %v6124, %v6137
    %6139 = vdwg.mxu0
    %6140 = vmatpush.bf16.msra.mxu0 %v5413
    %6141 = vmatpush.bf16.msra.mxu0 %v5409
    %6142 = vmatpush.bf16.msra.mxu0 %v5405
    %6143 = vmatpush.bf16.msra.mxu0 %v5401
    %6144 = vmatpush.bf16.msra.mxu0 %v5397
    %6145 = vmatpush.bf16.msra.mxu0 %v5393
    %6146 = vmatpush.bf16.msra.mxu0 %v5389
    %6147 = vmatpush.bf16.msra.mxu0 %v5385
    %6148 = vmatmul.bf16.gmra.mxu0 %v4185
    %v6149 = vpop.f32.mrf.mxu0
    %v6150 = vadd.f32 %v6136, %v6149
    %v6151 = vpop.f32.mrf.mxu0
    %v6152 = vadd.f32 %v6138, %v6151
    %6153 = vdwg.mxu0
    %6154 = vmatpush.bf16.msra.mxu0 %v5445
    %6155 = vmatpush.bf16.msra.mxu0 %v5441
    %6156 = vmatpush.bf16.msra.mxu0 %v5437
    %6157 = vmatpush.bf16.msra.mxu0 %v5433
    %6158 = vmatpush.bf16.msra.mxu0 %v5429
    %6159 = vmatpush.bf16.msra.mxu0 %v5425
    %6160 = vmatpush.bf16.msra.mxu0 %v5421
    %6161 = vmatpush.bf16.msra.mxu0 %v5417
    %6162 = vmatmul.bf16.gmra.mxu0 %v4186
    %v6163 = vpop.f32.mrf.mxu0
    %v6164 = vadd.f32 %v6150, %v6163
    %v6165 = vpop.f32.mrf.mxu0
    %v6166 = vadd.f32 %v6152, %v6165
    %6167 = vdwg.mxu0
    %6168 = vmatpush.bf16.msra.mxu0 %v5477
    %6169 = vmatpush.bf16.msra.mxu0 %v5473
    %6170 = vmatpush.bf16.msra.mxu0 %v5469
    %6171 = vmatpush.bf16.msra.mxu0 %v5465
    %6172 = vmatpush.bf16.msra.mxu0 %v5461
    %6173 = vmatpush.bf16.msra.mxu0 %v5457
    %6174 = vmatpush.bf16.msra.mxu0 %v5453
    %6175 = vmatpush.bf16.msra.mxu0 %v5449
    %6176 = vmatmul.bf16.gmra.mxu0 %v4187
    %v6177 = vpop.f32.mrf.mxu0
    %v6178 = vadd.f32 %v6164, %v6177
    %v6179 = vpop.f32.mrf.mxu0
    %v6180 = vadd.f32 %v6166, %v6179
    %6181 = vdwg.mxu0
    %v6182 = vmax.f32 %v5842, 0.0
    %v6183 = vmax.f32 %v5954, 0.0
    %v6184 = vmax.f32 %v6066, 0.0
    %v6185 = vmax.f32 %v6178, 0.0
    %v6186 = vmax.f32 %v5844, 0.0
    %v6187 = vmax.f32 %v5956, 0.0
    %v6188 = vmax.f32 %v6068, 0.0
    %v6189 = vmax.f32 %v6180, 0.0
    %v6190 = vpack.c.bf16 %v6186, %v6182
    %v6191 = vpack.c.bf16 %v6187, %v6183
    %v6192 = vpack.c.bf16 %v6188, %v6184
    %v6193 = vpack.c.bf16 %v6189, %v6185
    %v6194 = vld [vmem:[#allocation11] sm:$0xf]
    %v6195 = vld [vmem:[#allocation11 + $0x4] sm:$0xf]
    %v6196 = vld [vmem:[#allocation11 + $0x8] sm:$0xf]
    %v6197 = vld [vmem:[#allocation11 + $0xc] sm:$0xf]
    %v6198 = vld [vmem:[#allocation11 + $0x10] sm:$0xf]
    %v6199 = vld [vmem:[#allocation11 + $0x14] sm:$0xf]
    %v6200 = vld [vmem:[#allocation11 + $0x18] sm:$0xf]
    %v6201 = vld [vmem:[#allocation11 + $0x1c] sm:$0xf]
    %v6202 = vld [vmem:[#allocation11 + $0x20] sm:$0xf]
    %v6203 = vld [vmem:[#allocation11 + $0x24] sm:$0xf]
    %v6204 = vld [vmem:[#allocation11 + $0x28] sm:$0xf]
    %v6205 = vld [vmem:[#allocation11 + $0x2c] sm:$0xf]
    %v6206 = vld [vmem:[#allocation11 + $0x30] sm:$0xf]
    %v6207 = vld [vmem:[#allocation11 + $0x34] sm:$0xf]
    %v6208 = vld [vmem:[#allocation11 + $0x38] sm:$0xf]
    %v6209 = vld [vmem:[#allocation11 + $0x3c] sm:$0xf]
    %v6210 = vld [vmem:[#allocation11 + $0x40] sm:$0xf]
    %v6211 = vld [vmem:[#allocation11 + $0x44] sm:$0xf]
    %v6212 = vld [vmem:[#allocation11 + $0x48] sm:$0xf]
    %v6213 = vld [vmem:[#allocation11 + $0x4c] sm:$0xf]
    %v6214 = vld [vmem:[#allocation11 + $0x50] sm:$0xf]
    %v6215 = vld [vmem:[#allocation11 + $0x54] sm:$0xf]
    %v6216 = vld [vmem:[#allocation11 + $0x58] sm:$0xf]
    %v6217 = vld [vmem:[#allocation11 + $0x5c] sm:$0xf]
    %v6218 = vld [vmem:[#allocation11 + $0x60] sm:$0xf]
    %v6219 = vld [vmem:[#allocation11 + $0x64] sm:$0xf]
    %v6220 = vld [vmem:[#allocation11 + $0x68] sm:$0xf]
    %v6221 = vld [vmem:[#allocation11 + $0x6c] sm:$0xf]
    %v6222 = vld [vmem:[#allocation11 + $0x70] sm:$0xf]
    %v6223 = vld [vmem:[#allocation11 + $0x74] sm:$0xf]
    %v6224 = vld [vmem:[#allocation11 + $0x78] sm:$0xf]
    %v6225 = vld [vmem:[#allocation11 + $0x7c] sm:$0xf]
    %v6226 = vld [vmem:[#allocation11 + $0x80] sm:$0xf]
    %v6227 = vld [vmem:[#allocation11 + $0x84] sm:$0xf]
    %v6228 = vld [vmem:[#allocation11 + $0x88] sm:$0xf]
    %v6229 = vld [vmem:[#allocation11 + $0x8c] sm:$0xf]
    %v6230 = vld [vmem:[#allocation11 + $0x90] sm:$0xf]
    %v6231 = vld [vmem:[#allocation11 + $0x94] sm:$0xf]
    %v6232 = vld [vmem:[#allocation11 + $0x98] sm:$0xf]
    %v6233 = vld [vmem:[#allocation11 + $0x9c] sm:$0xf]
    %v6234 = vld [vmem:[#allocation11 + $0xa0] sm:$0xf]
    %v6235 = vld [vmem:[#allocation11 + $0xa4] sm:$0xf]
    %v6236 = vld [vmem:[#allocation11 + $0xa8] sm:$0xf]
    %v6237 = vld [vmem:[#allocation11 + $0xac] sm:$0xf]
    %v6238 = vld [vmem:[#allocation11 + $0xb0] sm:$0xf]
    %v6239 = vld [vmem:[#allocation11 + $0xb4] sm:$0xf]
    %v6240 = vld [vmem:[#allocation11 + $0xb8] sm:$0xf]
    %v6241 = vld [vmem:[#allocation11 + $0xbc] sm:$0xf]
    %v6242 = vld [vmem:[#allocation11 + $0xc0] sm:$0xf]
    %v6243 = vld [vmem:[#allocation11 + $0xc4] sm:$0xf]
    %v6244 = vld [vmem:[#allocation11 + $0xc8] sm:$0xf]
    %v6245 = vld [vmem:[#allocation11 + $0xcc] sm:$0xf]
    %v6246 = vld [vmem:[#allocation11 + $0xd0] sm:$0xf]
    %v6247 = vld [vmem:[#allocation11 + $0xd4] sm:$0xf]
    %v6248 = vld [vmem:[#allocation11 + $0xd8] sm:$0xf]
    %v6249 = vld [vmem:[#allocation11 + $0xdc] sm:$0xf]
    %v6250 = vld [vmem:[#allocation11 + $0xe0] sm:$0xf]
    %v6251 = vld [vmem:[#allocation11 + $0xe4] sm:$0xf]
    %v6252 = vld [vmem:[#allocation11 + $0xe8] sm:$0xf]
    %v6253 = vld [vmem:[#allocation11 + $0xec] sm:$0xf]
    %v6254 = vld [vmem:[#allocation11 + $0xf0] sm:$0xf]
    %v6255 = vld [vmem:[#allocation11 + $0xf4] sm:$0xf]
    %v6256 = vld [vmem:[#allocation11 + $0xf8] sm:$0xf]
    %v6257 = vld [vmem:[#allocation11 + $0xfc] sm:$0xf]
    %v6258 = vld [vmem:[#allocation13] sm:$0x1]
    %v6260 = vperm.slane %v6258, 0
    %v6326 = vunpack.c.l.b16 %v6194
    %v6327 = vunpack.c.l.b16 %v6195
    %v6328 = vunpack.c.l.b16 %v6196
    %v6329 = vunpack.c.l.b16 %v6197
    %v6330 = vunpack.c.l.b16 %v6198
    %v6331 = vunpack.c.l.b16 %v6199
    %v6332 = vunpack.c.l.b16 %v6200
    %v6333 = vunpack.c.l.b16 %v6201
    %v6334 = vunpack.c.l.b16 %v6202
    %v6335 = vunpack.c.l.b16 %v6203
    %v6336 = vunpack.c.l.b16 %v6204
    %v6337 = vunpack.c.l.b16 %v6205
    %v6338 = vunpack.c.l.b16 %v6206
    %v6339 = vunpack.c.l.b16 %v6207
    %v6340 = vunpack.c.l.b16 %v6208
    %v6341 = vunpack.c.l.b16 %v6209
    %v6342 = vunpack.c.l.b16 %v6210
    %v6343 = vunpack.c.l.b16 %v6211
    %v6344 = vunpack.c.l.b16 %v6212
    %v6345 = vunpack.c.l.b16 %v6213
    %v6346 = vunpack.c.l.b16 %v6214
    %v6347 = vunpack.c.l.b16 %v6215
    %v6348 = vunpack.c.l.b16 %v6216
    %v6349 = vunpack.c.l.b16 %v6217
    %v6350 = vunpack.c.l.b16 %v6218
    %v6351 = vunpack.c.l.b16 %v6219
    %v6352 = vunpack.c.l.b16 %v6220
    %v6353 = vunpack.c.l.b16 %v6221
    %v6354 = vunpack.c.l.b16 %v6222
    %v6355 = vunpack.c.l.b16 %v6223
    %v6356 = vunpack.c.l.b16 %v6224
    %v6357 = vunpack.c.l.b16 %v6225
    %v6358 = vunpack.c.l.b16 %v6226
    %v6359 = vunpack.c.l.b16 %v6227
    %v6360 = vunpack.c.l.b16 %v6228
    %v6361 = vunpack.c.l.b16 %v6229
    %v6362 = vunpack.c.l.b16 %v6230
    %v6363 = vunpack.c.l.b16 %v6231
    %v6364 = vunpack.c.l.b16 %v6232
    %v6365 = vunpack.c.l.b16 %v6233
    %v6366 = vunpack.c.l.b16 %v6234
    %v6367 = vunpack.c.l.b16 %v6235
    %v6368 = vunpack.c.l.b16 %v6236
    %v6369 = vunpack.c.l.b16 %v6237
    %v6370 = vunpack.c.l.b16 %v6238
    %v6371 = vunpack.c.l.b16 %v6239
    %v6372 = vunpack.c.l.b16 %v6240
    %v6373 = vunpack.c.l.b16 %v6241
    %v6374 = vunpack.c.l.b16 %v6242
    %v6375 = vunpack.c.l.b16 %v6243
    %v6376 = vunpack.c.l.b16 %v6244
    %v6377 = vunpack.c.l.b16 %v6245
    %v6378 = vunpack.c.l.b16 %v6246
    %v6379 = vunpack.c.l.b16 %v6247
    %v6380 = vunpack.c.l.b16 %v6248
    %v6381 = vunpack.c.l.b16 %v6249
    %v6382 = vunpack.c.l.b16 %v6250
    %v6383 = vunpack.c.l.b16 %v6251
    %v6384 = vunpack.c.l.b16 %v6252
    %v6385 = vunpack.c.l.b16 %v6253
    %v6386 = vunpack.c.l.b16 %v6254
    %v6387 = vunpack.c.l.b16 %v6255
    %v6388 = vunpack.c.l.b16 %v6256
    %v6389 = vunpack.c.l.b16 %v6257
    %v6390 = vpack.c.b16 %v6327, %v6326
    %v6391 = vpack.c.b16 %v6329, %v6328
    %v6392 = vpack.c.b16 %v6331, %v6330
    %v6393 = vpack.c.b16 %v6333, %v6332
    %v6394 = vpack.c.b16 %v6335, %v6334
    %v6395 = vpack.c.b16 %v6337, %v6336
    %v6396 = vpack.c.b16 %v6339, %v6338
    %v6397 = vpack.c.b16 %v6341, %v6340
    %v6398 = vpack.c.b16 %v6343, %v6342
    %v6399 = vpack.c.b16 %v6345, %v6344
    %v6400 = vpack.c.b16 %v6347, %v6346
    %v6401 = vpack.c.b16 %v6349, %v6348
    %v6402 = vpack.c.b16 %v6351, %v6350
    %v6403 = vpack.c.b16 %v6353, %v6352
    %v6404 = vpack.c.b16 %v6355, %v6354
    %v6405 = vpack.c.b16 %v6357, %v6356
    %v6406 = vpack.c.b16 %v6359, %v6358
    %v6407 = vpack.c.b16 %v6361, %v6360
    %v6408 = vpack.c.b16 %v6363, %v6362
    %v6409 = vpack.c.b16 %v6365, %v6364
    %v6410 = vpack.c.b16 %v6367, %v6366
    %v6411 = vpack.c.b16 %v6369, %v6368
    %v6412 = vpack.c.b16 %v6371, %v6370
    %v6413 = vpack.c.b16 %v6373, %v6372
    %v6414 = vpack.c.b16 %v6375, %v6374
    %v6415 = vpack.c.b16 %v6377, %v6376
    %v6416 = vpack.c.b16 %v6379, %v6378
    %v6417 = vpack.c.b16 %v6381, %v6380
    %v6418 = vpack.c.b16 %v6383, %v6382
    %v6419 = vpack.c.b16 %v6385, %v6384
    %v6420 = vpack.c.b16 %v6387, %v6386
    %v6421 = vpack.c.b16 %v6389, %v6388
    %6454 = vmatpush.bf16.msra.mxu0 %v6397
    %6455 = vmatpush.bf16.msra.mxu0 %v6396
    %6456 = vmatpush.bf16.msra.mxu0 %v6395
    %6457 = vmatpush.bf16.msra.mxu0 %v6394
    %6458 = vmatpush.bf16.msra.mxu0 %v6393
    %6459 = vmatpush.bf16.msra.mxu0 %v6392
    %6460 = vmatpush.bf16.msra.mxu0 %v6391
    %6461 = vmatpush.bf16.msra.mxu0 %v6390
    %6462 = vmatmul.bf16.gmra.mxu0 %v6190
    %v6463 = vpop.f32.mrf.mxu0
    %v6464 = vadd.f32 %v6260, %v6463
    %v6465 = vpop.f32.mrf.mxu0
    %v6466 = vadd.f32 %v6260, %v6465
    %6467 = vdwg.mxu0
    %6468 = vmatpush.bf16.msra.mxu0 %v6405
    %6469 = vmatpush.bf16.msra.mxu0 %v6404
    %6470 = vmatpush.bf16.msra.mxu0 %v6403
    %6471 = vmatpush.bf16.msra.mxu0 %v6402
    %6472 = vmatpush.bf16.msra.mxu0 %v6401
    %6473 = vmatpush.bf16.msra.mxu0 %v6400
    %6474 = vmatpush.bf16.msra.mxu0 %v6399
    %6475 = vmatpush.bf16.msra.mxu0 %v6398
    %6476 = vmatmul.bf16.gmra.mxu0 %v6191
    %v6477 = vpop.f32.mrf.mxu0
    %v6478 = vadd.f32 %v6464, %v6477
    %v6479 = vpop.f32.mrf.mxu0
    %v6480 = vadd.f32 %v6466, %v6479
    %6481 = vdwg.mxu0
    %6482 = vmatpush.bf16.msra.mxu0 %v6413
    %6483 = vmatpush.bf16.msra.mxu0 %v6412
    %6484 = vmatpush.bf16.msra.mxu0 %v6411
    %6485 = vmatpush.bf16.msra.mxu0 %v6410
    %6486 = vmatpush.bf16.msra.mxu0 %v6409
    %6487 = vmatpush.bf16.msra.mxu0 %v6408
    %6488 = vmatpush.bf16.msra.mxu0 %v6407
    %6489 = vmatpush.bf16.msra.mxu0 %v6406
    %6490 = vmatmul.bf16.gmra.mxu0 %v6192
    %v6491 = vpop.f32.mrf.mxu0
    %v6492 = vadd.f32 %v6478, %v6491
    %v6493 = vpop.f32.mrf.mxu0
    %v6494 = vadd.f32 %v6480, %v6493
    %6495 = vdwg.mxu0
    %6496 = vmatpush.bf16.msra.mxu0 %v6421
    %6497 = vmatpush.bf16.msra.mxu0 %v6420
    %6498 = vmatpush.bf16.msra.mxu0 %v6419
    %6499 = vmatpush.bf16.msra.mxu0 %v6418
    %6500 = vmatpush.bf16.msra.mxu0 %v6417
    %6501 = vmatpush.bf16.msra.mxu0 %v6416
    %6502 = vmatpush.bf16.msra.mxu0 %v6415
    %6503 = vmatpush.bf16.msra.mxu0 %v6414
    %6504 = vmatmul.bf16.gmra.mxu0 %v6193
    %v6505 = vpop.f32.mrf.mxu0
    %v6506 = vadd.f32 %v6492, %v6505
    %v6507 = vpop.f32.mrf.mxu0
    %v6508 = vadd.f32 %v6494, %v6507
    %6509 = vdwg.mxu0
    %v6510 = vxor.u32 %v6506, 2147483648
    %v6511 = vxor.u32 %v6508, 2147483648
    %v6512 = vmul.f32 %v6510, 1.442695
    %v6513 = vpow.pop %v6512
    %v6514 = vmul.f32 %v6511, 1.442695
    %v6515 = vpow.pop %v6514
    %v6516 = vadd.f32 %v6513, 1.0
    %v6517 = vadd.f32 %v6515, 1.0
    %v6518 = vrcp.pop %v6516
    %v6519 = vmul.f32 %v6516, %v6518
    %v6520 = vsub.f32 1.0, %v6519
    %v6521 = vmul.f32 %v6518, %v6520
    %v6522 = vadd.f32 %v6518, %v6521
    %vm6523 = vweird.f32 %v6516
    %vm6524 = vweird.f32 %v6518
    %vm6525 = vmor %vm6523, %vm6524
    %v6526 = vsel %vm6525, %v6518, %v6522
    %v6527 = vand.u32 2147483647, %v6516
    %vm6528 = vcmp.eq.f32.partialorder %v6527, 8.507059e+37
    %v6529 = vand.u32 %v6516, 2147483648
    %v6530 = vor.u32 1.1754944e-38, %v6529
    %v6531 = vsel %vm6528, %v6530, %v6526
    %v6532 = vmul.f32 1.0, %v6531
    %v6533 = vrcp.pop %v6517
    %v6534 = vmul.f32 %v6517, %v6533
    %v6535 = vsub.f32 1.0, %v6534
    %v6536 = vmul.f32 %v6533, %v6535
    %v6537 = vadd.f32 %v6533, %v6536
    %vm6538 = vweird.f32 %v6517
    %vm6539 = vweird.f32 %v6533
    %vm6540 = vmor %vm6538, %vm6539
    %v6541 = vsel %vm6540, %v6533, %v6537
    %v6542 = vand.u32 2147483647, %v6517
    %vm6543 = vcmp.eq.f32.partialorder %v6542, 8.507059e+37
    %v6544 = vand.u32 %v6517, 2147483648
    %v6545 = vor.u32 1.1754944e-38, %v6544
    %v6546 = vsel %vm6543, %v6545, %v6541
    %v6547 = vmul.f32 1.0, %v6546
    %v6548 = vpack.c.bf16 %v6532, %v6532
    %v6549 = vpack.c.bf16 %v6547, %v6547
    %6550 = vst [vmem:[#allocation14] sm:$0xf] %v6548
    %6551 = vst [vmem:[#allocation14 + $0x4] sm:$0xf] %v6549
    // Predicated region
    $region58: #{tpu_custom_call.1} parent=1 // pred_check
      _
    $region59: #{tpu_custom_call.1} parent=1 // pred_check_branch
      %6553 = sbr.rel (0) target = $region61
    $region60: #{tpu_custom_call.1} parent=1 // pred_region
      %6555 = vsyncadd [#allocation4], 0
      %s6556 = sshll.u32 [#allocation14], 4
      %s6557 = int_to_ptr.vmem [resolvable:$true] %s6556
      %s6558 = sshll.u32 %s7, 4
      %s6559 = int_to_ptr.hbm [resolvable:$true] %s6558
      %6564 = dma.vmem_to_hbm [thread:$0]  %s6557, 128, %s6559, [#allocation4], 64, 64, 4
    $region61: #{tpu_custom_call.1} parent=1 // pred_fallthru
      _
    // Predicated region
    $region62: #{tpu_custom_call.1} parent=1 // pred_check
      _
    $region63: #{tpu_custom_call.1} parent=1 // pred_check_branch
      %6566 = sbr.rel (0) target = $region65
    $region64: #{tpu_custom_call.1} parent=1 // pred_region
      %6568 = dma.done [#allocation4], 128
    $region65: #{tpu_custom_call.1} parent=1 // pred_fallthru
      _
    %6569 = vsyncpa [#allocation3], 1
    %6570 = vsyncpa [#allocation6], 1
    %6571 = vsyncpa [#allocation9], 1
    %6572 = vsyncpa [#allocation12], 1
    %6573 = vsyncpa [#allocation4], 1

</llo_original>
